<compile_context>
chip_gen: v6e
topology: v6e:2x2x1
jax: 0.10.0
libtpu: 0.0.40
codegen_flags: <defaults>
</compile_context>

<pallas_src>
import functools

import jax
import jax.numpy as jnp
from jax.experimental import pallas as pl
from jax.experimental.pallas import tpu as pltpu


def _lstm_gates(gates, c):
    """PyTorch LSTM gate order: i, f, g, o."""
    H = c.shape[1]
    i_g = jax.nn.sigmoid(gates[:, 0 * H:1 * H])
    f_g = jax.nn.sigmoid(gates[:, 1 * H:2 * H])
    g_g = jnp.tanh(gates[:, 2 * H:3 * H])
    o_g = jax.nn.sigmoid(gates[:, 3 * H:4 * H])
    c_new = f_g * c + i_g * g_g
    h_new = o_g * jnp.tanh(c_new)
    return h_new, c_new


def g2p_fused_kernel(e_g_ref, e_p_ref,
                     enc_wih_ref, enc_whh_ref, enc_b_ref,
                     dec_wih_ref, dec_whh_ref, dec_b_ref,
                     attn_w1_ref, attn_w2_ref,
                     out_w_ref, out_b_ref,
                     lp_ref, h_out_ref, c_out_ref,
                     gx_enc_ref, gx_dec_ref, ctx_ref):
    f32 = jnp.float32
    H = enc_whh_ref.shape[0]
    bz = h_out_ref.shape[0]
    SB = ctx_ref.shape[0]              # seq_g * bz
    seq_g = SB // bz
    seq_p = lp_ref.shape[0] // bz

    # ---- Hoisted input projections: one big MXU matmul per sequence. ------
    gx_enc_ref[...] = (jnp.dot(e_g_ref[...], enc_wih_ref[...],
                               preferred_element_type=f32) + enc_b_ref[...])
    gx_dec_ref[...] = (jnp.dot(e_p_ref[...], dec_wih_ref[...],
                               preferred_element_type=f32) + dec_b_ref[...])

    enc_whh = enc_whh_ref[...]
    h = jnp.zeros((bz, H), f32)
    c = jnp.zeros((bz, H), f32)

    # ---- Encoder: unrolled recurrence, only h @ W_hh per step. ------------
    for t in range(seq_g):
        gates = gx_enc_ref[t * bz:(t + 1) * bz, :] + jnp.dot(
            h, enc_whh, preferred_element_type=f32)
        h, c = _lstm_gates(gates, c)
        ctx_ref[t * bz:(t + 1) * bz, :] = h        # context row (t, b) = t*bz+b

    # ---- Decoder: LSTMCell + attention + projection + log_softmax. --------
    ctx = ctx_ref[...]                 # [seq_g*bz, H], stays resident in VMEM
    dec_whh = dec_whh_ref[...]
    attn_w1 = attn_w1_ref[...]
    attn_w2 = attn_w2_ref[...]
    out_w = out_w_ref[...]
    out_b = out_b_ref[...]

    # Batch-block mask for the flattened score matrix h @ ctx^T:
    # column r = t*bz + b' belongs to batch b'; row b only attends where b'==b.
    col = jax.lax.broadcasted_iota(jnp.int32, (bz, SB), 1)
    row = jax.lax.broadcasted_iota(jnp.int32, (bz, SB), 0)
    valid = (col % bz) == row
    neg_big = jnp.float32(-1e30)

    for t in range(seq_p):
        gates = gx_dec_ref[t * bz:(t + 1) * bz, :] + jnp.dot(
            h, dec_whh, preferred_element_type=f32)
        h, c = _lstm_gates(gates, c)

        # Attention scores on the MXU: h @ ctx^T (cross-batch columns masked).
        scores = jax.lax.dot_general(h, ctx, (((1,), (1,)), ((), ())),
                                     preferred_element_type=f32)  # [bz, SB]
        scores = jnp.where(valid, scores, neg_big)
        scores = scores - jnp.max(scores, axis=1, keepdims=True)
        e = jnp.exp(scores)
        attn = e * pl.reciprocal(jnp.sum(e, axis=1, keepdims=True), approx=True)
        # Masked entries are exactly 0 => weighted = sum_t attn[b,t]*ctx[t,b].
        weighted = jnp.dot(attn, ctx, preferred_element_type=f32)   # [bz, H]

        # tanh(FC(h | weighted)) without a lane-axis concat.
        ctxt = jnp.tanh(jnp.dot(h, attn_w1, preferred_element_type=f32)
                        + jnp.dot(weighted, attn_w2, preferred_element_type=f32))

        # Vocab projection (padded to a lane-dense 128 multiple) + log_softmax.
        logits = jnp.dot(ctxt, out_w, preferred_element_type=f32) + out_b
        m = jnp.max(logits, axis=1, keepdims=True)
        lse = jnp.log(jnp.sum(jnp.exp(logits - m), axis=1, keepdims=True)) + m
        lp_ref[t * bz:(t + 1) * bz, :] = logits - lse

    h_out_ref[...] = h
    c_out_ref[...] = c


# ----------------------------------------------------------------------------
# JAX wrapper: embedding gathers + parameter reshaping are glue; one kernel.
# ----------------------------------------------------------------------------
def g2p_forward(params, g_seq, p_seq):
    emb_g, emb_p = params["emb_g"], params["emb_p"]
    bz, seq_g = g_seq.shape
    seq_p = p_seq.shape[1]
    E = emb_g.shape[1]
    H = params["enc_w_hh"].shape[0]
    P = params["out_w"].shape[1]
    P_pad = ((P + 127) // 128) * 128

    # Embedding lookups, flattened time-major: row index = t*bz + b.
    e_g_flat = emb_g[jnp.transpose(g_seq)].reshape(seq_g * bz, E)
    e_p_flat = emb_p[jnp.transpose(p_seq)].reshape(seq_p * bz, E)

    # Split the attention FC (avoids an in-kernel lane concat); pad the output
    # vocab to 128 lanes (padded columns get bias -1e30 -> masked by softmax).
    attn_w1 = params["attn_w"][:H]
    attn_w2 = params["attn_w"][H:]
    out_w_p = jnp.pad(params["out_w"], ((0, 0), (0, P_pad - P)))
    out_b_p = jnp.pad(params["out_b"], ((0, 0), (0, P_pad - P)),
                      constant_values=-1e30)

    lp_pad, h_dec, c_dec = pl.pallas_call(
        g2p_fused_kernel,
        out_shape=(jax.ShapeDtypeStruct((seq_p * bz, P_pad), jnp.float32),
                   jax.ShapeDtypeStruct((bz, H), jnp.float32),
                   jax.ShapeDtypeStruct((bz, H), jnp.float32)),
        scratch_shapes=[pltpu.VMEM((seq_g * bz, 4 * H), jnp.float32),  # gates_x enc
                        pltpu.VMEM((seq_p * bz, 4 * H), jnp.float32),  # gates_x dec
                        pltpu.VMEM((seq_g * bz, H), jnp.float32)],     # context
    )(e_g_flat, e_p_flat,
      params["enc_w_ih"], params["enc_w_hh"], params["enc_b"],
      params["dec_w_ih"], params["dec_w_hh"], params["dec_b"],
      attn_w1, attn_w2, out_w_p, out_b_p)

    # [seq_p*bz, P_pad] (time-major rows) -> [bz, seq_p, P]; this final
    # transpose/slice touches a few KB only.
    log_probs = jnp.transpose(
        lp_pad.reshape(seq_p, bz, P_pad), (1, 0, 2))[:, :, :P]
    return log_probs, h_dec, c_dec


# ----------------------------------------------------------------------------
# Pure-JAX reference (for correctness check).
# ----------------------------------------------------------------------------
def _lstm_cell_ref(x, h, c, w_ih, w_hh, b):
    gates = x @ w_ih + h @ w_hh + b
    H = h.shape[1]
    i = jax.nn.sigmoid(gates[:, :H])
    f = jax.nn.sigmoid(gates[:, H:2 * H])
    g = jnp.tanh(gates[:, 2 * H:3 * H])
    o = jax.nn.sigmoid(gates[:, 3 * H:])
    c = f * c + i * g
    h = o * jnp.tanh(c)
    return h, c


def g2p_ref(params, g_seq, p_seq):
    e_g = params["emb_g"][g_seq]
    e_p = params["emb_p"][p_seq]
    bz = g_seq.shape[0]
    H = params["enc_w_hh"].shape[0]
    h = jnp.zeros((bz, H), jnp.float32)
    c = jnp.zeros((bz, H), jnp.float32)
    ctx = []
    for t in range(g_seq.shape[1]):
        h, c = _lstm_cell_ref(e_g[:, t], h, c,
                              params["enc_w_ih"], params["enc_w_hh"],
                              params["enc_b"])
        ctx.append(h)
    context = jnp.stack(ctx, axis=1)
    outs = []
    for t in range(p_seq.shape[1]):
        h, c = _lstm_cell_ref(e_p[:, t], h, c,
                              params["dec_w_ih"], params["dec_w_hh"],
                              params["dec_b"])
        scores = jnp.sum(context * h[:, None, :], axis=-1)
        attn = jax.nn.softmax(scores, axis=1)
        weighted = jnp.sum(attn[:, :, None] * context, axis=1)
        out = jnp.tanh(jnp.concatenate([h, weighted], 1) @ params["attn_w"])
        outs.append(out)
    ctxt = jnp.stack(outs, axis=1)
    logits = ctxt @ params["out_w"] + params["out_b"]
    return jax.nn.log_softmax(logits, axis=-1), h, c


# ----------------------------------------------------------------------------
if __name__ == "__main__":
    # Small, forward-consistent sizes.
    num_g, num_p = 16, 12
    emb_dim, hidden_dim = 32, 32
    bz, seq_g, seq_p = 2, 8, 6

    key = jax.random.PRNGKey(0)
    ks = jax.random.split(key, 16)

    def nrm(k, shape, scale=0.1):
        return (scale * jax.random.normal(k, shape)).astype(jnp.float32)

    H4 = 4 * hidden_dim
    params = {
        "emb_g": nrm(ks[0], (num_g, emb_dim)),
        "emb_p": nrm(ks[1], (num_p, emb_dim)),
        # Encoder LSTM (PyTorch weight_ih [4H,E] stored transposed [E,4H]).
        "enc_w_ih": nrm(ks[2], (emb_dim, H4)),
        "enc_w_hh": nrm(ks[3], (hidden_dim, H4)),
        "enc_b": nrm(ks[4], (1, H4)),     # b_ih + b_hh folded together
        # Decoder LSTMCell.
        "dec_w_ih": nrm(ks[5], (emb_dim, H4)),
        "dec_w_hh": nrm(ks[6], (hidden_dim, H4)),
        "dec_b": nrm(ks[7], (1, H4)),
        # Attention linear (dim*2 -> dim, no bias), stored as [2H, H].
        "attn_w": nrm(ks[8], (2 * hidden_dim, hidden_dim)),
        # Decoder output linear (H -> num_p), stored as [H, num_p].
        "out_w": nrm(ks[9], (hidden_dim, num_p)),
        "out_b": nrm(ks[10], (1, num_p)),
    }

    g_seq = jax.random.randint(ks[11], (bz, seq_g), 0, num_g)
    p_seq = jax.random.randint(ks[12], (bz, seq_p), 0, num_p)

    fwd = jax.jit(functools.partial(g2p_forward, params))
    log_probs, h_dec, c_dec = fwd(g_seq, p_seq)
    jax.block_until_ready((log_probs, h_dec, c_dec))

    # Correctness against pure-JAX reference (tolerance covers the
    # approx-reciprocal softmax denominator and summation-order differences).
    ref_lp, ref_h, ref_c = g2p_ref(params, g_seq, p_seq)
    assert log_probs.shape == (bz, seq_p, num_p)
    assert h_dec.shape == (bz, hidden_dim) and c_dec.shape == (bz, hidden_dim)
    assert jnp.allclose(log_probs, ref_lp, atol=1e-3, rtol=1e-3)
    assert jnp.allclose(h_dec, ref_h, atol=1e-3, rtol=1e-3)
    assert jnp.allclose(c_dec, ref_c, atol=1e-3, rtol=1e-3)

    # TODO(synk): beam-search _gen() path (data-dependent control flow / Beam
    # class) is not translated; only the training forward (p_seq provided).
    print("KERNEL_OK")
</pallas_src>

<mosaic_0001>
module attributes {stable_mosaic.version = 11 : i64} {
  func.func @g2p_fused_kernel(%arg0: memref<16x32xf32, #tpu.memory_space<vmem>>, %arg1: memref<12x32xf32, #tpu.memory_space<vmem>>, %arg2: memref<32x128xf32, #tpu.memory_space<vmem>>, %arg3: memref<32x128xf32, #tpu.memory_space<vmem>>, %arg4: memref<1x128xf32, #tpu.memory_space<vmem>>, %arg5: memref<32x128xf32, #tpu.memory_space<vmem>>, %arg6: memref<32x128xf32, #tpu.memory_space<vmem>>, %arg7: memref<1x128xf32, #tpu.memory_space<vmem>>, %arg8: memref<32x32xf32, #tpu.memory_space<vmem>>, %arg9: memref<32x32xf32, #tpu.memory_space<vmem>>, %arg10: memref<32x128xf32, #tpu.memory_space<vmem>>, %arg11: memref<1x128xf32, #tpu.memory_space<vmem>>, %arg12: memref<12x128xf32, #tpu.memory_space<vmem>>, %arg13: memref<2x32xf32, #tpu.memory_space<vmem>>, %arg14: memref<2x32xf32, #tpu.memory_space<vmem>>, %arg15: memref<16x128xf32, #tpu.memory_space<vmem>>, %arg16: memref<12x128xf32, #tpu.memory_space<vmem>>, %arg17: memref<16x32xf32, #tpu.memory_space<vmem>>) attributes {dimension_semantics = [], scalar_prefetch = 0 : i64, scratch_operands = 3 : i64, tpu.core_type = #tpu.core_type<tc>} {
    %c0 = arith.constant 0 : index
    %c0_0 = arith.constant 0 : index
    %0 = vector.load %arg0[%c0, %c0_0] : memref<16x32xf32, #tpu.memory_space<vmem>>, vector<16x32xf32>
    %c0_1 = arith.constant 0 : index
    %c0_2 = arith.constant 0 : index
    %1 = vector.load %arg2[%c0_1, %c0_2] : memref<32x128xf32, #tpu.memory_space<vmem>>, vector<32x128xf32>
    %cst = arith.constant dense<0.000000e+00> : vector<16x128xf32>
    %2 = tpu.matmul %0, %1, %cst {dimension_numbers = #tpu.dot_dimension_numbers<[1], [0], [0], [1], [0, 0, 1, 1], [], []>} : vector<16x32xf32>, vector<32x128xf32>, vector<16x128xf32> -> vector<16x128xf32>
    %c0_3 = arith.constant 0 : index
    %c0_4 = arith.constant 0 : index
    %3 = vector.load %arg4[%c0_3, %c0_4] : memref<1x128xf32, #tpu.memory_space<vmem>>, vector<1x128xf32>
    %4 = vector.broadcast %3 : vector<1x128xf32> to vector<16x128xf32>
    %5 = arith.addf %2, %4 : vector<16x128xf32>
    %c0_5 = arith.constant 0 : index
    %c0_6 = arith.constant 0 : index
    %6 = vector.load %arg15[%c0_5, %c0_6] : memref<16x128xf32, #tpu.memory_space<vmem>>, vector<16x128xf32>
    tpu.vector_store %arg15[%c0_5, %c0_6], %5 {strides = array<i32>} : memref<16x128xf32, #tpu.memory_space<vmem>>, vector<16x128xf32>,
    %c0_7 = arith.constant 0 : index
    %c0_8 = arith.constant 0 : index
    %7 = vector.load %arg1[%c0_7, %c0_8] : memref<12x32xf32, #tpu.memory_space<vmem>>, vector<12x32xf32>
    %c0_9 = arith.constant 0 : index
    %c0_10 = arith.constant 0 : index
    %8 = vector.load %arg5[%c0_9, %c0_10] : memref<32x128xf32, #tpu.memory_space<vmem>>, vector<32x128xf32>
    %cst_11 = arith.constant dense<0.000000e+00> : vector<12x128xf32>
    %9 = tpu.matmul %7, %8, %cst_11 {dimension_numbers = #tpu.dot_dimension_numbers<[1], [0], [0], [1], [0, 0, 1, 1], [], []>} : vector<12x32xf32>, vector<32x128xf32>, vector<12x128xf32> -> vector<12x128xf32>
    %c0_12 = arith.constant 0 : index
    %c0_13 = arith.constant 0 : index
    %10 = vector.load %arg7[%c0_12, %c0_13] : memref<1x128xf32, #tpu.memory_space<vmem>>, vector<1x128xf32>
    %11 = vector.broadcast %10 : vector<1x128xf32> to vector<12x128xf32>
    %12 = arith.addf %9, %11 : vector<12x128xf32>
    %c0_14 = arith.constant 0 : index
    %c0_15 = arith.constant 0 : index
    %13 = vector.load %arg16[%c0_14, %c0_15] : memref<12x128xf32, #tpu.memory_space<vmem>>, vector<12x128xf32>
    tpu.vector_store %arg16[%c0_14, %c0_15], %12 {strides = array<i32>} : memref<12x128xf32, #tpu.memory_space<vmem>>, vector<12x128xf32>,
    %c0_16 = arith.constant 0 : index
    %c0_17 = arith.constant 0 : index
    %14 = vector.load %arg3[%c0_16, %c0_17] : memref<32x128xf32, #tpu.memory_space<vmem>>, vector<32x128xf32>
    %cst_18 = arith.constant 0.000000e+00 : f32
    %15 = vector.broadcast %cst_18 : f32 to vector<2x32xf32>
    %cst_19 = arith.constant 0.000000e+00 : f32
    %16 = vector.broadcast %cst_19 : f32 to vector<2x32xf32>
    %c0_20 = arith.constant 0 : index
    %c0_21 = arith.constant 0 : index
    %17 = vector.load %arg15[%c0_20, %c0_21] : memref<16x128xf32, #tpu.memory_space<vmem>>, vector<2x128xf32>
    %cst_22 = arith.constant dense<0.000000e+00> : vector<2x128xf32>
    %18 = tpu.matmul %15, %14, %cst_22 {dimension_numbers = #tpu.dot_dimension_numbers<[1], [0], [0], [1], [0, 0, 1, 1], [], []>} : vector<2x32xf32>, vector<32x128xf32>, vector<2x128xf32> -> vector<2x128xf32>
    %19 = arith.addf %17, %18 : vector<2x128xf32>
    %20 = vector.extract_strided_slice %19 {offsets = [0, 0], sizes = [2, 32], strides = [1, 1]} : vector<2x128xf32> to vector<2x32xf32>
    %21 = arith.negf %20 : vector<2x32xf32>
    %22 = math.exp %21 : vector<2x32xf32>
    %cst_23 = arith.constant 1.000000e+00 : f32
    %23 = vector.broadcast %cst_23 : f32 to vector<2x32xf32>
    %24 = arith.addf %23, %22 : vector<2x32xf32>
    %25 = arith.divf %23, %24 : vector<2x32xf32>
    %26 = vector.extract_strided_slice %19 {offsets = [0, 32], sizes = [2, 32], strides = [1, 1]} : vector<2x128xf32> to vector<2x32xf32>
    %27 = arith.negf %26 : vector<2x32xf32>
    %28 = math.exp %27 : vector<2x32xf32>
    %cst_24 = arith.constant 1.000000e+00 : f32
    %29 = vector.broadcast %cst_24 : f32 to vector<2x32xf32>
    %30 = arith.addf %29, %28 : vector<2x32xf32>
    %31 = arith.divf %29, %30 : vector<2x32xf32>
    %32 = vector.extract_strided_slice %19 {offsets = [0, 64], sizes = [2, 32], strides = [1, 1]} : vector<2x128xf32> to vector<2x32xf32>
    %33 = math.tanh %32 : vector<2x32xf32>
    %34 = vector.extract_strided_slice %19 {offsets = [0, 96], sizes = [2, 32], strides = [1, 1]} : vector<2x128xf32> to vector<2x32xf32>
    %35 = arith.negf %34 : vector<2x32xf32>
    %36 = math.exp %35 : vector<2x32xf32>
    %cst_25 = arith.constant 1.000000e+00 : f32
    %37 = vector.broadcast %cst_25 : f32 to vector<2x32xf32>
    %38 = arith.addf %37, %36 : vector<2x32xf32>
    %39 = arith.divf %37, %38 : vector<2x32xf32>
    %40 = arith.mulf %31, %16 : vector<2x32xf32>
    %41 = arith.mulf %25, %33 : vector<2x32xf32>
    %42 = arith.addf %40, %41 : vector<2x32xf32>
    %43 = math.tanh %42 : vector<2x32xf32>
    %44 = arith.mulf %39, %43 : vector<2x32xf32>
    %c0_26 = arith.constant 0 : index
    %c0_27 = arith.constant 0 : index
    %45 = vector.load %arg17[%c0_26, %c0_27] : memref<16x32xf32, #tpu.memory_space<vmem>>, vector<2x32xf32>
    tpu.vector_store %arg17[%c0_26, %c0_27], %44 {strides = array<i32>} : memref<16x32xf32, #tpu.memory_space<vmem>>, vector<2x32xf32>,
    %c2 = arith.constant 2 : index
    %c0_28 = arith.constant 0 : index
    %46 = vector.load %arg15[%c2, %c0_28] : memref<16x128xf32, #tpu.memory_space<vmem>>, vector<2x128xf32>
    %cst_29 = arith.constant dense<0.000000e+00> : vector<2x128xf32>
    %47 = tpu.matmul %44, %14, %cst_29 {dimension_numbers = #tpu.dot_dimension_numbers<[1], [0], [0], [1], [0, 0, 1, 1], [], []>} : vector<2x32xf32>, vector<32x128xf32>, vector<2x128xf32> -> vector<2x128xf32>
    %48 = arith.addf %46, %47 : vector<2x128xf32>
    %49 = vector.extract_strided_slice %48 {offsets = [0, 0], sizes = [2, 32], strides = [1, 1]} : vector<2x128xf32> to vector<2x32xf32>
    %50 = arith.negf %49 : vector<2x32xf32>
    %51 = math.exp %50 : vector<2x32xf32>
    %cst_30 = arith.constant 1.000000e+00 : f32
    %52 = vector.broadcast %cst_30 : f32 to vector<2x32xf32>
    %53 = arith.addf %52, %51 : vector<2x32xf32>
    %54 = arith.divf %52, %53 : vector<2x32xf32>
    %55 = vector.extract_strided_slice %48 {offsets = [0, 32], sizes = [2, 32], strides = [1, 1]} : vector<2x128xf32> to vector<2x32xf32>
    %56 = arith.negf %55 : vector<2x32xf32>
    %57 = math.exp %56 : vector<2x32xf32>
    %cst_31 = arith.constant 1.000000e+00 : f32
    %58 = vector.broadcast %cst_31 : f32 to vector<2x32xf32>
    %59 = arith.addf %58, %57 : vector<2x32xf32>
    %60 = arith.divf %58, %59 : vector<2x32xf32>
    %61 = vector.extract_strided_slice %48 {offsets = [0, 64], sizes = [2, 32], strides = [1, 1]} : vector<2x128xf32> to vector<2x32xf32>
    %62 = math.tanh %61 : vector<2x32xf32>
    %63 = vector.extract_strided_slice %48 {offsets = [0, 96], sizes = [2, 32], strides = [1, 1]} : vector<2x128xf32> to vector<2x32xf32>
    %64 = arith.negf %63 : vector<2x32xf32>
    %65 = math.exp %64 : vector<2x32xf32>
    %cst_32 = arith.constant 1.000000e+00 : f32
    %66 = vector.broadcast %cst_32 : f32 to vector<2x32xf32>
    %67 = arith.addf %66, %65 : vector<2x32xf32>
    %68 = arith.divf %66, %67 : vector<2x32xf32>
    %69 = arith.mulf %60, %42 : vector<2x32xf32>
    %70 = arith.mulf %54, %62 : vector<2x32xf32>
    %71 = arith.addf %69, %70 : vector<2x32xf32>
    %72 = math.tanh %71 : vector<2x32xf32>
    %73 = arith.mulf %68, %72 : vector<2x32xf32>
    %c2_33 = arith.constant 2 : index
    %c0_34 = arith.constant 0 : index
    %74 = vector.load %arg17[%c2_33, %c0_34] : memref<16x32xf32, #tpu.memory_space<vmem>>, vector<2x32xf32>
    tpu.vector_store %arg17[%c2_33, %c0_34], %73 {strides = array<i32>} : memref<16x32xf32, #tpu.memory_space<vmem>>, vector<2x32xf32>,
    %c4 = arith.constant 4 : index
    %c0_35 = arith.constant 0 : index
    %75 = vector.load %arg15[%c4, %c0_35] : memref<16x128xf32, #tpu.memory_space<vmem>>, vector<2x128xf32>
    %cst_36 = arith.constant dense<0.000000e+00> : vector<2x128xf32>
    %76 = tpu.matmul %73, %14, %cst_36 {dimension_numbers = #tpu.dot_dimension_numbers<[1], [0], [0], [1], [0, 0, 1, 1], [], []>} : vector<2x32xf32>, vector<32x128xf32>, vector<2x128xf32> -> vector<2x128xf32>
    %77 = arith.addf %75, %76 : vector<2x128xf32>
    %78 = vector.extract_strided_slice %77 {offsets = [0, 0], sizes = [2, 32], strides = [1, 1]} : vector<2x128xf32> to vector<2x32xf32>
    %79 = arith.negf %78 : vector<2x32xf32>
    %80 = math.exp %79 : vector<2x32xf32>
    %cst_37 = arith.constant 1.000000e+00 : f32
    %81 = vector.broadcast %cst_37 : f32 to vector<2x32xf32>
    %82 = arith.addf %81, %80 : vector<2x32xf32>
    %83 = arith.divf %81, %82 : vector<2x32xf32>
    %84 = vector.extract_strided_slice %77 {offsets = [0, 32], sizes = [2, 32], strides = [1, 1]} : vector<2x128xf32> to vector<2x32xf32>
    %85 = arith.negf %84 : vector<2x32xf32>
    %86 = math.exp %85 : vector<2x32xf32>
    %cst_38 = arith.constant 1.000000e+00 : f32
    %87 = vector.broadcast %cst_38 : f32 to vector<2x32xf32>
    %88 = arith.addf %87, %86 : vector<2x32xf32>
    %89 = arith.divf %87, %88 : vector<2x32xf32>
    %90 = vector.extract_strided_slice %77 {offsets = [0, 64], sizes = [2, 32], strides = [1, 1]} : vector<2x128xf32> to vector<2x32xf32>
    %91 = math.tanh %90 : vector<2x32xf32>
    %92 = vector.extract_strided_slice %77 {offsets = [0, 96], sizes = [2, 32], strides = [1, 1]} : vector<2x128xf32> to vector<2x32xf32>
    %93 = arith.negf %92 : vector<2x32xf32>
    %94 = math.exp %93 : vector<2x32xf32>
    %cst_39 = arith.constant 1.000000e+00 : f32
    %95 = vector.broadcast %cst_39 : f32 to vector<2x32xf32>
    %96 = arith.addf %95, %94 : vector<2x32xf32>
    %97 = arith.divf %95, %96 : vector<2x32xf32>
    %98 = arith.mulf %89, %71 : vector<2x32xf32>
    %99 = arith.mulf %83, %91 : vector<2x32xf32>
    %100 = arith.addf %98, %99 : vector<2x32xf32>
    %101 = math.tanh %100 : vector<2x32xf32>
    %102 = arith.mulf %97, %101 : vector<2x32xf32>
    %c4_40 = arith.constant 4 : index
    %c0_41 = arith.constant 0 : index
    %103 = vector.load %arg17[%c4_40, %c0_41] : memref<16x32xf32, #tpu.memory_space<vmem>>, vector<2x32xf32>
    tpu.vector_store %arg17[%c4_40, %c0_41], %102 {strides = array<i32>} : memref<16x32xf32, #tpu.memory_space<vmem>>, vector<2x32xf32>,
    %c6 = arith.constant 6 : index
    %c0_42 = arith.constant 0 : index
    %104 = vector.load %arg15[%c6, %c0_42] : memref<16x128xf32, #tpu.memory_space<vmem>>, vector<2x128xf32>
    %cst_43 = arith.constant dense<0.000000e+00> : vector<2x128xf32>
    %105 = tpu.matmul %102, %14, %cst_43 {dimension_numbers = #tpu.dot_dimension_numbers<[1], [0], [0], [1], [0, 0, 1, 1], [], []>} : vector<2x32xf32>, vector<32x128xf32>, vector<2x128xf32> -> vector<2x128xf32>
    %106 = arith.addf %104, %105 : vector<2x128xf32>
    %107 = vector.extract_strided_slice %106 {offsets = [0, 0], sizes = [2, 32], strides = [1, 1]} : vector<2x128xf32> to vector<2x32xf32>
    %108 = arith.negf %107 : vector<2x32xf32>
    %109 = math.exp %108 : vector<2x32xf32>
    %cst_44 = arith.constant 1.000000e+00 : f32
    %110 = vector.broadcast %cst_44 : f32 to vector<2x32xf32>
    %111 = arith.addf %110, %109 : vector<2x32xf32>
    %112 = arith.divf %110, %111 : vector<2x32xf32>
    %113 = vector.extract_strided_slice %106 {offsets = [0, 32], sizes = [2, 32], strides = [1, 1]} : vector<2x128xf32> to vector<2x32xf32>
    %114 = arith.negf %113 : vector<2x32xf32>
    %115 = math.exp %114 : vector<2x32xf32>
    %cst_45 = arith.constant 1.000000e+00 : f32
    %116 = vector.broadcast %cst_45 : f32 to vector<2x32xf32>
    %117 = arith.addf %116, %115 : vector<2x32xf32>
    %118 = arith.divf %116, %117 : vector<2x32xf32>
    %119 = vector.extract_strided_slice %106 {offsets = [0, 64], sizes = [2, 32], strides = [1, 1]} : vector<2x128xf32> to vector<2x32xf32>
    %120 = math.tanh %119 : vector<2x32xf32>
    %121 = vector.extract_strided_slice %106 {offsets = [0, 96], sizes = [2, 32], strides = [1, 1]} : vector<2x128xf32> to vector<2x32xf32>
    %122 = arith.negf %121 : vector<2x32xf32>
    %123 = math.exp %122 : vector<2x32xf32>
    %cst_46 = arith.constant 1.000000e+00 : f32
    %124 = vector.broadcast %cst_46 : f32 to vector<2x32xf32>
    %125 = arith.addf %124, %123 : vector<2x32xf32>
    %126 = arith.divf %124, %125 : vector<2x32xf32>
    %127 = arith.mulf %118, %100 : vector<2x32xf32>
    %128 = arith.mulf %112, %120 : vector<2x32xf32>
    %129 = arith.addf %127, %128 : vector<2x32xf32>
    %130 = math.tanh %129 : vector<2x32xf32>
    %131 = arith.mulf %126, %130 : vector<2x32xf32>
    %c6_47 = arith.constant 6 : index
    %c0_48 = arith.constant 0 : index
    %132 = vector.load %arg17[%c6_47, %c0_48] : memref<16x32xf32, #tpu.memory_space<vmem>>, vector<2x32xf32>
    tpu.vector_store %arg17[%c6_47, %c0_48], %131 {strides = array<i32>} : memref<16x32xf32, #tpu.memory_space<vmem>>, vector<2x32xf32>,
    %c8 = arith.constant 8 : index
    %c0_49 = arith.constant 0 : index
    %133 = vector.load %arg15[%c8, %c0_49] : memref<16x128xf32, #tpu.memory_space<vmem>>, vector<2x128xf32>
    %cst_50 = arith.constant dense<0.000000e+00> : vector<2x128xf32>
    %134 = tpu.matmul %131, %14, %cst_50 {dimension_numbers = #tpu.dot_dimension_numbers<[1], [0], [0], [1], [0, 0, 1, 1], [], []>} : vector<2x32xf32>, vector<32x128xf32>, vector<2x128xf32> -> vector<2x128xf32>
    %135 = arith.addf %133, %134 : vector<2x128xf32>
    %136 = vector.extract_strided_slice %135 {offsets = [0, 0], sizes = [2, 32], strides = [1, 1]} : vector<2x128xf32> to vector<2x32xf32>
    %137 = arith.negf %136 : vector<2x32xf32>
    %138 = math.exp %137 : vector<2x32xf32>
    %cst_51 = arith.constant 1.000000e+00 : f32
    %139 = vector.broadcast %cst_51 : f32 to vector<2x32xf32>
    %140 = arith.addf %139, %138 : vector<2x32xf32>
    %141 = arith.divf %139, %140 : vector<2x32xf32>
    %142 = vector.extract_strided_slice %135 {offsets = [0, 32], sizes = [2, 32], strides = [1, 1]} : vector<2x128xf32> to vector<2x32xf32>
    %143 = arith.negf %142 : vector<2x32xf32>
    %144 = math.exp %143 : vector<2x32xf32>
    %cst_52 = arith.constant 1.000000e+00 : f32
    %145 = vector.broadcast %cst_52 : f32 to vector<2x32xf32>
    %146 = arith.addf %145, %144 : vector<2x32xf32>
    %147 = arith.divf %145, %146 : vector<2x32xf32>
    %148 = vector.extract_strided_slice %135 {offsets = [0, 64], sizes = [2, 32], strides = [1, 1]} : vector<2x128xf32> to vector<2x32xf32>
    %149 = math.tanh %148 : vector<2x32xf32>
    %150 = vector.extract_strided_slice %135 {offsets = [0, 96], sizes = [2, 32], strides = [1, 1]} : vector<2x128xf32> to vector<2x32xf32>
    %151 = arith.negf %150 : vector<2x32xf32>
    %152 = math.exp %151 : vector<2x32xf32>
    %cst_53 = arith.constant 1.000000e+00 : f32
    %153 = vector.broadcast %cst_53 : f32 to vector<2x32xf32>
    %154 = arith.addf %153, %152 : vector<2x32xf32>
    %155 = arith.divf %153, %154 : vector<2x32xf32>
    %156 = arith.mulf %147, %129 : vector<2x32xf32>
    %157 = arith.mulf %141, %149 : vector<2x32xf32>
    %158 = arith.addf %156, %157 : vector<2x32xf32>
    %159 = math.tanh %158 : vector<2x32xf32>
    %160 = arith.mulf %155, %159 : vector<2x32xf32>
    %c8_54 = arith.constant 8 : index
    %c0_55 = arith.constant 0 : index
    %161 = vector.load %arg17[%c8_54, %c0_55] : memref<16x32xf32, #tpu.memory_space<vmem>>, vector<2x32xf32>
    tpu.vector_store %arg17[%c8_54, %c0_55], %160 {strides = array<i32>} : memref<16x32xf32, #tpu.memory_space<vmem>>, vector<2x32xf32>,
    %c10 = arith.constant 10 : index
    %c0_56 = arith.constant 0 : index
    %162 = vector.load %arg15[%c10, %c0_56] : memref<16x128xf32, #tpu.memory_space<vmem>>, vector<2x128xf32>
    %cst_57 = arith.constant dense<0.000000e+00> : vector<2x128xf32>
    %163 = tpu.matmul %160, %14, %cst_57 {dimension_numbers = #tpu.dot_dimension_numbers<[1], [0], [0], [1], [0, 0, 1, 1], [], []>} : vector<2x32xf32>, vector<32x128xf32>, vector<2x128xf32> -> vector<2x128xf32>
    %164 = arith.addf %162, %163 : vector<2x128xf32>
    %165 = vector.extract_strided_slice %164 {offsets = [0, 0], sizes = [2, 32], strides = [1, 1]} : vector<2x128xf32> to vector<2x32xf32>
    %166 = arith.negf %165 : vector<2x32xf32>
    %167 = math.exp %166 : vector<2x32xf32>
    %cst_58 = arith.constant 1.000000e+00 : f32
    %168 = vector.broadcast %cst_58 : f32 to vector<2x32xf32>
    %169 = arith.addf %168, %167 : vector<2x32xf32>
    %170 = arith.divf %168, %169 : vector<2x32xf32>
    %171 = vector.extract_strided_slice %164 {offsets = [0, 32], sizes = [2, 32], strides = [1, 1]} : vector<2x128xf32> to vector<2x32xf32>
    %172 = arith.negf %171 : vector<2x32xf32>
    %173 = math.exp %172 : vector<2x32xf32>
    %cst_59 = arith.constant 1.000000e+00 : f32
    %174 = vector.broadcast %cst_59 : f32 to vector<2x32xf32>
    %175 = arith.addf %174, %173 : vector<2x32xf32>
    %176 = arith.divf %174, %175 : vector<2x32xf32>
    %177 = vector.extract_strided_slice %164 {offsets = [0, 64], sizes = [2, 32], strides = [1, 1]} : vector<2x128xf32> to vector<2x32xf32>
    %178 = math.tanh %177 : vector<2x32xf32>
    %179 = vector.extract_strided_slice %164 {offsets = [0, 96], sizes = [2, 32], strides = [1, 1]} : vector<2x128xf32> to vector<2x32xf32>
    %180 = arith.negf %179 : vector<2x32xf32>
    %181 = math.exp %180 : vector<2x32xf32>
    %cst_60 = arith.constant 1.000000e+00 : f32
    %182 = vector.broadcast %cst_60 : f32 to vector<2x32xf32>
    %183 = arith.addf %182, %181 : vector<2x32xf32>
    %184 = arith.divf %182, %183 : vector<2x32xf32>
    %185 = arith.mulf %176, %158 : vector<2x32xf32>
    %186 = arith.mulf %170, %178 : vector<2x32xf32>
    %187 = arith.addf %185, %186 : vector<2x32xf32>
    %188 = math.tanh %187 : vector<2x32xf32>
    %189 = arith.mulf %184, %188 : vector<2x32xf32>
    %c10_61 = arith.constant 10 : index
    %c0_62 = arith.constant 0 : index
    %190 = vector.load %arg17[%c10_61, %c0_62] : memref<16x32xf32, #tpu.memory_space<vmem>>, vector<2x32xf32>
    tpu.vector_store %arg17[%c10_61, %c0_62], %189 {strides = array<i32>} : memref<16x32xf32, #tpu.memory_space<vmem>>, vector<2x32xf32>,
    %c12 = arith.constant 12 : index
    %c0_63 = arith.constant 0 : index
    %191 = vector.load %arg15[%c12, %c0_63] : memref<16x128xf32, #tpu.memory_space<vmem>>, vector<2x128xf32>
    %cst_64 = arith.constant dense<0.000000e+00> : vector<2x128xf32>
    %192 = tpu.matmul %189, %14, %cst_64 {dimension_numbers = #tpu.dot_dimension_numbers<[1], [0], [0], [1], [0, 0, 1, 1], [], []>} : vector<2x32xf32>, vector<32x128xf32>, vector<2x128xf32> -> vector<2x128xf32>
    %193 = arith.addf %191, %192 : vector<2x128xf32>
    %194 = vector.extract_strided_slice %193 {offsets = [0, 0], sizes = [2, 32], strides = [1, 1]} : vector<2x128xf32> to vector<2x32xf32>
    %195 = arith.negf %194 : vector<2x32xf32>
    %196 = math.exp %195 : vector<2x32xf32>
    %cst_65 = arith.constant 1.000000e+00 : f32
    %197 = vector.broadcast %cst_65 : f32 to vector<2x32xf32>
    %198 = arith.addf %197, %196 : vector<2x32xf32>
    %199 = arith.divf %197, %198 : vector<2x32xf32>
    %200 = vector.extract_strided_slice %193 {offsets = [0, 32], sizes = [2, 32], strides = [1, 1]} : vector<2x128xf32> to vector<2x32xf32>
    %201 = arith.negf %200 : vector<2x32xf32>
    %202 = math.exp %201 : vector<2x32xf32>
    %cst_66 = arith.constant 1.000000e+00 : f32
    %203 = vector.broadcast %cst_66 : f32 to vector<2x32xf32>
    %204 = arith.addf %203, %202 : vector<2x32xf32>
    %205 = arith.divf %203, %204 : vector<2x32xf32>
    %206 = vector.extract_strided_slice %193 {offsets = [0, 64], sizes = [2, 32], strides = [1, 1]} : vector<2x128xf32> to vector<2x32xf32>
    %207 = math.tanh %206 : vector<2x32xf32>
    %208 = vector.extract_strided_slice %193 {offsets = [0, 96], sizes = [2, 32], strides = [1, 1]} : vector<2x128xf32> to vector<2x32xf32>
    %209 = arith.negf %208 : vector<2x32xf32>
    %210 = math.exp %209 : vector<2x32xf32>
    %cst_67 = arith.constant 1.000000e+00 : f32
    %211 = vector.broadcast %cst_67 : f32 to vector<2x32xf32>
    %212 = arith.addf %211, %210 : vector<2x32xf32>
    %213 = arith.divf %211, %212 : vector<2x32xf32>
    %214 = arith.mulf %205, %187 : vector<2x32xf32>
    %215 = arith.mulf %199, %207 : vector<2x32xf32>
    %216 = arith.addf %214, %215 : vector<2x32xf32>
    %217 = math.tanh %216 : vector<2x32xf32>
    %218 = arith.mulf %213, %217 : vector<2x32xf32>
    %c12_68 = arith.constant 12 : index
    %c0_69 = arith.constant 0 : index
    %219 = vector.load %arg17[%c12_68, %c0_69] : memref<16x32xf32, #tpu.memory_space<vmem>>, vector<2x32xf32>
    tpu.vector_store %arg17[%c12_68, %c0_69], %218 {strides = array<i32>} : memref<16x32xf32, #tpu.memory_space<vmem>>, vector<2x32xf32>,
    %c14 = arith.constant 14 : index
    %c0_70 = arith.constant 0 : index
    %220 = vector.load %arg15[%c14, %c0_70] : memref<16x128xf32, #tpu.memory_space<vmem>>, vector<2x128xf32>
    %cst_71 = arith.constant dense<0.000000e+00> : vector<2x128xf32>
    %221 = tpu.matmul %218, %14, %cst_71 {dimension_numbers = #tpu.dot_dimension_numbers<[1], [0], [0], [1], [0, 0, 1, 1], [], []>} : vector<2x32xf32>, vector<32x128xf32>, vector<2x128xf32> -> vector<2x128xf32>
    %222 = arith.addf %220, %221 : vector<2x128xf32>
    %223 = vector.extract_strided_slice %222 {offsets = [0, 0], sizes = [2, 32], strides = [1, 1]} : vector<2x128xf32> to vector<2x32xf32>
    %224 = arith.negf %223 : vector<2x32xf32>
    %225 = math.exp %224 : vector<2x32xf32>
    %cst_72 = arith.constant 1.000000e+00 : f32
    %226 = vector.broadcast %cst_72 : f32 to vector<2x32xf32>
    %227 = arith.addf %226, %225 : vector<2x32xf32>
    %228 = arith.divf %226, %227 : vector<2x32xf32>
    %229 = vector.extract_strided_slice %222 {offsets = [0, 32], sizes = [2, 32], strides = [1, 1]} : vector<2x128xf32> to vector<2x32xf32>
    %230 = arith.negf %229 : vector<2x32xf32>
    %231 = math.exp %230 : vector<2x32xf32>
    %cst_73 = arith.constant 1.000000e+00 : f32
    %232 = vector.broadcast %cst_73 : f32 to vector<2x32xf32>
    %233 = arith.addf %232, %231 : vector<2x32xf32>
    %234 = arith.divf %232, %233 : vector<2x32xf32>
    %235 = vector.extract_strided_slice %222 {offsets = [0, 64], sizes = [2, 32], strides = [1, 1]} : vector<2x128xf32> to vector<2x32xf32>
    %236 = math.tanh %235 : vector<2x32xf32>
    %237 = vector.extract_strided_slice %222 {offsets = [0, 96], sizes = [2, 32], strides = [1, 1]} : vector<2x128xf32> to vector<2x32xf32>
    %238 = arith.negf %237 : vector<2x32xf32>
    %239 = math.exp %238 : vector<2x32xf32>
    %cst_74 = arith.constant 1.000000e+00 : f32
    %240 = vector.broadcast %cst_74 : f32 to vector<2x32xf32>
    %241 = arith.addf %240, %239 : vector<2x32xf32>
    %242 = arith.divf %240, %241 : vector<2x32xf32>
    %243 = arith.mulf %234, %216 : vector<2x32xf32>
    %244 = arith.mulf %228, %236 : vector<2x32xf32>
    %245 = arith.addf %243, %244 : vector<2x32xf32>
    %246 = math.tanh %245 : vector<2x32xf32>
    %247 = arith.mulf %242, %246 : vector<2x32xf32>
    %c14_75 = arith.constant 14 : index
    %c0_76 = arith.constant 0 : index
    %248 = vector.load %arg17[%c14_75, %c0_76] : memref<16x32xf32, #tpu.memory_space<vmem>>, vector<2x32xf32>
    tpu.vector_store %arg17[%c14_75, %c0_76], %247 {strides = array<i32>} : memref<16x32xf32, #tpu.memory_space<vmem>>, vector<2x32xf32>,
    %c0_77 = arith.constant 0 : index
    %c0_78 = arith.constant 0 : index
    %249 = vector.load %arg17[%c0_77, %c0_78] : memref<16x32xf32, #tpu.memory_space<vmem>>, vector<16x32xf32>
    %c0_79 = arith.constant 0 : index
    %c0_80 = arith.constant 0 : index
    %250 = vector.load %arg6[%c0_79, %c0_80] : memref<32x128xf32, #tpu.memory_space<vmem>>, vector<32x128xf32>
    %c0_81 = arith.constant 0 : index
    %c0_82 = arith.constant 0 : index
    %251 = vector.load %arg8[%c0_81, %c0_82] : memref<32x32xf32, #tpu.memory_space<vmem>>, vector<32x32xf32>
    %c0_83 = arith.constant 0 : index
    %c0_84 = arith.constant 0 : index
    %252 = vector.load %arg9[%c0_83, %c0_84] : memref<32x32xf32, #tpu.memory_space<vmem>>, vector<32x32xf32>
    %c0_85 = arith.constant 0 : index
    %c0_86 = arith.constant 0 : index
    %253 = vector.load %arg10[%c0_85, %c0_86] : memref<32x128xf32, #tpu.memory_space<vmem>>, vector<32x128xf32>
    %c0_87 = arith.constant 0 : index
    %c0_88 = arith.constant 0 : index
    %254 = vector.load %arg11[%c0_87, %c0_88] : memref<1x128xf32, #tpu.memory_space<vmem>>, vector<1x128xf32>
    %255 = tpu.iota {dimensions = array<i32: 1>} : vector<2x16xi32>
    %256 = tpu.iota {dimensions = array<i32: 0>} : vector<2x16xi32>
    %c2_i32 = arith.constant 2 : i32
    %c0_i32 = arith.constant 0 : i32
    %257 = arith.cmpi eq, %c2_i32, %c0_i32 : i32
    %c1_i32 = arith.constant 1 : i32
    %258 = arith.select %257, %c1_i32, %c2_i32 : i32
    %259 = vector.broadcast %258 : i32 to vector<2x16xi32>
    %260 = arith.remsi %255, %259 : vector<2x16xi32>
    %c0_i32_89 = arith.constant 0 : i32
    %261 = vector.broadcast %c0_i32_89 : i32 to vector<2x16xi32>
    %262 = arith.cmpi ne, %260, %261 : vector<2x16xi32>
    %c0_i32_90 = arith.constant 0 : i32
    %263 = vector.broadcast %c0_i32_90 : i32 to vector<2x16xi32>
    %264 = arith.cmpi slt, %260, %263 : vector<2x16xi32>
    %c0_i32_91 = arith.constant 0 : i32
    %265 = arith.cmpi slt, %258, %c0_i32_91 : i32
    %266 = vector.broadcast %265 : i1 to vector<2x16xi1>
    %267 = vector.broadcast %266 : vector<2x16xi1> to vector<2x16xi1>
    %268 = arith.xori %264, %267 : vector<2x16xi1>
    %269 = arith.andi %268, %262 : vector<2x16xi1>
    %270 = vector.broadcast %258 : i32 to vector<2x16xi32>
    %271 = arith.addi %260, %270 : vector<2x16xi32>
    %272 = arith.select %269, %271, %260 : vector<2x16xi1>, vector<2x16xi32>
    %273 = arith.cmpi eq, %272, %256 : vector<2x16xi32>
    %c0_92 = arith.constant 0 : index
    %c0_93 = arith.constant 0 : index
    %274 = vector.load %arg16[%c0_92, %c0_93] : memref<12x128xf32, #tpu.memory_space<vmem>>, vector<2x128xf32>
    %cst_94 = arith.constant dense<0.000000e+00> : vector<2x128xf32>
    %275 = tpu.matmul %247, %250, %cst_94 {dimension_numbers = #tpu.dot_dimension_numbers<[1], [0], [0], [1], [0, 0, 1, 1], [], []>} : vector<2x32xf32>, vector<32x128xf32>, vector<2x128xf32> -> vector<2x128xf32>
    %276 = arith.addf %274, %275 : vector<2x128xf32>
    %277 = vector.extract_strided_slice %276 {offsets = [0, 0], sizes = [2, 32], strides = [1, 1]} : vector<2x128xf32> to vector<2x32xf32>
    %278 = arith.negf %277 : vector<2x32xf32>
    %279 = math.exp %278 : vector<2x32xf32>
    %cst_95 = arith.constant 1.000000e+00 : f32
    %280 = vector.broadcast %cst_95 : f32 to vector<2x32xf32>
    %281 = arith.addf %280, %279 : vector<2x32xf32>
    %282 = arith.divf %280, %281 : vector<2x32xf32>
    %283 = vector.extract_strided_slice %276 {offsets = [0, 32], sizes = [2, 32], strides = [1, 1]} : vector<2x128xf32> to vector<2x32xf32>
    %284 = arith.negf %283 : vector<2x32xf32>
    %285 = math.exp %284 : vector<2x32xf32>
    %cst_96 = arith.constant 1.000000e+00 : f32
    %286 = vector.broadcast %cst_96 : f32 to vector<2x32xf32>
    %287 = arith.addf %286, %285 : vector<2x32xf32>
    %288 = arith.divf %286, %287 : vector<2x32xf32>
    %289 = vector.extract_strided_slice %276 {offsets = [0, 64], sizes = [2, 32], strides = [1, 1]} : vector<2x128xf32> to vector<2x32xf32>
    %290 = math.tanh %289 : vector<2x32xf32>
    %291 = vector.extract_strided_slice %276 {offsets = [0, 96], sizes = [2, 32], strides = [1, 1]} : vector<2x128xf32> to vector<2x32xf32>
    %292 = arith.negf %291 : vector<2x32xf32>
    %293 = math.exp %292 : vector<2x32xf32>
    %cst_97 = arith.constant 1.000000e+00 : f32
    %294 = vector.broadcast %cst_97 : f32 to vector<2x32xf32>
    %295 = arith.addf %294, %293 : vector<2x32xf32>
    %296 = arith.divf %294, %295 : vector<2x32xf32>
    %297 = arith.mulf %288, %245 : vector<2x32xf32>
    %298 = arith.mulf %282, %290 : vector<2x32xf32>
    %299 = arith.addf %297, %298 : vector<2x32xf32>
    %300 = math.tanh %299 : vector<2x32xf32>
    %301 = arith.mulf %296, %300 : vector<2x32xf32>
    %cst_98 = arith.constant dense<0.000000e+00> : vector<2x16xf32>
    %302 = tpu.matmul %301, %249, %cst_98 {dimension_numbers = #tpu.dot_dimension_numbers<[1], [1], [0], [0], [0, 0, 1, 0], [], []>} : vector<2x32xf32>, vector<16x32xf32>, vector<2x16xf32> -> vector<2x16xf32>
    %cst_99 = arith.constant -1.000000e+30 : f32
    %303 = vector.broadcast %cst_99 : f32 to vector<2x16xf32>
    %304 = arith.select %273, %302, %303 : vector<2x16xi1>, vector<2x16xf32>
    %cst_100 = arith.constant dense<0xFF800000> : vector<2xf32>
    %305 = vector.multi_reduction <maximumf>, %304, %cst_100 [1] : vector<2x16xf32> to vector<2xf32>
    %306 = vector.shape_cast %305 : vector<2xf32> to vector<2x1xf32>
    %307 = vector.broadcast %306 : vector<2x1xf32> to vector<2x16xf32>
    %308 = arith.subf %304, %307 : vector<2x16xf32>
    %309 = math.exp %308 : vector<2x16xf32>
    %cst_101 = arith.constant dense<0.000000e+00> : vector<2xf32>
    %310 = vector.multi_reduction <add>, %309, %cst_101 [1] : vector<2x16xf32> to vector<2xf32>
    %311 = vector.shape_cast %310 : vector<2xf32> to vector<2x1xf32>
    %312 = tpu.reciprocal %311 {approx = true} : vector<2x1xf32> -> vector<2x1xf32>
    %313 = vector.broadcast %312 : vector<2x1xf32> to vector<2x16xf32>
    %314 = arith.mulf %309, %313 : vector<2x16xf32>
    %cst_102 = arith.constant dense<0.000000e+00> : vector<2x32xf32>
    %315 = tpu.matmul %314, %249, %cst_102 {dimension_numbers = #tpu.dot_dimension_numbers<[1], [0], [0], [1], [0, 0, 1, 1], [], []>} : vector<2x16xf32>, vector<16x32xf32>, vector<2x32xf32> -> vector<2x32xf32>
    %cst_103 = arith.constant dense<0.000000e+00> : vector<2x32xf32>
    %316 = tpu.matmul %301, %251, %cst_103 {dimension_numbers = #tpu.dot_dimension_numbers<[1], [0], [0], [1], [0, 0, 1, 1], [], []>} : vector<2x32xf32>, vector<32x32xf32>, vector<2x32xf32> -> vector<2x32xf32>
    %cst_104 = arith.constant dense<0.000000e+00> : vector<2x32xf32>
    %317 = tpu.matmul %315, %252, %cst_104 {dimension_numbers = #tpu.dot_dimension_numbers<[1], [0], [0], [1], [0, 0, 1, 1], [], []>} : vector<2x32xf32>, vector<32x32xf32>, vector<2x32xf32> -> vector<2x32xf32>
    %318 = arith.addf %316, %317 : vector<2x32xf32>
    %319 = math.tanh %318 : vector<2x32xf32>
    %cst_105 = arith.constant dense<0.000000e+00> : vector<2x128xf32>
    %320 = tpu.matmul %319, %253, %cst_105 {dimension_numbers = #tpu.dot_dimension_numbers<[1], [0], [0], [1], [0, 0, 1, 1], [], []>} : vector<2x32xf32>, vector<32x128xf32>, vector<2x128xf32> -> vector<2x128xf32>
    %321 = vector.broadcast %254 : vector<1x128xf32> to vector<2x128xf32>
    %322 = arith.addf %320, %321 : vector<2x128xf32>
    %cst_106 = arith.constant dense<0xFF800000> : vector<2xf32>
    %323 = vector.multi_reduction <maximumf>, %322, %cst_106 [1] : vector<2x128xf32> to vector<2xf32>
    %324 = vector.shape_cast %323 : vector<2xf32> to vector<2x1xf32>
    %325 = vector.broadcast %324 : vector<2x1xf32> to vector<2x128xf32>
    %326 = arith.subf %322, %325 : vector<2x128xf32>
    %327 = math.exp %326 : vector<2x128xf32>
    %cst_107 = arith.constant dense<0.000000e+00> : vector<2xf32>
    %328 = vector.multi_reduction <add>, %327, %cst_107 [1] : vector<2x128xf32> to vector<2xf32>
    %329 = vector.shape_cast %328 : vector<2xf32> to vector<2x1xf32>
    %330 = math.log %329 : vector<2x1xf32>
    %331 = arith.addf %330, %324 : vector<2x1xf32>
    %332 = vector.broadcast %331 : vector<2x1xf32> to vector<2x128xf32>
    %333 = arith.subf %322, %332 : vector<2x128xf32>
    %c0_108 = arith.constant 0 : index
    %c0_109 = arith.constant 0 : index
    %334 = vector.load %arg12[%c0_108, %c0_109] : memref<12x128xf32, #tpu.memory_space<vmem>>, vector<2x128xf32>
    tpu.vector_store %arg12[%c0_108, %c0_109], %333 {strides = array<i32>} : memref<12x128xf32, #tpu.memory_space<vmem>>, vector<2x128xf32>,
    %c2_110 = arith.constant 2 : index
    %c0_111 = arith.constant 0 : index
    %335 = vector.load %arg16[%c2_110, %c0_111] : memref<12x128xf32, #tpu.memory_space<vmem>>, vector<2x128xf32>
    %cst_112 = arith.constant dense<0.000000e+00> : vector<2x128xf32>
    %336 = tpu.matmul %301, %250, %cst_112 {dimension_numbers = #tpu.dot_dimension_numbers<[1], [0], [0], [1], [0, 0, 1, 1], [], []>} : vector<2x32xf32>, vector<32x128xf32>, vector<2x128xf32> -> vector<2x128xf32>
    %337 = arith.addf %335, %336 : vector<2x128xf32>
    %338 = vector.extract_strided_slice %337 {offsets = [0, 0], sizes = [2, 32], strides = [1, 1]} : vector<2x128xf32> to vector<2x32xf32>
    %339 = arith.negf %338 : vector<2x32xf32>
    %340 = math.exp %339 : vector<2x32xf32>
    %cst_113 = arith.constant 1.000000e+00 : f32
    %341 = vector.broadcast %cst_113 : f32 to vector<2x32xf32>
    %342 = arith.addf %341, %340 : vector<2x32xf32>
    %343 = arith.divf %341, %342 : vector<2x32xf32>
    %344 = vector.extract_strided_slice %337 {offsets = [0, 32], sizes = [2, 32], strides = [1, 1]} : vector<2x128xf32> to vector<2x32xf32>
    %345 = arith.negf %344 : vector<2x32xf32>
    %346 = math.exp %345 : vector<2x32xf32>
    %cst_114 = arith.constant 1.000000e+00 : f32
    %347 = vector.broadcast %cst_114 : f32 to vector<2x32xf32>
    %348 = arith.addf %347, %346 : vector<2x32xf32>
    %349 = arith.divf %347, %348 : vector<2x32xf32>
    %350 = vector.extract_strided_slice %337 {offsets = [0, 64], sizes = [2, 32], strides = [1, 1]} : vector<2x128xf32> to vector<2x32xf32>
    %351 = math.tanh %350 : vector<2x32xf32>
    %352 = vector.extract_strided_slice %337 {offsets = [0, 96], sizes = [2, 32], strides = [1, 1]} : vector<2x128xf32> to vector<2x32xf32>
    %353 = arith.negf %352 : vector<2x32xf32>
    %354 = math.exp %353 : vector<2x32xf32>
    %cst_115 = arith.constant 1.000000e+00 : f32
    %355 = vector.broadcast %cst_115 : f32 to vector<2x32xf32>
    %356 = arith.addf %355, %354 : vector<2x32xf32>
    %357 = arith.divf %355, %356 : vector<2x32xf32>
    %358 = arith.mulf %349, %299 : vector<2x32xf32>
    %359 = arith.mulf %343, %351 : vector<2x32xf32>
    %360 = arith.addf %358, %359 : vector<2x32xf32>
    %361 = math.tanh %360 : vector<2x32xf32>
    %362 = arith.mulf %357, %361 : vector<2x32xf32>
    %cst_116 = arith.constant dense<0.000000e+00> : vector<2x16xf32>
    %363 = tpu.matmul %362, %249, %cst_116 {dimension_numbers = #tpu.dot_dimension_numbers<[1], [1], [0], [0], [0, 0, 1, 0], [], []>} : vector<2x32xf32>, vector<16x32xf32>, vector<2x16xf32> -> vector<2x16xf32>
    %cst_117 = arith.constant -1.000000e+30 : f32
    %364 = vector.broadcast %cst_117 : f32 to vector<2x16xf32>
    %365 = arith.select %273, %363, %364 : vector<2x16xi1>, vector<2x16xf32>
    %cst_118 = arith.constant dense<0xFF800000> : vector<2xf32>
    %366 = vector.multi_reduction <maximumf>, %365, %cst_118 [1] : vector<2x16xf32> to vector<2xf32>
    %367 = vector.shape_cast %366 : vector<2xf32> to vector<2x1xf32>
    %368 = vector.broadcast %367 : vector<2x1xf32> to vector<2x16xf32>
    %369 = arith.subf %365, %368 : vector<2x16xf32>
    %370 = math.exp %369 : vector<2x16xf32>
    %cst_119 = arith.constant dense<0.000000e+00> : vector<2xf32>
    %371 = vector.multi_reduction <add>, %370, %cst_119 [1] : vector<2x16xf32> to vector<2xf32>
    %372 = vector.shape_cast %371 : vector<2xf32> to vector<2x1xf32>
    %373 = tpu.reciprocal %372 {approx = true} : vector<2x1xf32> -> vector<2x1xf32>
    %374 = vector.broadcast %373 : vector<2x1xf32> to vector<2x16xf32>
    %375 = arith.mulf %370, %374 : vector<2x16xf32>
    %cst_120 = arith.constant dense<0.000000e+00> : vector<2x32xf32>
    %376 = tpu.matmul %375, %249, %cst_120 {dimension_numbers = #tpu.dot_dimension_numbers<[1], [0], [0], [1], [0, 0, 1, 1], [], []>} : vector<2x16xf32>, vector<16x32xf32>, vector<2x32xf32> -> vector<2x32xf32>
    %cst_121 = arith.constant dense<0.000000e+00> : vector<2x32xf32>
    %377 = tpu.matmul %362, %251, %cst_121 {dimension_numbers = #tpu.dot_dimension_numbers<[1], [0], [0], [1], [0, 0, 1, 1], [], []>} : vector<2x32xf32>, vector<32x32xf32>, vector<2x32xf32> -> vector<2x32xf32>
    %cst_122 = arith.constant dense<0.000000e+00> : vector<2x32xf32>
    %378 = tpu.matmul %376, %252, %cst_122 {dimension_numbers = #tpu.dot_dimension_numbers<[1], [0], [0], [1], [0, 0, 1, 1], [], []>} : vector<2x32xf32>, vector<32x32xf32>, vector<2x32xf32> -> vector<2x32xf32>
    %379 = arith.addf %377, %378 : vector<2x32xf32>
    %380 = math.tanh %379 : vector<2x32xf32>
    %cst_123 = arith.constant dense<0.000000e+00> : vector<2x128xf32>
    %381 = tpu.matmul %380, %253, %cst_123 {dimension_numbers = #tpu.dot_dimension_numbers<[1], [0], [0], [1], [0, 0, 1, 1], [], []>} : vector<2x32xf32>, vector<32x128xf32>, vector<2x128xf32> -> vector<2x128xf32>
    %382 = vector.broadcast %254 : vector<1x128xf32> to vector<2x128xf32>
    %383 = arith.addf %381, %382 : vector<2x128xf32>
    %cst_124 = arith.constant dense<0xFF800000> : vector<2xf32>
    %384 = vector.multi_reduction <maximumf>, %383, %cst_124 [1] : vector<2x128xf32> to vector<2xf32>
    %385 = vector.shape_cast %384 : vector<2xf32> to vector<2x1xf32>
    %386 = vector.broadcast %385 : vector<2x1xf32> to vector<2x128xf32>
    %387 = arith.subf %383, %386 : vector<2x128xf32>
    %388 = math.exp %387 : vector<2x128xf32>
    %cst_125 = arith.constant dense<0.000000e+00> : vector<2xf32>
    %389 = vector.multi_reduction <add>, %388, %cst_125 [1] : vector<2x128xf32> to vector<2xf32>
    %390 = vector.shape_cast %389 : vector<2xf32> to vector<2x1xf32>
    %391 = math.log %390 : vector<2x1xf32>
    %392 = arith.addf %391, %385 : vector<2x1xf32>
    %393 = vector.broadcast %392 : vector<2x1xf32> to vector<2x128xf32>
    %394 = arith.subf %383, %393 : vector<2x128xf32>
    %c2_126 = arith.constant 2 : index
    %c0_127 = arith.constant 0 : index
    %395 = vector.load %arg12[%c2_126, %c0_127] : memref<12x128xf32, #tpu.memory_space<vmem>>, vector<2x128xf32>
    tpu.vector_store %arg12[%c2_126, %c0_127], %394 {strides = array<i32>} : memref<12x128xf32, #tpu.memory_space<vmem>>, vector<2x128xf32>,
    %c4_128 = arith.constant 4 : index
    %c0_129 = arith.constant 0 : index
    %396 = vector.load %arg16[%c4_128, %c0_129] : memref<12x128xf32, #tpu.memory_space<vmem>>, vector<2x128xf32>
    %cst_130 = arith.constant dense<0.000000e+00> : vector<2x128xf32>
    %397 = tpu.matmul %362, %250, %cst_130 {dimension_numbers = #tpu.dot_dimension_numbers<[1], [0], [0], [1], [0, 0, 1, 1], [], []>} : vector<2x32xf32>, vector<32x128xf32>, vector<2x128xf32> -> vector<2x128xf32>
    %398 = arith.addf %396, %397 : vector<2x128xf32>
    %399 = vector.extract_strided_slice %398 {offsets = [0, 0], sizes = [2, 32], strides = [1, 1]} : vector<2x128xf32> to vector<2x32xf32>
    %400 = arith.negf %399 : vector<2x32xf32>
    %401 = math.exp %400 : vector<2x32xf32>
    %cst_131 = arith.constant 1.000000e+00 : f32
    %402 = vector.broadcast %cst_131 : f32 to vector<2x32xf32>
    %403 = arith.addf %402, %401 : vector<2x32xf32>
    %404 = arith.divf %402, %403 : vector<2x32xf32>
    %405 = vector.extract_strided_slice %398 {offsets = [0, 32], sizes = [2, 32], strides = [1, 1]} : vector<2x128xf32> to vector<2x32xf32>
    %406 = arith.negf %405 : vector<2x32xf32>
    %407 = math.exp %406 : vector<2x32xf32>
    %cst_132 = arith.constant 1.000000e+00 : f32
    %408 = vector.broadcast %cst_132 : f32 to vector<2x32xf32>
    %409 = arith.addf %408, %407 : vector<2x32xf32>
    %410 = arith.divf %408, %409 : vector<2x32xf32>
    %411 = vector.extract_strided_slice %398 {offsets = [0, 64], sizes = [2, 32], strides = [1, 1]} : vector<2x128xf32> to vector<2x32xf32>
    %412 = math.tanh %411 : vector<2x32xf32>
    %413 = vector.extract_strided_slice %398 {offsets = [0, 96], sizes = [2, 32], strides = [1, 1]} : vector<2x128xf32> to vector<2x32xf32>
    %414 = arith.negf %413 : vector<2x32xf32>
    %415 = math.exp %414 : vector<2x32xf32>
    %cst_133 = arith.constant 1.000000e+00 : f32
    %416 = vector.broadcast %cst_133 : f32 to vector<2x32xf32>
    %417 = arith.addf %416, %415 : vector<2x32xf32>
    %418 = arith.divf %416, %417 : vector<2x32xf32>
    %419 = arith.mulf %410, %360 : vector<2x32xf32>
    %420 = arith.mulf %404, %412 : vector<2x32xf32>
    %421 = arith.addf %419, %420 : vector<2x32xf32>
    %422 = math.tanh %421 : vector<2x32xf32>
    %423 = arith.mulf %418, %422 : vector<2x32xf32>
    %cst_134 = arith.constant dense<0.000000e+00> : vector<2x16xf32>
    %424 = tpu.matmul %423, %249, %cst_134 {dimension_numbers = #tpu.dot_dimension_numbers<[1], [1], [0], [0], [0, 0, 1, 0], [], []>} : vector<2x32xf32>, vector<16x32xf32>, vector<2x16xf32> -> vector<2x16xf32>
    %cst_135 = arith.constant -1.000000e+30 : f32
    %425 = vector.broadcast %cst_135 : f32 to vector<2x16xf32>
    %426 = arith.select %273, %424, %425 : vector<2x16xi1>, vector<2x16xf32>
    %cst_136 = arith.constant dense<0xFF800000> : vector<2xf32>
    %427 = vector.multi_reduction <maximumf>, %426, %cst_136 [1] : vector<2x16xf32> to vector<2xf32>
    %428 = vector.shape_cast %427 : vector<2xf32> to vector<2x1xf32>
    %429 = vector.broadcast %428 : vector<2x1xf32> to vector<2x16xf32>
    %430 = arith.subf %426, %429 : vector<2x16xf32>
    %431 = math.exp %430 : vector<2x16xf32>
    %cst_137 = arith.constant dense<0.000000e+00> : vector<2xf32>
    %432 = vector.multi_reduction <add>, %431, %cst_137 [1] : vector<2x16xf32> to vector<2xf32>
    %433 = vector.shape_cast %432 : vector<2xf32> to vector<2x1xf32>
    %434 = tpu.reciprocal %433 {approx = true} : vector<2x1xf32> -> vector<2x1xf32>
    %435 = vector.broadcast %434 : vector<2x1xf32> to vector<2x16xf32>
    %436 = arith.mulf %431, %435 : vector<2x16xf32>
    %cst_138 = arith.constant dense<0.000000e+00> : vector<2x32xf32>
    %437 = tpu.matmul %436, %249, %cst_138 {dimension_numbers = #tpu.dot_dimension_numbers<[1], [0], [0], [1], [0, 0, 1, 1], [], []>} : vector<2x16xf32>, vector<16x32xf32>, vector<2x32xf32> -> vector<2x32xf32>
    %cst_139 = arith.constant dense<0.000000e+00> : vector<2x32xf32>
    %438 = tpu.matmul %423, %251, %cst_139 {dimension_numbers = #tpu.dot_dimension_numbers<[1], [0], [0], [1], [0, 0, 1, 1], [], []>} : vector<2x32xf32>, vector<32x32xf32>, vector<2x32xf32> -> vector<2x32xf32>
    %cst_140 = arith.constant dense<0.000000e+00> : vector<2x32xf32>
    %439 = tpu.matmul %437, %252, %cst_140 {dimension_numbers = #tpu.dot_dimension_numbers<[1], [0], [0], [1], [0, 0, 1, 1], [], []>} : vector<2x32xf32>, vector<32x32xf32>, vector<2x32xf32> -> vector<2x32xf32>
    %440 = arith.addf %438, %439 : vector<2x32xf32>
    %441 = math.tanh %440 : vector<2x32xf32>
    %cst_141 = arith.constant dense<0.000000e+00> : vector<2x128xf32>
    %442 = tpu.matmul %441, %253, %cst_141 {dimension_numbers = #tpu.dot_dimension_numbers<[1], [0], [0], [1], [0, 0, 1, 1], [], []>} : vector<2x32xf32>, vector<32x128xf32>, vector<2x128xf32> -> vector<2x128xf32>
    %443 = vector.broadcast %254 : vector<1x128xf32> to vector<2x128xf32>
    %444 = arith.addf %442, %443 : vector<2x128xf32>
    %cst_142 = arith.constant dense<0xFF800000> : vector<2xf32>
    %445 = vector.multi_reduction <maximumf>, %444, %cst_142 [1] : vector<2x128xf32> to vector<2xf32>
    %446 = vector.shape_cast %445 : vector<2xf32> to vector<2x1xf32>
    %447 = vector.broadcast %446 : vector<2x1xf32> to vector<2x128xf32>
    %448 = arith.subf %444, %447 : vector<2x128xf32>
    %449 = math.exp %448 : vector<2x128xf32>
    %cst_143 = arith.constant dense<0.000000e+00> : vector<2xf32>
    %450 = vector.multi_reduction <add>, %449, %cst_143 [1] : vector<2x128xf32> to vector<2xf32>
    %451 = vector.shape_cast %450 : vector<2xf32> to vector<2x1xf32>
    %452 = math.log %451 : vector<2x1xf32>
    %453 = arith.addf %452, %446 : vector<2x1xf32>
    %454 = vector.broadcast %453 : vector<2x1xf32> to vector<2x128xf32>
    %455 = arith.subf %444, %454 : vector<2x128xf32>
    %c4_144 = arith.constant 4 : index
    %c0_145 = arith.constant 0 : index
    %456 = vector.load %arg12[%c4_144, %c0_145] : memref<12x128xf32, #tpu.memory_space<vmem>>, vector<2x128xf32>
    tpu.vector_store %arg12[%c4_144, %c0_145], %455 {strides = array<i32>} : memref<12x128xf32, #tpu.memory_space<vmem>>, vector<2x128xf32>,
    %c6_146 = arith.constant 6 : index
    %c0_147 = arith.constant 0 : index
    %457 = vector.load %arg16[%c6_146, %c0_147] : memref<12x128xf32, #tpu.memory_space<vmem>>, vector<2x128xf32>
    %cst_148 = arith.constant dense<0.000000e+00> : vector<2x128xf32>
    %458 = tpu.matmul %423, %250, %cst_148 {dimension_numbers = #tpu.dot_dimension_numbers<[1], [0], [0], [1], [0, 0, 1, 1], [], []>} : vector<2x32xf32>, vector<32x128xf32>, vector<2x128xf32> -> vector<2x128xf32>
    %459 = arith.addf %457, %458 : vector<2x128xf32>
    %460 = vector.extract_strided_slice %459 {offsets = [0, 0], sizes = [2, 32], strides = [1, 1]} : vector<2x128xf32> to vector<2x32xf32>
    %461 = arith.negf %460 : vector<2x32xf32>
    %462 = math.exp %461 : vector<2x32xf32>
    %cst_149 = arith.constant 1.000000e+00 : f32
    %463 = vector.broadcast %cst_149 : f32 to vector<2x32xf32>
    %464 = arith.addf %463, %462 : vector<2x32xf32>
    %465 = arith.divf %463, %464 : vector<2x32xf32>
    %466 = vector.extract_strided_slice %459 {offsets = [0, 32], sizes = [2, 32], strides = [1, 1]} : vector<2x128xf32> to vector<2x32xf32>
    %467 = arith.negf %466 : vector<2x32xf32>
    %468 = math.exp %467 : vector<2x32xf32>
    %cst_150 = arith.constant 1.000000e+00 : f32
    %469 = vector.broadcast %cst_150 : f32 to vector<2x32xf32>
    %470 = arith.addf %469, %468 : vector<2x32xf32>
    %471 = arith.divf %469, %470 : vector<2x32xf32>
    %472 = vector.extract_strided_slice %459 {offsets = [0, 64], sizes = [2, 32], strides = [1, 1]} : vector<2x128xf32> to vector<2x32xf32>
    %473 = math.tanh %472 : vector<2x32xf32>
    %474 = vector.extract_strided_slice %459 {offsets = [0, 96], sizes = [2, 32], strides = [1, 1]} : vector<2x128xf32> to vector<2x32xf32>
    %475 = arith.negf %474 : vector<2x32xf32>
    %476 = math.exp %475 : vector<2x32xf32>
    %cst_151 = arith.constant 1.000000e+00 : f32
    %477 = vector.broadcast %cst_151 : f32 to vector<2x32xf32>
    %478 = arith.addf %477, %476 : vector<2x32xf32>
    %479 = arith.divf %477, %478 : vector<2x32xf32>
    %480 = arith.mulf %471, %421 : vector<2x32xf32>
    %481 = arith.mulf %465, %473 : vector<2x32xf32>
    %482 = arith.addf %480, %481 : vector<2x32xf32>
    %483 = math.tanh %482 : vector<2x32xf32>
    %484 = arith.mulf %479, %483 : vector<2x32xf32>
    %cst_152 = arith.constant dense<0.000000e+00> : vector<2x16xf32>
    %485 = tpu.matmul %484, %249, %cst_152 {dimension_numbers = #tpu.dot_dimension_numbers<[1], [1], [0], [0], [0, 0, 1, 0], [], []>} : vector<2x32xf32>, vector<16x32xf32>, vector<2x16xf32> -> vector<2x16xf32>
    %cst_153 = arith.constant -1.000000e+30 : f32
    %486 = vector.broadcast %cst_153 : f32 to vector<2x16xf32>
    %487 = arith.select %273, %485, %486 : vector<2x16xi1>, vector<2x16xf32>
    %cst_154 = arith.constant dense<0xFF800000> : vector<2xf32>
    %488 = vector.multi_reduction <maximumf>, %487, %cst_154 [1] : vector<2x16xf32> to vector<2xf32>
    %489 = vector.shape_cast %488 : vector<2xf32> to vector<2x1xf32>
    %490 = vector.broadcast %489 : vector<2x1xf32> to vector<2x16xf32>
    %491 = arith.subf %487, %490 : vector<2x16xf32>
    %492 = math.exp %491 : vector<2x16xf32>
    %cst_155 = arith.constant dense<0.000000e+00> : vector<2xf32>
    %493 = vector.multi_reduction <add>, %492, %cst_155 [1] : vector<2x16xf32> to vector<2xf32>
    %494 = vector.shape_cast %493 : vector<2xf32> to vector<2x1xf32>
    %495 = tpu.reciprocal %494 {approx = true} : vector<2x1xf32> -> vector<2x1xf32>
    %496 = vector.broadcast %495 : vector<2x1xf32> to vector<2x16xf32>
    %497 = arith.mulf %492, %496 : vector<2x16xf32>
    %cst_156 = arith.constant dense<0.000000e+00> : vector<2x32xf32>
    %498 = tpu.matmul %497, %249, %cst_156 {dimension_numbers = #tpu.dot_dimension_numbers<[1], [0], [0], [1], [0, 0, 1, 1], [], []>} : vector<2x16xf32>, vector<16x32xf32>, vector<2x32xf32> -> vector<2x32xf32>
    %cst_157 = arith.constant dense<0.000000e+00> : vector<2x32xf32>
    %499 = tpu.matmul %484, %251, %cst_157 {dimension_numbers = #tpu.dot_dimension_numbers<[1], [0], [0], [1], [0, 0, 1, 1], [], []>} : vector<2x32xf32>, vector<32x32xf32>, vector<2x32xf32> -> vector<2x32xf32>
    %cst_158 = arith.constant dense<0.000000e+00> : vector<2x32xf32>
    %500 = tpu.matmul %498, %252, %cst_158 {dimension_numbers = #tpu.dot_dimension_numbers<[1], [0], [0], [1], [0, 0, 1, 1], [], []>} : vector<2x32xf32>, vector<32x32xf32>, vector<2x32xf32> -> vector<2x32xf32>
    %501 = arith.addf %499, %500 : vector<2x32xf32>
    %502 = math.tanh %501 : vector<2x32xf32>
    %cst_159 = arith.constant dense<0.000000e+00> : vector<2x128xf32>
    %503 = tpu.matmul %502, %253, %cst_159 {dimension_numbers = #tpu.dot_dimension_numbers<[1], [0], [0], [1], [0, 0, 1, 1], [], []>} : vector<2x32xf32>, vector<32x128xf32>, vector<2x128xf32> -> vector<2x128xf32>
    %504 = vector.broadcast %254 : vector<1x128xf32> to vector<2x128xf32>
    %505 = arith.addf %503, %504 : vector<2x128xf32>
    %cst_160 = arith.constant dense<0xFF800000> : vector<2xf32>
    %506 = vector.multi_reduction <maximumf>, %505, %cst_160 [1] : vector<2x128xf32> to vector<2xf32>
    %507 = vector.shape_cast %506 : vector<2xf32> to vector<2x1xf32>
    %508 = vector.broadcast %507 : vector<2x1xf32> to vector<2x128xf32>
    %509 = arith.subf %505, %508 : vector<2x128xf32>
    %510 = math.exp %509 : vector<2x128xf32>
    %cst_161 = arith.constant dense<0.000000e+00> : vector<2xf32>
    %511 = vector.multi_reduction <add>, %510, %cst_161 [1] : vector<2x128xf32> to vector<2xf32>
    %512 = vector.shape_cast %511 : vector<2xf32> to vector<2x1xf32>
    %513 = math.log %512 : vector<2x1xf32>
    %514 = arith.addf %513, %507 : vector<2x1xf32>
    %515 = vector.broadcast %514 : vector<2x1xf32> to vector<2x128xf32>
    %516 = arith.subf %505, %515 : vector<2x128xf32>
    %c6_162 = arith.constant 6 : index
    %c0_163 = arith.constant 0 : index
    %517 = vector.load %arg12[%c6_162, %c0_163] : memref<12x128xf32, #tpu.memory_space<vmem>>, vector<2x128xf32>
    tpu.vector_store %arg12[%c6_162, %c0_163], %516 {strides = array<i32>} : memref<12x128xf32, #tpu.memory_space<vmem>>, vector<2x128xf32>,
    %c8_164 = arith.constant 8 : index
    %c0_165 = arith.constant 0 : index
    %518 = vector.load %arg16[%c8_164, %c0_165] : memref<12x128xf32, #tpu.memory_space<vmem>>, vector<2x128xf32>
    %cst_166 = arith.constant dense<0.000000e+00> : vector<2x128xf32>
    %519 = tpu.matmul %484, %250, %cst_166 {dimension_numbers = #tpu.dot_dimension_numbers<[1], [0], [0], [1], [0, 0, 1, 1], [], []>} : vector<2x32xf32>, vector<32x128xf32>, vector<2x128xf32> -> vector<2x128xf32>
    %520 = arith.addf %518, %519 : vector<2x128xf32>
    %521 = vector.extract_strided_slice %520 {offsets = [0, 0], sizes = [2, 32], strides = [1, 1]} : vector<2x128xf32> to vector<2x32xf32>
    %522 = arith.negf %521 : vector<2x32xf32>
    %523 = math.exp %522 : vector<2x32xf32>
    %cst_167 = arith.constant 1.000000e+00 : f32
    %524 = vector.broadcast %cst_167 : f32 to vector<2x32xf32>
    %525 = arith.addf %524, %523 : vector<2x32xf32>
    %526 = arith.divf %524, %525 : vector<2x32xf32>
    %527 = vector.extract_strided_slice %520 {offsets = [0, 32], sizes = [2, 32], strides = [1, 1]} : vector<2x128xf32> to vector<2x32xf32>
    %528 = arith.negf %527 : vector<2x32xf32>
    %529 = math.exp %528 : vector<2x32xf32>
    %cst_168 = arith.constant 1.000000e+00 : f32
    %530 = vector.broadcast %cst_168 : f32 to vector<2x32xf32>
    %531 = arith.addf %530, %529 : vector<2x32xf32>
    %532 = arith.divf %530, %531 : vector<2x32xf32>
    %533 = vector.extract_strided_slice %520 {offsets = [0, 64], sizes = [2, 32], strides = [1, 1]} : vector<2x128xf32> to vector<2x32xf32>
    %534 = math.tanh %533 : vector<2x32xf32>
    %535 = vector.extract_strided_slice %520 {offsets = [0, 96], sizes = [2, 32], strides = [1, 1]} : vector<2x128xf32> to vector<2x32xf32>
    %536 = arith.negf %535 : vector<2x32xf32>
    %537 = math.exp %536 : vector<2x32xf32>
    %cst_169 = arith.constant 1.000000e+00 : f32
    %538 = vector.broadcast %cst_169 : f32 to vector<2x32xf32>
    %539 = arith.addf %538, %537 : vector<2x32xf32>
    %540 = arith.divf %538, %539 : vector<2x32xf32>
    %541 = arith.mulf %532, %482 : vector<2x32xf32>
    %542 = arith.mulf %526, %534 : vector<2x32xf32>
    %543 = arith.addf %541, %542 : vector<2x32xf32>
    %544 = math.tanh %543 : vector<2x32xf32>
    %545 = arith.mulf %540, %544 : vector<2x32xf32>
    %cst_170 = arith.constant dense<0.000000e+00> : vector<2x16xf32>
    %546 = tpu.matmul %545, %249, %cst_170 {dimension_numbers = #tpu.dot_dimension_numbers<[1], [1], [0], [0], [0, 0, 1, 0], [], []>} : vector<2x32xf32>, vector<16x32xf32>, vector<2x16xf32> -> vector<2x16xf32>
    %cst_171 = arith.constant -1.000000e+30 : f32
    %547 = vector.broadcast %cst_171 : f32 to vector<2x16xf32>
    %548 = arith.select %273, %546, %547 : vector<2x16xi1>, vector<2x16xf32>
    %cst_172 = arith.constant dense<0xFF800000> : vector<2xf32>
    %549 = vector.multi_reduction <maximumf>, %548, %cst_172 [1] : vector<2x16xf32> to vector<2xf32>
    %550 = vector.shape_cast %549 : vector<2xf32> to vector<2x1xf32>
    %551 = vector.broadcast %550 : vector<2x1xf32> to vector<2x16xf32>
    %552 = arith.subf %548, %551 : vector<2x16xf32>
    %553 = math.exp %552 : vector<2x16xf32>
    %cst_173 = arith.constant dense<0.000000e+00> : vector<2xf32>
    %554 = vector.multi_reduction <add>, %553, %cst_173 [1] : vector<2x16xf32> to vector<2xf32>
    %555 = vector.shape_cast %554 : vector<2xf32> to vector<2x1xf32>
    %556 = tpu.reciprocal %555 {approx = true} : vector<2x1xf32> -> vector<2x1xf32>
    %557 = vector.broadcast %556 : vector<2x1xf32> to vector<2x16xf32>
    %558 = arith.mulf %553, %557 : vector<2x16xf32>
    %cst_174 = arith.constant dense<0.000000e+00> : vector<2x32xf32>
    %559 = tpu.matmul %558, %249, %cst_174 {dimension_numbers = #tpu.dot_dimension_numbers<[1], [0], [0], [1], [0, 0, 1, 1], [], []>} : vector<2x16xf32>, vector<16x32xf32>, vector<2x32xf32> -> vector<2x32xf32>
    %cst_175 = arith.constant dense<0.000000e+00> : vector<2x32xf32>
    %560 = tpu.matmul %545, %251, %cst_175 {dimension_numbers = #tpu.dot_dimension_numbers<[1], [0], [0], [1], [0, 0, 1, 1], [], []>} : vector<2x32xf32>, vector<32x32xf32>, vector<2x32xf32> -> vector<2x32xf32>
    %cst_176 = arith.constant dense<0.000000e+00> : vector<2x32xf32>
    %561 = tpu.matmul %559, %252, %cst_176 {dimension_numbers = #tpu.dot_dimension_numbers<[1], [0], [0], [1], [0, 0, 1, 1], [], []>} : vector<2x32xf32>, vector<32x32xf32>, vector<2x32xf32> -> vector<2x32xf32>
    %562 = arith.addf %560, %561 : vector<2x32xf32>
    %563 = math.tanh %562 : vector<2x32xf32>
    %cst_177 = arith.constant dense<0.000000e+00> : vector<2x128xf32>
    %564 = tpu.matmul %563, %253, %cst_177 {dimension_numbers = #tpu.dot_dimension_numbers<[1], [0], [0], [1], [0, 0, 1, 1], [], []>} : vector<2x32xf32>, vector<32x128xf32>, vector<2x128xf32> -> vector<2x128xf32>
    %565 = vector.broadcast %254 : vector<1x128xf32> to vector<2x128xf32>
    %566 = arith.addf %564, %565 : vector<2x128xf32>
    %cst_178 = arith.constant dense<0xFF800000> : vector<2xf32>
    %567 = vector.multi_reduction <maximumf>, %566, %cst_178 [1] : vector<2x128xf32> to vector<2xf32>
    %568 = vector.shape_cast %567 : vector<2xf32> to vector<2x1xf32>
    %569 = vector.broadcast %568 : vector<2x1xf32> to vector<2x128xf32>
    %570 = arith.subf %566, %569 : vector<2x128xf32>
    %571 = math.exp %570 : vector<2x128xf32>
    %cst_179 = arith.constant dense<0.000000e+00> : vector<2xf32>
    %572 = vector.multi_reduction <add>, %571, %cst_179 [1] : vector<2x128xf32> to vector<2xf32>
    %573 = vector.shape_cast %572 : vector<2xf32> to vector<2x1xf32>
    %574 = math.log %573 : vector<2x1xf32>
    %575 = arith.addf %574, %568 : vector<2x1xf32>
    %576 = vector.broadcast %575 : vector<2x1xf32> to vector<2x128xf32>
    %577 = arith.subf %566, %576 : vector<2x128xf32>
    %c8_180 = arith.constant 8 : index
    %c0_181 = arith.constant 0 : index
    %578 = vector.load %arg12[%c8_180, %c0_181] : memref<12x128xf32, #tpu.memory_space<vmem>>, vector<2x128xf32>
    tpu.vector_store %arg12[%c8_180, %c0_181], %577 {strides = array<i32>} : memref<12x128xf32, #tpu.memory_space<vmem>>, vector<2x128xf32>,
    %c10_182 = arith.constant 10 : index
    %c0_183 = arith.constant 0 : index
    %579 = vector.load %arg16[%c10_182, %c0_183] : memref<12x128xf32, #tpu.memory_space<vmem>>, vector<2x128xf32>
    %cst_184 = arith.constant dense<0.000000e+00> : vector<2x128xf32>
    %580 = tpu.matmul %545, %250, %cst_184 {dimension_numbers = #tpu.dot_dimension_numbers<[1], [0], [0], [1], [0, 0, 1, 1], [], []>} : vector<2x32xf32>, vector<32x128xf32>, vector<2x128xf32> -> vector<2x128xf32>
    %581 = arith.addf %579, %580 : vector<2x128xf32>
    %582 = vector.extract_strided_slice %581 {offsets = [0, 0], sizes = [2, 32], strides = [1, 1]} : vector<2x128xf32> to vector<2x32xf32>
    %583 = arith.negf %582 : vector<2x32xf32>
    %584 = math.exp %583 : vector<2x32xf32>
    %cst_185 = arith.constant 1.000000e+00 : f32
    %585 = vector.broadcast %cst_185 : f32 to vector<2x32xf32>
    %586 = arith.addf %585, %584 : vector<2x32xf32>
    %587 = arith.divf %585, %586 : vector<2x32xf32>
    %588 = vector.extract_strided_slice %581 {offsets = [0, 32], sizes = [2, 32], strides = [1, 1]} : vector<2x128xf32> to vector<2x32xf32>
    %589 = arith.negf %588 : vector<2x32xf32>
    %590 = math.exp %589 : vector<2x32xf32>
    %cst_186 = arith.constant 1.000000e+00 : f32
    %591 = vector.broadcast %cst_186 : f32 to vector<2x32xf32>
    %592 = arith.addf %591, %590 : vector<2x32xf32>
    %593 = arith.divf %591, %592 : vector<2x32xf32>
    %594 = vector.extract_strided_slice %581 {offsets = [0, 64], sizes = [2, 32], strides = [1, 1]} : vector<2x128xf32> to vector<2x32xf32>
    %595 = math.tanh %594 : vector<2x32xf32>
    %596 = vector.extract_strided_slice %581 {offsets = [0, 96], sizes = [2, 32], strides = [1, 1]} : vector<2x128xf32> to vector<2x32xf32>
    %597 = arith.negf %596 : vector<2x32xf32>
    %598 = math.exp %597 : vector<2x32xf32>
    %cst_187 = arith.constant 1.000000e+00 : f32
    %599 = vector.broadcast %cst_187 : f32 to vector<2x32xf32>
    %600 = arith.addf %599, %598 : vector<2x32xf32>
    %601 = arith.divf %599, %600 : vector<2x32xf32>
    %602 = arith.mulf %593, %543 : vector<2x32xf32>
    %603 = arith.mulf %587, %595 : vector<2x32xf32>
    %604 = arith.addf %602, %603 : vector<2x32xf32>
    %605 = math.tanh %604 : vector<2x32xf32>
    %606 = arith.mulf %601, %605 : vector<2x32xf32>
    %cst_188 = arith.constant dense<0.000000e+00> : vector<2x16xf32>
    %607 = tpu.matmul %606, %249, %cst_188 {dimension_numbers = #tpu.dot_dimension_numbers<[1], [1], [0], [0], [0, 0, 1, 0], [], []>} : vector<2x32xf32>, vector<16x32xf32>, vector<2x16xf32> -> vector<2x16xf32>
    %cst_189 = arith.constant -1.000000e+30 : f32
    %608 = vector.broadcast %cst_189 : f32 to vector<2x16xf32>
    %609 = arith.select %273, %607, %608 : vector<2x16xi1>, vector<2x16xf32>
    %cst_190 = arith.constant dense<0xFF800000> : vector<2xf32>
    %610 = vector.multi_reduction <maximumf>, %609, %cst_190 [1] : vector<2x16xf32> to vector<2xf32>
    %611 = vector.shape_cast %610 : vector<2xf32> to vector<2x1xf32>
    %612 = vector.broadcast %611 : vector<2x1xf32> to vector<2x16xf32>
    %613 = arith.subf %609, %612 : vector<2x16xf32>
    %614 = math.exp %613 : vector<2x16xf32>
    %cst_191 = arith.constant dense<0.000000e+00> : vector<2xf32>
    %615 = vector.multi_reduction <add>, %614, %cst_191 [1] : vector<2x16xf32> to vector<2xf32>
    %616 = vector.shape_cast %615 : vector<2xf32> to vector<2x1xf32>
    %617 = tpu.reciprocal %616 {approx = true} : vector<2x1xf32> -> vector<2x1xf32>
    %618 = vector.broadcast %617 : vector<2x1xf32> to vector<2x16xf32>
    %619 = arith.mulf %614, %618 : vector<2x16xf32>
    %cst_192 = arith.constant dense<0.000000e+00> : vector<2x32xf32>
    %620 = tpu.matmul %619, %249, %cst_192 {dimension_numbers = #tpu.dot_dimension_numbers<[1], [0], [0], [1], [0, 0, 1, 1], [], []>} : vector<2x16xf32>, vector<16x32xf32>, vector<2x32xf32> -> vector<2x32xf32>
    %cst_193 = arith.constant dense<0.000000e+00> : vector<2x32xf32>
    %621 = tpu.matmul %606, %251, %cst_193 {dimension_numbers = #tpu.dot_dimension_numbers<[1], [0], [0], [1], [0, 0, 1, 1], [], []>} : vector<2x32xf32>, vector<32x32xf32>, vector<2x32xf32> -> vector<2x32xf32>
    %cst_194 = arith.constant dense<0.000000e+00> : vector<2x32xf32>
    %622 = tpu.matmul %620, %252, %cst_194 {dimension_numbers = #tpu.dot_dimension_numbers<[1], [0], [0], [1], [0, 0, 1, 1], [], []>} : vector<2x32xf32>, vector<32x32xf32>, vector<2x32xf32> -> vector<2x32xf32>
    %623 = arith.addf %621, %622 : vector<2x32xf32>
    %624 = math.tanh %623 : vector<2x32xf32>
    %cst_195 = arith.constant dense<0.000000e+00> : vector<2x128xf32>
    %625 = tpu.matmul %624, %253, %cst_195 {dimension_numbers = #tpu.dot_dimension_numbers<[1], [0], [0], [1], [0, 0, 1, 1], [], []>} : vector<2x32xf32>, vector<32x128xf32>, vector<2x128xf32> -> vector<2x128xf32>
    %626 = vector.broadcast %254 : vector<1x128xf32> to vector<2x128xf32>
    %627 = arith.addf %625, %626 : vector<2x128xf32>
    %cst_196 = arith.constant dense<0xFF800000> : vector<2xf32>
    %628 = vector.multi_reduction <maximumf>, %627, %cst_196 [1] : vector<2x128xf32> to vector<2xf32>
    %629 = vector.shape_cast %628 : vector<2xf32> to vector<2x1xf32>
    %630 = vector.broadcast %629 : vector<2x1xf32> to vector<2x128xf32>
    %631 = arith.subf %627, %630 : vector<2x128xf32>
    %632 = math.exp %631 : vector<2x128xf32>
    %cst_197 = arith.constant dense<0.000000e+00> : vector<2xf32>
    %633 = vector.multi_reduction <add>, %632, %cst_197 [1] : vector<2x128xf32> to vector<2xf32>
    %634 = vector.shape_cast %633 : vector<2xf32> to vector<2x1xf32>
    %635 = math.log %634 : vector<2x1xf32>
    %636 = arith.addf %635, %629 : vector<2x1xf32>
    %637 = vector.broadcast %636 : vector<2x1xf32> to vector<2x128xf32>
    %638 = arith.subf %627, %637 : vector<2x128xf32>
    %c10_198 = arith.constant 10 : index
    %c0_199 = arith.constant 0 : index
    %639 = vector.load %arg12[%c10_198, %c0_199] : memref<12x128xf32, #tpu.memory_space<vmem>>, vector<2x128xf32>
    tpu.vector_store %arg12[%c10_198, %c0_199], %638 {strides = array<i32>} : memref<12x128xf32, #tpu.memory_space<vmem>>, vector<2x128xf32>,
    %c0_200 = arith.constant 0 : index
    %c0_201 = arith.constant 0 : index
    %640 = vector.load %arg13[%c0_200, %c0_201] : memref<2x32xf32, #tpu.memory_space<vmem>>, vector<2x32xf32>
    tpu.vector_store %arg13[%c0_200, %c0_201], %606 {strides = array<i32>} : memref<2x32xf32, #tpu.memory_space<vmem>>, vector<2x32xf32>,
    %c0_202 = arith.constant 0 : index
    %c0_203 = arith.constant 0 : index
    %641 = vector.load %arg14[%c0_202, %c0_203] : memref<2x32xf32, #tpu.memory_space<vmem>>, vector<2x32xf32>
    tpu.vector_store %arg14[%c0_202, %c0_203], %604 {strides = array<i32>} : memref<2x32xf32, #tpu.memory_space<vmem>>, vector<2x32xf32>,
    return
  }
}

</mosaic_0001>

<llo_original>
// kernel: g2p_forward.1
$region0: #{g2p_forward.1}
  #allocation0 [shape = 'u32[]', space=smem, size = 0x4, offset = 0x4, fixed_abs, tag = 'smem constant byte address 0x4 - core index']
  #allocation1 [shape = 'u32[144,128]{1,0:T(1,128)}', space=vmem, size = 0x12000, scoped, tag = 'internal scratch']
  #allocation2 [shape = 'f32[16,128]{1,0:T(8,128)}', space=vmem, size = 0x2000, scoped, tag = 'scratch operand']
  #allocation3 [shape = 'f32[12,128]{1,0:T(8,128)}', space=vmem, size = 0x2000, scoped, tag = 'scratch operand']
  #allocation4 [shape = 'f32[16,32]{1,0:T(8,128)}', space=vmem, size = 0x2000, scoped, tag = 'scratch operand']
  %s0 = inlined_call_operand.vmem [shape: f32[16,32], index: 0, kind: input, shape index: {}]
  %s1 = inlined_call_operand.vmem [shape: f32[12,32], index: 1, kind: input, shape index: {}]
  %s2 = inlined_call_operand.vmem [shape: f32[32,128], index: 2, kind: input, shape index: {}]
  %s3 = inlined_call_operand.vmem [shape: f32[32,128], index: 3, kind: input, shape index: {}]
  %s4 = inlined_call_operand.vmem [shape: f32[1,128], index: 4, kind: input, shape index: {}]
  %s5 = inlined_call_operand.vmem [shape: f32[32,128], index: 5, kind: input, shape index: {}]
  %s6 = inlined_call_operand.vmem [shape: f32[32,128], index: 6, kind: input, shape index: {}]
  %s7 = inlined_call_operand.vmem [shape: f32[1,128], index: 7, kind: input, shape index: {}]
  %s8 = inlined_call_operand.vmem [shape: f32[32,32], index: 8, kind: input, shape index: {}]
  %s9 = inlined_call_operand.vmem [shape: f32[32,32], index: 9, kind: input, shape index: {}]
  %s10 = inlined_call_operand.vmem [shape: f32[32,128], index: 10, kind: input, shape index: {}]
  %s11 = inlined_call_operand.vmem [shape: f32[1,128], index: 11, kind: input, shape index: {}]
  %s12 = inlined_call_operand.vmem [shape: f32[12,128], index: 12, kind: output, shape index: {0}]
  %s13 = inlined_call_operand.hbm [shape: f32[2,32], index: 13, kind: output, shape index: {1}]
  %s14 = inlined_call_operand.hbm [shape: f32[2,32], index: 14, kind: output, shape index: {2}]
  %15 = xla_tuple %s12, %s13, %s14
  %s16 = sld [smem:[#allocation0]]
  $region74: #{g2p_forward.1} parent=0
    _
  %s18 = ssub.s32 1, %s16
  %s19 = scalar_select 0, %s18, %s16
  $region1: #{g2p_forward.1} parent=0
    #allocation5 [shape = 'u8[1024]{0}', space=vmem, size = 0x400, scoped, tag = 'output window, operand 1, single buffered']
    #allocation6 [shape = 's32[1]{0}', space=sflag, size = 0x4, scoped, tag = 'scoped memory for g2p_forward.1']
    #allocation7 [shape = 'u8[1024]{0}', space=vmem, size = 0x400, scoped, tag = 'output window, operand 2, single buffered']
    #allocation8 [shape = 's32[1]{0}', space=sflag, size = 0x4, scoped, tag = 'scoped memory for g2p_forward.1']
    %20 = vsyncpa [#allocation6], 0
    %21 = vsyncpa [#allocation8], 0
    // Predicated region
    $region2: #{g2p_forward.1} parent=1 // pred_check
      _
    $region3: #{g2p_forward.1} parent=1 // pred_check_branch
      %23 = sbr.rel (0) target = $region5
    $region4: #{g2p_forward.1} parent=1 // pred_region
      _
    $region5: #{g2p_forward.1} parent=1 // pred_fallthru
      _
    // Predicated region
    $region6: #{g2p_forward.1} parent=1 // pred_check
      _
    $region7: #{g2p_forward.1} parent=1 // pred_check_branch
      %25 = sbr.rel (0) target = $region9
    $region8: #{g2p_forward.1} parent=1 // pred_region
      _
    $region9: #{g2p_forward.1} parent=1 // pred_fallthru
      _
    // Predicated region
    $region10: #{g2p_forward.1} parent=1 // pred_check
      _
    $region11: #{g2p_forward.1} parent=1 // pred_check_branch
      %27 = sbr.rel (0) target = $region13
    $region12: #{g2p_forward.1} parent=1 // pred_region
      _
    $region13: #{g2p_forward.1} parent=1 // pred_fallthru
      _
    // Predicated region
    $region14: #{g2p_forward.1} parent=1 // pred_check
      _
    $region15: #{g2p_forward.1} parent=1 // pred_check_branch
      %29 = sbr.rel (0) target = $region17
    $region16: #{g2p_forward.1} parent=1 // pred_region
      _
    $region17: #{g2p_forward.1} parent=1 // pred_fallthru
      _
    // Predicated region
    $region18: #{g2p_forward.1} parent=1 // pred_check
      _
    $region19: #{g2p_forward.1} parent=1 // pred_check_branch
      %31 = sbr.rel (0) target = $region21
    $region20: #{g2p_forward.1} parent=1 // pred_region
      _
    $region21: #{g2p_forward.1} parent=1 // pred_fallthru
      _
    // Predicated region
    $region22: #{g2p_forward.1} parent=1 // pred_check
      _
    $region23: #{g2p_forward.1} parent=1 // pred_check_branch
      %33 = sbr.rel (0) target = $region25
    $region24: #{g2p_forward.1} parent=1 // pred_region
      _
    $region25: #{g2p_forward.1} parent=1 // pred_fallthru
      _
    // Predicated region
    $region26: #{g2p_forward.1} parent=1 // pred_check
      _
    $region27: #{g2p_forward.1} parent=1 // pred_check_branch
      %35 = sbr.rel (0) target = $region29
    $region28: #{g2p_forward.1} parent=1 // pred_region
      _
    $region29: #{g2p_forward.1} parent=1 // pred_fallthru
      _
    // Predicated region
    $region30: #{g2p_forward.1} parent=1 // pred_check
      _
    $region31: #{g2p_forward.1} parent=1 // pred_check_branch
      %37 = sbr.rel (0) target = $region33
    $region32: #{g2p_forward.1} parent=1 // pred_region
      _
    $region33: #{g2p_forward.1} parent=1 // pred_fallthru
      _
    // Predicated region
    $region34: #{g2p_forward.1} parent=1 // pred_check
      _
    $region35: #{g2p_forward.1} parent=1 // pred_check_branch
      %39 = sbr.rel (0) target = $region37
    $region36: #{g2p_forward.1} parent=1 // pred_region
      _
    $region37: #{g2p_forward.1} parent=1 // pred_fallthru
      _
    // Predicated region
    $region38: #{g2p_forward.1} parent=1 // pred_check
      _
    $region39: #{g2p_forward.1} parent=1 // pred_check_branch
      %41 = sbr.rel (0) target = $region41
    $region40: #{g2p_forward.1} parent=1 // pred_region
      _
    $region41: #{g2p_forward.1} parent=1 // pred_fallthru
      _
    // Predicated region
    $region42: #{g2p_forward.1} parent=1 // pred_check
      _
    $region43: #{g2p_forward.1} parent=1 // pred_check_branch
      %43 = sbr.rel (0) target = $region45
    $region44: #{g2p_forward.1} parent=1 // pred_region
      _
    $region45: #{g2p_forward.1} parent=1 // pred_fallthru
      _
    // Predicated region
    $region46: #{g2p_forward.1} parent=1 // pred_check
      _
    $region47: #{g2p_forward.1} parent=1 // pred_check_branch
      %45 = sbr.rel (0) target = $region49
    $region48: #{g2p_forward.1} parent=1 // pred_region
      _
    $region49: #{g2p_forward.1} parent=1 // pred_fallthru
      _
    %v46 = vld [vmem:[%s0] sm:$0xff]
    %v47 = vld [vmem:[%s0 + $0x8] sm:$0xff]
    %v48 = vld [vmem:[%s2] sm:$0xff]
    %v49 = vld [vmem:[%s2 + $0x8] sm:$0xff]
    %v50 = vld [vmem:[%s2 + $0x10] sm:$0xff]
    %v51 = vld [vmem:[%s2 + $0x18] sm:$0xff]
    %v52 = vld [vmem:[%s4] sm:$0x1]
    %v54 = vlaneseq
    %v55 = vshrl.u32 %v54, 7
    %v56 = vsub.s32 0, %v55
    %v57 = vrot.slane %v52, %v56
    %vm59 = vcmask 261120
    %v61 = vsel %vm59, %v46, 0
    %v64 = vsel %vm59, %v47, 0
    %66 = vmatprep.subr.mxu0 0.0
    %67 = vmatpush1.msra.mxu0 0.0
    %68 = vmatprep.subr.mxu0 0.0
    %69 = vmatpush1.msra.mxu0 0.0
    %70 = vmatprep.subr.mxu0 0.0
    %71 = vmatpush1.msra.mxu0 0.0
    %72 = vmatprep.subr.mxu0 0.0
    %73 = vmatpush1.msra.mxu0 0.0
    %74 = vmatprep.subr.mxu0 0.0
    %75 = vmatpush1.msra.mxu0 0.0
    %76 = vmatprep.subr.mxu0 0.0
    %77 = vmatpush1.msra.mxu0 0.0
    %78 = vmatprep.subr.mxu0 0.0
    %79 = vmatpush1.msra.mxu0 0.0
    %80 = vmatprep.subr.mxu0 0.0
    %81 = vmatpush1.msra.mxu0 0.0
    %82 = vmatprep.subr.mxu0 0.0
    %83 = vmatpush1.msra.mxu0 0.0
    %84 = vmatprep.subr.mxu0 0.0
    %85 = vmatpush1.msra.mxu0 0.0
    %86 = vmatprep.subr.mxu0 0.0
    %87 = vmatpush1.msra.mxu0 0.0
    %88 = vmatprep.subr.mxu0 0.0
    %89 = vmatpush1.msra.mxu0 0.0
    %90 = vmatprep.subr.mxu0 0.0
    %91 = vmatpush1.msra.mxu0 %v51
    %92 = vmatprep.subr.mxu0 0.0
    %93 = vmatpush1.msra.mxu0 %v50
    %94 = vmatprep.subr.mxu0 0.0
    %95 = vmatpush1.msra.mxu0 %v49
    %96 = vmatprep.subr.mxu0 0.0
    %97 = vmatpush1.msra.mxu0 %v48
    %98 = vmatprep.subr.mxu0 0.0
    %99 = vmatpush2.msra.mxu0 0.0
    %100 = vmatprep.subr.mxu0 0.0
    %101 = vmatpush2.msra.mxu0 0.0
    %102 = vmatprep.subr.mxu0 0.0
    %103 = vmatpush2.msra.mxu0 0.0
    %104 = vmatprep.subr.mxu0 0.0
    %105 = vmatpush2.msra.mxu0 0.0
    %106 = vmatprep.subr.mxu0 0.0
    %107 = vmatpush2.msra.mxu0 0.0
    %108 = vmatprep.subr.mxu0 0.0
    %109 = vmatpush2.msra.mxu0 0.0
    %110 = vmatprep.subr.mxu0 0.0
    %111 = vmatpush2.msra.mxu0 0.0
    %112 = vmatprep.subr.mxu0 0.0
    %113 = vmatpush2.msra.mxu0 0.0
    %114 = vmatprep.subr.mxu0 0.0
    %115 = vmatpush2.msra.mxu0 0.0
    %116 = vmatprep.subr.mxu0 0.0
    %117 = vmatpush2.msra.mxu0 0.0
    %118 = vmatprep.subr.mxu0 0.0
    %119 = vmatpush2.msra.mxu0 0.0
    %120 = vmatprep.subr.mxu0 0.0
    %121 = vmatpush2.msra.mxu0 0.0
    %122 = vmatprep.subr.mxu0 0.0
    %123 = vmatpush2.msra.mxu0 0.0
    %124 = vmatprep.subr.mxu0 0.0
    %125 = vmatpush2.msra.mxu0 0.0
    %126 = vmatprep.subr.mxu0 0.0
    %127 = vmatpush2.msra.mxu0 0.0
    %128 = vmatprep.subr.mxu0 0.0
    %129 = vmatpush2.msra.mxu0 0.0
    %130 = vmatprep.mubr.f32.mxu0 0.0
    %131 = vmatmul.mubr.f32.gmra.mxu0 %v61
    %v132 = vpop.f32.mrf.mxu0
    %v133 = vadd.f32 %v57, %v132
    %v134 = vpop.f32.mrf.mxu0
    %135 = vmatprep.mubr.f32.mxu0 0.0
    %136 = vmatmul.mubr.f32.gmra.mxu0 %v64
    %v137 = vpop.f32.mrf.mxu0
    %v138 = vadd.f32 %v57, %v137
    %v139 = vpop.f32.mrf.mxu0
    %140 = vdwg.mxu0
    %141 = vst [vmem:[#allocation2] sm:$0xff] %v133
    %142 = vst [vmem:[#allocation2 + $0x8] sm:$0xff] %v138
    %v143 = vld [vmem:[%s1] sm:$0xff]
    %v144 = vld [vmem:[%s1 + $0x8] sm:$0xf]
    %v145 = vld [vmem:[%s5] sm:$0xff]
    %v146 = vld [vmem:[%s5 + $0x8] sm:$0xff]
    %v147 = vld [vmem:[%s5 + $0x10] sm:$0xff]
    %v148 = vld [vmem:[%s5 + $0x18] sm:$0xff]
    %v149 = vld [vmem:[%s7] sm:$0x1]
    %v151 = vlaneseq
    %v152 = vshrl.u32 %v151, 7
    %v153 = vsub.s32 0, %v152
    %v154 = vrot.slane %v149, %v153
    %v157 = vsel %vm59, %v143, 0
    %v160 = vsel %vm59, %v144, 0
    %162 = vmatprep.subr.mxu0 0.0
    %163 = vmatpush1.msra.mxu0 0.0
    %164 = vmatprep.subr.mxu0 0.0
    %165 = vmatpush1.msra.mxu0 0.0
    %166 = vmatprep.subr.mxu0 0.0
    %167 = vmatpush1.msra.mxu0 0.0
    %168 = vmatprep.subr.mxu0 0.0
    %169 = vmatpush1.msra.mxu0 0.0
    %170 = vmatprep.subr.mxu0 0.0
    %171 = vmatpush1.msra.mxu0 0.0
    %172 = vmatprep.subr.mxu0 0.0
    %173 = vmatpush1.msra.mxu0 0.0
    %174 = vmatprep.subr.mxu0 0.0
    %175 = vmatpush1.msra.mxu0 0.0
    %176 = vmatprep.subr.mxu0 0.0
    %177 = vmatpush1.msra.mxu0 0.0
    %178 = vmatprep.subr.mxu0 0.0
    %179 = vmatpush1.msra.mxu0 0.0
    %180 = vmatprep.subr.mxu0 0.0
    %181 = vmatpush1.msra.mxu0 0.0
    %182 = vmatprep.subr.mxu0 0.0
    %183 = vmatpush1.msra.mxu0 0.0
    %184 = vmatprep.subr.mxu0 0.0
    %185 = vmatpush1.msra.mxu0 0.0
    %186 = vmatprep.subr.mxu0 0.0
    %187 = vmatpush1.msra.mxu0 %v148
    %188 = vmatprep.subr.mxu0 0.0
    %189 = vmatpush1.msra.mxu0 %v147
    %190 = vmatprep.subr.mxu0 0.0
    %191 = vmatpush1.msra.mxu0 %v146
    %192 = vmatprep.subr.mxu0 0.0
    %193 = vmatpush1.msra.mxu0 %v145
    %194 = vmatprep.subr.mxu0 0.0
    %195 = vmatpush2.msra.mxu0 0.0
    %196 = vmatprep.subr.mxu0 0.0
    %197 = vmatpush2.msra.mxu0 0.0
    %198 = vmatprep.subr.mxu0 0.0
    %199 = vmatpush2.msra.mxu0 0.0
    %200 = vmatprep.subr.mxu0 0.0
    %201 = vmatpush2.msra.mxu0 0.0
    %202 = vmatprep.subr.mxu0 0.0
    %203 = vmatpush2.msra.mxu0 0.0
    %204 = vmatprep.subr.mxu0 0.0
    %205 = vmatpush2.msra.mxu0 0.0
    %206 = vmatprep.subr.mxu0 0.0
    %207 = vmatpush2.msra.mxu0 0.0
    %208 = vmatprep.subr.mxu0 0.0
    %209 = vmatpush2.msra.mxu0 0.0
    %210 = vmatprep.subr.mxu0 0.0
    %211 = vmatpush2.msra.mxu0 0.0
    %212 = vmatprep.subr.mxu0 0.0
    %213 = vmatpush2.msra.mxu0 0.0
    %214 = vmatprep.subr.mxu0 0.0
    %215 = vmatpush2.msra.mxu0 0.0
    %216 = vmatprep.subr.mxu0 0.0
    %217 = vmatpush2.msra.mxu0 0.0
    %218 = vmatprep.subr.mxu0 0.0
    %219 = vmatpush2.msra.mxu0 0.0
    %220 = vmatprep.subr.mxu0 0.0
    %221 = vmatpush2.msra.mxu0 0.0
    %222 = vmatprep.subr.mxu0 0.0
    %223 = vmatpush2.msra.mxu0 0.0
    %224 = vmatprep.subr.mxu0 0.0
    %225 = vmatpush2.msra.mxu0 0.0
    %226 = vmatprep.mubr.f32.mxu0 0.0
    %227 = vmatmul.mubr.f32.gmra.mxu0 %v157
    %v228 = vpop.f32.mrf.mxu0
    %v229 = vadd.f32 %v154, %v228
    %v230 = vpop.f32.mrf.mxu0
    %231 = vmatprep.mubr.f32.mxu0 0.0
    %232 = vmatmul.mubr.f32.gmra.mxu0 %v160
    %v233 = vpop.f32.mrf.mxu0
    %v234 = vadd.f32 %v154, %v233
    %v235 = vpop.f32.mrf.mxu0
    %236 = vdwg.mxu0
    %237 = vst [vmem:[#allocation3] sm:$0xff] %v229
    %238 = vst [vmem:[#allocation3 + $0x8] sm:$0xf] %v234
    %v239 = vld [vmem:[%s3] sm:$0xff]
    %v240 = vld [vmem:[%s3 + $0x8] sm:$0xff]
    %v241 = vld [vmem:[%s3 + $0x10] sm:$0xff]
    %v242 = vld [vmem:[%s3 + $0x18] sm:$0xff]
    %v243 = vld [vmem:[#allocation2] sm:$0x3]
    %v245 = vsel %vm59, 0.0, 0
    %247 = vmatprep.subr.mxu0 0.0
    %248 = vmatpush1.msra.mxu0 0.0
    %249 = vmatprep.subr.mxu0 0.0
    %250 = vmatpush1.msra.mxu0 0.0
    %251 = vmatprep.subr.mxu0 0.0
    %252 = vmatpush1.msra.mxu0 0.0
    %253 = vmatprep.subr.mxu0 0.0
    %254 = vmatpush1.msra.mxu0 0.0
    %255 = vmatprep.subr.mxu0 0.0
    %256 = vmatpush1.msra.mxu0 0.0
    %257 = vmatprep.subr.mxu0 0.0
    %258 = vmatpush1.msra.mxu0 0.0
    %259 = vmatprep.subr.mxu0 0.0
    %260 = vmatpush1.msra.mxu0 0.0
    %261 = vmatprep.subr.mxu0 0.0
    %262 = vmatpush1.msra.mxu0 0.0
    %263 = vmatprep.subr.mxu0 0.0
    %264 = vmatpush1.msra.mxu0 0.0
    %265 = vmatprep.subr.mxu0 0.0
    %266 = vmatpush1.msra.mxu0 0.0
    %267 = vmatprep.subr.mxu0 0.0
    %268 = vmatpush1.msra.mxu0 0.0
    %269 = vmatprep.subr.mxu0 0.0
    %270 = vmatpush1.msra.mxu0 0.0
    %271 = vmatprep.subr.mxu0 0.0
    %272 = vmatpush1.msra.mxu0 %v242
    %273 = vmatprep.subr.mxu0 0.0
    %274 = vmatpush1.msra.mxu0 %v241
    %275 = vmatprep.subr.mxu0 0.0
    %276 = vmatpush1.msra.mxu0 %v240
    %277 = vmatprep.subr.mxu0 0.0
    %278 = vmatpush1.msra.mxu0 %v239
    %279 = vmatprep.subr.mxu0 0.0
    %280 = vmatpush2.msra.mxu0 0.0
    %281 = vmatprep.subr.mxu0 0.0
    %282 = vmatpush2.msra.mxu0 0.0
    %283 = vmatprep.subr.mxu0 0.0
    %284 = vmatpush2.msra.mxu0 0.0
    %285 = vmatprep.subr.mxu0 0.0
    %286 = vmatpush2.msra.mxu0 0.0
    %287 = vmatprep.subr.mxu0 0.0
    %288 = vmatpush2.msra.mxu0 0.0
    %289 = vmatprep.subr.mxu0 0.0
    %290 = vmatpush2.msra.mxu0 0.0
    %291 = vmatprep.subr.mxu0 0.0
    %292 = vmatpush2.msra.mxu0 0.0
    %293 = vmatprep.subr.mxu0 0.0
    %294 = vmatpush2.msra.mxu0 0.0
    %295 = vmatprep.subr.mxu0 0.0
    %296 = vmatpush2.msra.mxu0 0.0
    %297 = vmatprep.subr.mxu0 0.0
    %298 = vmatpush2.msra.mxu0 0.0
    %299 = vmatprep.subr.mxu0 0.0
    %300 = vmatpush2.msra.mxu0 0.0
    %301 = vmatprep.subr.mxu0 0.0
    %302 = vmatpush2.msra.mxu0 0.0
    %303 = vmatprep.subr.mxu0 0.0
    %304 = vmatpush2.msra.mxu0 0.0
    %305 = vmatprep.subr.mxu0 0.0
    %306 = vmatpush2.msra.mxu0 0.0
    %307 = vmatprep.subr.mxu0 0.0
    %308 = vmatpush2.msra.mxu0 0.0
    %309 = vmatprep.subr.mxu0 0.0
    %310 = vmatpush2.msra.mxu0 0.0
    %311 = vmatprep.mubr.f32.mxu0 0.0
    %312 = vmatmul.mubr.f32.gmra.mxu0 %v245
    %v313 = vpop.f32.mrf.mxu0
    %v314 = vadd.f32 0.0, %v313
    %v315 = vpop.f32.mrf.mxu0
    %316 = vdwg.mxu0
    %v317 = vadd.f32 %v243, %v314
    %v318 = vxor.u32 %v317, 2147483648
    %v319 = vmul.f32 %v318, 1.442695
    %v320 = vpow.pop %v319
    %v321 = vadd.f32 %v320, 1.0
    %v322 = vrcp.pop %v321
    %v323 = vmul.f32 1.0, %v322
    %v324 = vtanh.pop %v317
    %v325 = vmul.f32 %v323, 0.0
    %327 = vrot.lane.b32.xlu0 %v324, 64
    %v328 = vpop.permute.xlu0 %327
    %v330 = vmul.f32 %v323, %v328
    %332 = vrot.lane.b32.xlu0 %v330, 32
    %v333 = vpop.permute.xlu0 %332
    %v335 = vadd.f32 %v325, %v333
    %v336 = vtanh.pop %v335
    %338 = vrot.lane.b32.xlu0 %v336, 64
    %v339 = vpop.permute.xlu0 %338
    %v341 = vmul.f32 %v323, %v339
    %343 = vrot.lane.b32.xlu0 %v341, 32
    %v344 = vpop.permute.xlu0 %343
    %vm346 = vcmask 254976
    %347 = vst.msk [vmem:[#allocation4] sm:$0x3] %vm346, %v344
    %v348 = vld [vmem:[#allocation2 + $0x2] sm:$0x3]
    %v349 = vsel %vm59, %v344, 0
    %351 = vmatprep.subr.mxu0 0.0
    %352 = vmatpush1.msra.mxu0 0.0
    %353 = vmatprep.subr.mxu0 0.0
    %354 = vmatpush1.msra.mxu0 0.0
    %355 = vmatprep.subr.mxu0 0.0
    %356 = vmatpush1.msra.mxu0 0.0
    %357 = vmatprep.subr.mxu0 0.0
    %358 = vmatpush1.msra.mxu0 0.0
    %359 = vmatprep.subr.mxu0 0.0
    %360 = vmatpush1.msra.mxu0 0.0
    %361 = vmatprep.subr.mxu0 0.0
    %362 = vmatpush1.msra.mxu0 0.0
    %363 = vmatprep.subr.mxu0 0.0
    %364 = vmatpush1.msra.mxu0 0.0
    %365 = vmatprep.subr.mxu0 0.0
    %366 = vmatpush1.msra.mxu0 0.0
    %367 = vmatprep.subr.mxu0 0.0
    %368 = vmatpush1.msra.mxu0 0.0
    %369 = vmatprep.subr.mxu0 0.0
    %370 = vmatpush1.msra.mxu0 0.0
    %371 = vmatprep.subr.mxu0 0.0
    %372 = vmatpush1.msra.mxu0 0.0
    %373 = vmatprep.subr.mxu0 0.0
    %374 = vmatpush1.msra.mxu0 0.0
    %375 = vmatprep.subr.mxu0 0.0
    %376 = vmatpush1.msra.mxu0 %v242
    %377 = vmatprep.subr.mxu0 0.0
    %378 = vmatpush1.msra.mxu0 %v241
    %379 = vmatprep.subr.mxu0 0.0
    %380 = vmatpush1.msra.mxu0 %v240
    %381 = vmatprep.subr.mxu0 0.0
    %382 = vmatpush1.msra.mxu0 %v239
    %383 = vmatprep.subr.mxu0 0.0
    %384 = vmatpush2.msra.mxu0 0.0
    %385 = vmatprep.subr.mxu0 0.0
    %386 = vmatpush2.msra.mxu0 0.0
    %387 = vmatprep.subr.mxu0 0.0
    %388 = vmatpush2.msra.mxu0 0.0
    %389 = vmatprep.subr.mxu0 0.0
    %390 = vmatpush2.msra.mxu0 0.0
    %391 = vmatprep.subr.mxu0 0.0
    %392 = vmatpush2.msra.mxu0 0.0
    %393 = vmatprep.subr.mxu0 0.0
    %394 = vmatpush2.msra.mxu0 0.0
    %395 = vmatprep.subr.mxu0 0.0
    %396 = vmatpush2.msra.mxu0 0.0
    %397 = vmatprep.subr.mxu0 0.0
    %398 = vmatpush2.msra.mxu0 0.0
    %399 = vmatprep.subr.mxu0 0.0
    %400 = vmatpush2.msra.mxu0 0.0
    %401 = vmatprep.subr.mxu0 0.0
    %402 = vmatpush2.msra.mxu0 0.0
    %403 = vmatprep.subr.mxu0 0.0
    %404 = vmatpush2.msra.mxu0 0.0
    %405 = vmatprep.subr.mxu0 0.0
    %406 = vmatpush2.msra.mxu0 0.0
    %407 = vmatprep.subr.mxu0 0.0
    %408 = vmatpush2.msra.mxu0 0.0
    %409 = vmatprep.subr.mxu0 0.0
    %410 = vmatpush2.msra.mxu0 0.0
    %411 = vmatprep.subr.mxu0 0.0
    %412 = vmatpush2.msra.mxu0 0.0
    %413 = vmatprep.subr.mxu0 0.0
    %414 = vmatpush2.msra.mxu0 0.0
    %415 = vmatprep.mubr.f32.mxu0 0.0
    %416 = vmatmul.mubr.f32.gmra.mxu0 %v349
    %v417 = vpop.f32.mrf.mxu0
    %v418 = vadd.f32 0.0, %v417
    %v419 = vpop.f32.mrf.mxu0
    %420 = vdwg.mxu0
    %v421 = vadd.f32 %v348, %v418
    %v422 = vxor.u32 %v421, 2147483648
    %v423 = vmul.f32 %v422, 1.442695
    %v424 = vpow.pop %v423
    %v425 = vadd.f32 %v424, 1.0
    %v426 = vrcp.pop %v425
    %v427 = vmul.f32 1.0, %v426
    %v428 = vtanh.pop %v421
    %v429 = vmul.f32 %v427, %v335
    %431 = vrot.lane.b32.xlu0 %v428, 64
    %v432 = vpop.permute.xlu0 %431
    %v434 = vmul.f32 %v427, %v432
    %436 = vrot.lane.b32.xlu0 %v434, 32
    %v437 = vpop.permute.xlu0 %436
    %v439 = vadd.f32 %v429, %v437
    %v440 = vtanh.pop %v439
    %442 = vrot.lane.b32.xlu0 %v440, 64
    %v443 = vpop.permute.xlu0 %442
    %v445 = vmul.f32 %v427, %v443
    %447 = vrot.lane.b32.xlu0 %v445, 32
    %v448 = vpop.permute.xlu0 %447
    %450 = vst.msk [vmem:[#allocation4 + $0x2] sm:$0x3] %vm346, %v448
    %v451 = vld [vmem:[#allocation2 + $0x4] sm:$0x3]
    %v452 = vsel %vm59, %v448, 0
    %454 = vmatprep.subr.mxu0 0.0
    %455 = vmatpush1.msra.mxu0 0.0
    %456 = vmatprep.subr.mxu0 0.0
    %457 = vmatpush1.msra.mxu0 0.0
    %458 = vmatprep.subr.mxu0 0.0
    %459 = vmatpush1.msra.mxu0 0.0
    %460 = vmatprep.subr.mxu0 0.0
    %461 = vmatpush1.msra.mxu0 0.0
    %462 = vmatprep.subr.mxu0 0.0
    %463 = vmatpush1.msra.mxu0 0.0
    %464 = vmatprep.subr.mxu0 0.0
    %465 = vmatpush1.msra.mxu0 0.0
    %466 = vmatprep.subr.mxu0 0.0
    %467 = vmatpush1.msra.mxu0 0.0
    %468 = vmatprep.subr.mxu0 0.0
    %469 = vmatpush1.msra.mxu0 0.0
    %470 = vmatprep.subr.mxu0 0.0
    %471 = vmatpush1.msra.mxu0 0.0
    %472 = vmatprep.subr.mxu0 0.0
    %473 = vmatpush1.msra.mxu0 0.0
    %474 = vmatprep.subr.mxu0 0.0
    %475 = vmatpush1.msra.mxu0 0.0
    %476 = vmatprep.subr.mxu0 0.0
    %477 = vmatpush1.msra.mxu0 0.0
    %478 = vmatprep.subr.mxu0 0.0
    %479 = vmatpush1.msra.mxu0 %v242
    %480 = vmatprep.subr.mxu0 0.0
    %481 = vmatpush1.msra.mxu0 %v241
    %482 = vmatprep.subr.mxu0 0.0
    %483 = vmatpush1.msra.mxu0 %v240
    %484 = vmatprep.subr.mxu0 0.0
    %485 = vmatpush1.msra.mxu0 %v239
    %486 = vmatprep.subr.mxu0 0.0
    %487 = vmatpush2.msra.mxu0 0.0
    %488 = vmatprep.subr.mxu0 0.0
    %489 = vmatpush2.msra.mxu0 0.0
    %490 = vmatprep.subr.mxu0 0.0
    %491 = vmatpush2.msra.mxu0 0.0
    %492 = vmatprep.subr.mxu0 0.0
    %493 = vmatpush2.msra.mxu0 0.0
    %494 = vmatprep.subr.mxu0 0.0
    %495 = vmatpush2.msra.mxu0 0.0
    %496 = vmatprep.subr.mxu0 0.0
    %497 = vmatpush2.msra.mxu0 0.0
    %498 = vmatprep.subr.mxu0 0.0
    %499 = vmatpush2.msra.mxu0 0.0
    %500 = vmatprep.subr.mxu0 0.0
    %501 = vmatpush2.msra.mxu0 0.0
    %502 = vmatprep.subr.mxu0 0.0
    %503 = vmatpush2.msra.mxu0 0.0
    %504 = vmatprep.subr.mxu0 0.0
    %505 = vmatpush2.msra.mxu0 0.0
    %506 = vmatprep.subr.mxu0 0.0
    %507 = vmatpush2.msra.mxu0 0.0
    %508 = vmatprep.subr.mxu0 0.0
    %509 = vmatpush2.msra.mxu0 0.0
    %510 = vmatprep.subr.mxu0 0.0
    %511 = vmatpush2.msra.mxu0 0.0
    %512 = vmatprep.subr.mxu0 0.0
    %513 = vmatpush2.msra.mxu0 0.0
    %514 = vmatprep.subr.mxu0 0.0
    %515 = vmatpush2.msra.mxu0 0.0
    %516 = vmatprep.subr.mxu0 0.0
    %517 = vmatpush2.msra.mxu0 0.0
    %518 = vmatprep.mubr.f32.mxu0 0.0
    %519 = vmatmul.mubr.f32.gmra.mxu0 %v452
    %v520 = vpop.f32.mrf.mxu0
    %v521 = vadd.f32 0.0, %v520
    %v522 = vpop.f32.mrf.mxu0
    %523 = vdwg.mxu0
    %v524 = vadd.f32 %v451, %v521
    %v525 = vxor.u32 %v524, 2147483648
    %v526 = vmul.f32 %v525, 1.442695
    %v527 = vpow.pop %v526
    %v528 = vadd.f32 %v527, 1.0
    %v529 = vrcp.pop %v528
    %v530 = vmul.f32 1.0, %v529
    %v531 = vtanh.pop %v524
    %v532 = vmul.f32 %v530, %v439
    %534 = vrot.lane.b32.xlu0 %v531, 64
    %v535 = vpop.permute.xlu0 %534
    %v537 = vmul.f32 %v530, %v535
    %539 = vrot.lane.b32.xlu0 %v537, 32
    %v540 = vpop.permute.xlu0 %539
    %v542 = vadd.f32 %v532, %v540
    %v543 = vtanh.pop %v542
    %545 = vrot.lane.b32.xlu0 %v543, 64
    %v546 = vpop.permute.xlu0 %545
    %v548 = vmul.f32 %v530, %v546
    %550 = vrot.lane.b32.xlu0 %v548, 32
    %v551 = vpop.permute.xlu0 %550
    %553 = vst.msk [vmem:[#allocation4 + $0x4] sm:$0x3] %vm346, %v551
    %v554 = vld [vmem:[#allocation2 + $0x6] sm:$0x3]
    %v555 = vsel %vm59, %v551, 0
    %557 = vmatprep.subr.mxu0 0.0
    %558 = vmatpush1.msra.mxu0 0.0
    %559 = vmatprep.subr.mxu0 0.0
    %560 = vmatpush1.msra.mxu0 0.0
    %561 = vmatprep.subr.mxu0 0.0
    %562 = vmatpush1.msra.mxu0 0.0
    %563 = vmatprep.subr.mxu0 0.0
    %564 = vmatpush1.msra.mxu0 0.0
    %565 = vmatprep.subr.mxu0 0.0
    %566 = vmatpush1.msra.mxu0 0.0
    %567 = vmatprep.subr.mxu0 0.0
    %568 = vmatpush1.msra.mxu0 0.0
    %569 = vmatprep.subr.mxu0 0.0
    %570 = vmatpush1.msra.mxu0 0.0
    %571 = vmatprep.subr.mxu0 0.0
    %572 = vmatpush1.msra.mxu0 0.0
    %573 = vmatprep.subr.mxu0 0.0
    %574 = vmatpush1.msra.mxu0 0.0
    %575 = vmatprep.subr.mxu0 0.0
    %576 = vmatpush1.msra.mxu0 0.0
    %577 = vmatprep.subr.mxu0 0.0
    %578 = vmatpush1.msra.mxu0 0.0
    %579 = vmatprep.subr.mxu0 0.0
    %580 = vmatpush1.msra.mxu0 0.0
    %581 = vmatprep.subr.mxu0 0.0
    %582 = vmatpush1.msra.mxu0 %v242
    %583 = vmatprep.subr.mxu0 0.0
    %584 = vmatpush1.msra.mxu0 %v241
    %585 = vmatprep.subr.mxu0 0.0
    %586 = vmatpush1.msra.mxu0 %v240
    %587 = vmatprep.subr.mxu0 0.0
    %588 = vmatpush1.msra.mxu0 %v239
    %589 = vmatprep.subr.mxu0 0.0
    %590 = vmatpush2.msra.mxu0 0.0
    %591 = vmatprep.subr.mxu0 0.0
    %592 = vmatpush2.msra.mxu0 0.0
    %593 = vmatprep.subr.mxu0 0.0
    %594 = vmatpush2.msra.mxu0 0.0
    %595 = vmatprep.subr.mxu0 0.0
    %596 = vmatpush2.msra.mxu0 0.0
    %597 = vmatprep.subr.mxu0 0.0
    %598 = vmatpush2.msra.mxu0 0.0
    %599 = vmatprep.subr.mxu0 0.0
    %600 = vmatpush2.msra.mxu0 0.0
    %601 = vmatprep.subr.mxu0 0.0
    %602 = vmatpush2.msra.mxu0 0.0
    %603 = vmatprep.subr.mxu0 0.0
    %604 = vmatpush2.msra.mxu0 0.0
    %605 = vmatprep.subr.mxu0 0.0
    %606 = vmatpush2.msra.mxu0 0.0
    %607 = vmatprep.subr.mxu0 0.0
    %608 = vmatpush2.msra.mxu0 0.0
    %609 = vmatprep.subr.mxu0 0.0
    %610 = vmatpush2.msra.mxu0 0.0
    %611 = vmatprep.subr.mxu0 0.0
    %612 = vmatpush2.msra.mxu0 0.0
    %613 = vmatprep.subr.mxu0 0.0
    %614 = vmatpush2.msra.mxu0 0.0
    %615 = vmatprep.subr.mxu0 0.0
    %616 = vmatpush2.msra.mxu0 0.0
    %617 = vmatprep.subr.mxu0 0.0
    %618 = vmatpush2.msra.mxu0 0.0
    %619 = vmatprep.subr.mxu0 0.0
    %620 = vmatpush2.msra.mxu0 0.0
    %621 = vmatprep.mubr.f32.mxu0 0.0
    %622 = vmatmul.mubr.f32.gmra.mxu0 %v555
    %v623 = vpop.f32.mrf.mxu0
    %v624 = vadd.f32 0.0, %v623
    %v625 = vpop.f32.mrf.mxu0
    %626 = vdwg.mxu0
    %v627 = vadd.f32 %v554, %v624
    %v628 = vxor.u32 %v627, 2147483648
    %v629 = vmul.f32 %v628, 1.442695
    %v630 = vpow.pop %v629
    %v631 = vadd.f32 %v630, 1.0
    %v632 = vrcp.pop %v631
    %v633 = vmul.f32 1.0, %v632
    %v634 = vtanh.pop %v627
    %v635 = vmul.f32 %v633, %v542
    %637 = vrot.lane.b32.xlu0 %v634, 64
    %v638 = vpop.permute.xlu0 %637
    %v640 = vmul.f32 %v633, %v638
    %642 = vrot.lane.b32.xlu0 %v640, 32
    %v643 = vpop.permute.xlu0 %642
    %v645 = vadd.f32 %v635, %v643
    %v646 = vtanh.pop %v645
    %648 = vrot.lane.b32.xlu0 %v646, 64
    %v649 = vpop.permute.xlu0 %648
    %v651 = vmul.f32 %v633, %v649
    %653 = vrot.lane.b32.xlu0 %v651, 32
    %v654 = vpop.permute.xlu0 %653
    %656 = vst.msk [vmem:[#allocation4 + $0x6] sm:$0x3] %vm346, %v654
    %v657 = vld [vmem:[#allocation2 + $0x8] sm:$0x3]
    %v658 = vsel %vm59, %v654, 0
    %660 = vmatprep.subr.mxu0 0.0
    %661 = vmatpush1.msra.mxu0 0.0
    %662 = vmatprep.subr.mxu0 0.0
    %663 = vmatpush1.msra.mxu0 0.0
    %664 = vmatprep.subr.mxu0 0.0
    %665 = vmatpush1.msra.mxu0 0.0
    %666 = vmatprep.subr.mxu0 0.0
    %667 = vmatpush1.msra.mxu0 0.0
    %668 = vmatprep.subr.mxu0 0.0
    %669 = vmatpush1.msra.mxu0 0.0
    %670 = vmatprep.subr.mxu0 0.0
    %671 = vmatpush1.msra.mxu0 0.0
    %672 = vmatprep.subr.mxu0 0.0
    %673 = vmatpush1.msra.mxu0 0.0
    %674 = vmatprep.subr.mxu0 0.0
    %675 = vmatpush1.msra.mxu0 0.0
    %676 = vmatprep.subr.mxu0 0.0
    %677 = vmatpush1.msra.mxu0 0.0
    %678 = vmatprep.subr.mxu0 0.0
    %679 = vmatpush1.msra.mxu0 0.0
    %680 = vmatprep.subr.mxu0 0.0
    %681 = vmatpush1.msra.mxu0 0.0
    %682 = vmatprep.subr.mxu0 0.0
    %683 = vmatpush1.msra.mxu0 0.0
    %684 = vmatprep.subr.mxu0 0.0
    %685 = vmatpush1.msra.mxu0 %v242
    %686 = vmatprep.subr.mxu0 0.0
    %687 = vmatpush1.msra.mxu0 %v241
    %688 = vmatprep.subr.mxu0 0.0
    %689 = vmatpush1.msra.mxu0 %v240
    %690 = vmatprep.subr.mxu0 0.0
    %691 = vmatpush1.msra.mxu0 %v239
    %692 = vmatprep.subr.mxu0 0.0
    %693 = vmatpush2.msra.mxu0 0.0
    %694 = vmatprep.subr.mxu0 0.0
    %695 = vmatpush2.msra.mxu0 0.0
    %696 = vmatprep.subr.mxu0 0.0
    %697 = vmatpush2.msra.mxu0 0.0
    %698 = vmatprep.subr.mxu0 0.0
    %699 = vmatpush2.msra.mxu0 0.0
    %700 = vmatprep.subr.mxu0 0.0
    %701 = vmatpush2.msra.mxu0 0.0
    %702 = vmatprep.subr.mxu0 0.0
    %703 = vmatpush2.msra.mxu0 0.0
    %704 = vmatprep.subr.mxu0 0.0
    %705 = vmatpush2.msra.mxu0 0.0
    %706 = vmatprep.subr.mxu0 0.0
    %707 = vmatpush2.msra.mxu0 0.0
    %708 = vmatprep.subr.mxu0 0.0
    %709 = vmatpush2.msra.mxu0 0.0
    %710 = vmatprep.subr.mxu0 0.0
    %711 = vmatpush2.msra.mxu0 0.0
    %712 = vmatprep.subr.mxu0 0.0
    %713 = vmatpush2.msra.mxu0 0.0
    %714 = vmatprep.subr.mxu0 0.0
    %715 = vmatpush2.msra.mxu0 0.0
    %716 = vmatprep.subr.mxu0 0.0
    %717 = vmatpush2.msra.mxu0 0.0
    %718 = vmatprep.subr.mxu0 0.0
    %719 = vmatpush2.msra.mxu0 0.0
    %720 = vmatprep.subr.mxu0 0.0
    %721 = vmatpush2.msra.mxu0 0.0
    %722 = vmatprep.subr.mxu0 0.0
    %723 = vmatpush2.msra.mxu0 0.0
    %724 = vmatprep.mubr.f32.mxu0 0.0
    %725 = vmatmul.mubr.f32.gmra.mxu0 %v658
    %v726 = vpop.f32.mrf.mxu0
    %v727 = vadd.f32 0.0, %v726
    %v728 = vpop.f32.mrf.mxu0
    %729 = vdwg.mxu0
    %v730 = vadd.f32 %v657, %v727
    %v731 = vxor.u32 %v730, 2147483648
    %v732 = vmul.f32 %v731, 1.442695
    %v733 = vpow.pop %v732
    %v734 = vadd.f32 %v733, 1.0
    %v735 = vrcp.pop %v734
    %v736 = vmul.f32 1.0, %v735
    %v737 = vtanh.pop %v730
    %v738 = vmul.f32 %v736, %v645
    %740 = vrot.lane.b32.xlu0 %v737, 64
    %v741 = vpop.permute.xlu0 %740
    %v743 = vmul.f32 %v736, %v741
    %745 = vrot.lane.b32.xlu0 %v743, 32
    %v746 = vpop.permute.xlu0 %745
    %v748 = vadd.f32 %v738, %v746
    %v749 = vtanh.pop %v748
    %751 = vrot.lane.b32.xlu0 %v749, 64
    %v752 = vpop.permute.xlu0 %751
    %v754 = vmul.f32 %v736, %v752
    %756 = vrot.lane.b32.xlu0 %v754, 32
    %v757 = vpop.permute.xlu0 %756
    %759 = vst.msk [vmem:[#allocation4 + $0x8] sm:$0x3] %vm346, %v757
    %v760 = vld [vmem:[#allocation2 + $0xa] sm:$0x3]
    %v761 = vsel %vm59, %v757, 0
    %763 = vmatprep.subr.mxu0 0.0
    %764 = vmatpush1.msra.mxu0 0.0
    %765 = vmatprep.subr.mxu0 0.0
    %766 = vmatpush1.msra.mxu0 0.0
    %767 = vmatprep.subr.mxu0 0.0
    %768 = vmatpush1.msra.mxu0 0.0
    %769 = vmatprep.subr.mxu0 0.0
    %770 = vmatpush1.msra.mxu0 0.0
    %771 = vmatprep.subr.mxu0 0.0
    %772 = vmatpush1.msra.mxu0 0.0
    %773 = vmatprep.subr.mxu0 0.0
    %774 = vmatpush1.msra.mxu0 0.0
    %775 = vmatprep.subr.mxu0 0.0
    %776 = vmatpush1.msra.mxu0 0.0
    %777 = vmatprep.subr.mxu0 0.0
    %778 = vmatpush1.msra.mxu0 0.0
    %779 = vmatprep.subr.mxu0 0.0
    %780 = vmatpush1.msra.mxu0 0.0
    %781 = vmatprep.subr.mxu0 0.0
    %782 = vmatpush1.msra.mxu0 0.0
    %783 = vmatprep.subr.mxu0 0.0
    %784 = vmatpush1.msra.mxu0 0.0
    %785 = vmatprep.subr.mxu0 0.0
    %786 = vmatpush1.msra.mxu0 0.0
    %787 = vmatprep.subr.mxu0 0.0
    %788 = vmatpush1.msra.mxu0 %v242
    %789 = vmatprep.subr.mxu0 0.0
    %790 = vmatpush1.msra.mxu0 %v241
    %791 = vmatprep.subr.mxu0 0.0
    %792 = vmatpush1.msra.mxu0 %v240
    %793 = vmatprep.subr.mxu0 0.0
    %794 = vmatpush1.msra.mxu0 %v239
    %795 = vmatprep.subr.mxu0 0.0
    %796 = vmatpush2.msra.mxu0 0.0
    %797 = vmatprep.subr.mxu0 0.0
    %798 = vmatpush2.msra.mxu0 0.0
    %799 = vmatprep.subr.mxu0 0.0
    %800 = vmatpush2.msra.mxu0 0.0
    %801 = vmatprep.subr.mxu0 0.0
    %802 = vmatpush2.msra.mxu0 0.0
    %803 = vmatprep.subr.mxu0 0.0
    %804 = vmatpush2.msra.mxu0 0.0
    %805 = vmatprep.subr.mxu0 0.0
    %806 = vmatpush2.msra.mxu0 0.0
    %807 = vmatprep.subr.mxu0 0.0
    %808 = vmatpush2.msra.mxu0 0.0
    %809 = vmatprep.subr.mxu0 0.0
    %810 = vmatpush2.msra.mxu0 0.0
    %811 = vmatprep.subr.mxu0 0.0
    %812 = vmatpush2.msra.mxu0 0.0
    %813 = vmatprep.subr.mxu0 0.0
    %814 = vmatpush2.msra.mxu0 0.0
    %815 = vmatprep.subr.mxu0 0.0
    %816 = vmatpush2.msra.mxu0 0.0
    %817 = vmatprep.subr.mxu0 0.0
    %818 = vmatpush2.msra.mxu0 0.0
    %819 = vmatprep.subr.mxu0 0.0
    %820 = vmatpush2.msra.mxu0 0.0
    %821 = vmatprep.subr.mxu0 0.0
    %822 = vmatpush2.msra.mxu0 0.0
    %823 = vmatprep.subr.mxu0 0.0
    %824 = vmatpush2.msra.mxu0 0.0
    %825 = vmatprep.subr.mxu0 0.0
    %826 = vmatpush2.msra.mxu0 0.0
    %827 = vmatprep.mubr.f32.mxu0 0.0
    %828 = vmatmul.mubr.f32.gmra.mxu0 %v761
    %v829 = vpop.f32.mrf.mxu0
    %v830 = vadd.f32 0.0, %v829
    %v831 = vpop.f32.mrf.mxu0
    %832 = vdwg.mxu0
    %v833 = vadd.f32 %v760, %v830
    %v834 = vxor.u32 %v833, 2147483648
    %v835 = vmul.f32 %v834, 1.442695
    %v836 = vpow.pop %v835
    %v837 = vadd.f32 %v836, 1.0
    %v838 = vrcp.pop %v837
    %v839 = vmul.f32 1.0, %v838
    %v840 = vtanh.pop %v833
    %v841 = vmul.f32 %v839, %v748
    %843 = vrot.lane.b32.xlu0 %v840, 64
    %v844 = vpop.permute.xlu0 %843
    %v846 = vmul.f32 %v839, %v844
    %848 = vrot.lane.b32.xlu0 %v846, 32
    %v849 = vpop.permute.xlu0 %848
    %v851 = vadd.f32 %v841, %v849
    %v852 = vtanh.pop %v851
    %854 = vrot.lane.b32.xlu0 %v852, 64
    %v855 = vpop.permute.xlu0 %854
    %v857 = vmul.f32 %v839, %v855
    %859 = vrot.lane.b32.xlu0 %v857, 32
    %v860 = vpop.permute.xlu0 %859
    %862 = vst.msk [vmem:[#allocation4 + $0xa] sm:$0x3] %vm346, %v860
    %v863 = vld [vmem:[#allocation2 + $0xc] sm:$0x3]
    %v864 = vsel %vm59, %v860, 0
    %866 = vmatprep.subr.mxu0 0.0
    %867 = vmatpush1.msra.mxu0 0.0
    %868 = vmatprep.subr.mxu0 0.0
    %869 = vmatpush1.msra.mxu0 0.0
    %870 = vmatprep.subr.mxu0 0.0
    %871 = vmatpush1.msra.mxu0 0.0
    %872 = vmatprep.subr.mxu0 0.0
    %873 = vmatpush1.msra.mxu0 0.0
    %874 = vmatprep.subr.mxu0 0.0
    %875 = vmatpush1.msra.mxu0 0.0
    %876 = vmatprep.subr.mxu0 0.0
    %877 = vmatpush1.msra.mxu0 0.0
    %878 = vmatprep.subr.mxu0 0.0
    %879 = vmatpush1.msra.mxu0 0.0
    %880 = vmatprep.subr.mxu0 0.0
    %881 = vmatpush1.msra.mxu0 0.0
    %882 = vmatprep.subr.mxu0 0.0
    %883 = vmatpush1.msra.mxu0 0.0
    %884 = vmatprep.subr.mxu0 0.0
    %885 = vmatpush1.msra.mxu0 0.0
    %886 = vmatprep.subr.mxu0 0.0
    %887 = vmatpush1.msra.mxu0 0.0
    %888 = vmatprep.subr.mxu0 0.0
    %889 = vmatpush1.msra.mxu0 0.0
    %890 = vmatprep.subr.mxu0 0.0
    %891 = vmatpush1.msra.mxu0 %v242
    %892 = vmatprep.subr.mxu0 0.0
    %893 = vmatpush1.msra.mxu0 %v241
    %894 = vmatprep.subr.mxu0 0.0
    %895 = vmatpush1.msra.mxu0 %v240
    %896 = vmatprep.subr.mxu0 0.0
    %897 = vmatpush1.msra.mxu0 %v239
    %898 = vmatprep.subr.mxu0 0.0
    %899 = vmatpush2.msra.mxu0 0.0
    %900 = vmatprep.subr.mxu0 0.0
    %901 = vmatpush2.msra.mxu0 0.0
    %902 = vmatprep.subr.mxu0 0.0
    %903 = vmatpush2.msra.mxu0 0.0
    %904 = vmatprep.subr.mxu0 0.0
    %905 = vmatpush2.msra.mxu0 0.0
    %906 = vmatprep.subr.mxu0 0.0
    %907 = vmatpush2.msra.mxu0 0.0
    %908 = vmatprep.subr.mxu0 0.0
    %909 = vmatpush2.msra.mxu0 0.0
    %910 = vmatprep.subr.mxu0 0.0
    %911 = vmatpush2.msra.mxu0 0.0
    %912 = vmatprep.subr.mxu0 0.0
    %913 = vmatpush2.msra.mxu0 0.0
    %914 = vmatprep.subr.mxu0 0.0
    %915 = vmatpush2.msra.mxu0 0.0
    %916 = vmatprep.subr.mxu0 0.0
    %917 = vmatpush2.msra.mxu0 0.0
    %918 = vmatprep.subr.mxu0 0.0
    %919 = vmatpush2.msra.mxu0 0.0
    %920 = vmatprep.subr.mxu0 0.0
    %921 = vmatpush2.msra.mxu0 0.0
    %922 = vmatprep.subr.mxu0 0.0
    %923 = vmatpush2.msra.mxu0 0.0
    %924 = vmatprep.subr.mxu0 0.0
    %925 = vmatpush2.msra.mxu0 0.0
    %926 = vmatprep.subr.mxu0 0.0
    %927 = vmatpush2.msra.mxu0 0.0
    %928 = vmatprep.subr.mxu0 0.0
    %929 = vmatpush2.msra.mxu0 0.0
    %930 = vmatprep.mubr.f32.mxu0 0.0
    %931 = vmatmul.mubr.f32.gmra.mxu0 %v864
    %v932 = vpop.f32.mrf.mxu0
    %v933 = vadd.f32 0.0, %v932
    %v934 = vpop.f32.mrf.mxu0
    %935 = vdwg.mxu0
    %v936 = vadd.f32 %v863, %v933
    %v937 = vxor.u32 %v936, 2147483648
    %v938 = vmul.f32 %v937, 1.442695
    %v939 = vpow.pop %v938
    %v940 = vadd.f32 %v939, 1.0
    %v941 = vrcp.pop %v940
    %v942 = vmul.f32 1.0, %v941
    %v943 = vtanh.pop %v936
    %v944 = vmul.f32 %v942, %v851
    %946 = vrot.lane.b32.xlu0 %v943, 64
    %v947 = vpop.permute.xlu0 %946
    %v949 = vmul.f32 %v942, %v947
    %951 = vrot.lane.b32.xlu0 %v949, 32
    %v952 = vpop.permute.xlu0 %951
    %v954 = vadd.f32 %v944, %v952
    %v955 = vtanh.pop %v954
    %957 = vrot.lane.b32.xlu0 %v955, 64
    %v958 = vpop.permute.xlu0 %957
    %v960 = vmul.f32 %v942, %v958
    %962 = vrot.lane.b32.xlu0 %v960, 32
    %v963 = vpop.permute.xlu0 %962
    %965 = vst.msk [vmem:[#allocation4 + $0xc] sm:$0x3] %vm346, %v963
    %v966 = vld [vmem:[#allocation2 + $0xe] sm:$0x3]
    %v967 = vsel %vm59, %v963, 0
    %969 = vmatprep.subr.mxu0 0.0
    %970 = vmatpush1.msra.mxu0 0.0
    %971 = vmatprep.subr.mxu0 0.0
    %972 = vmatpush1.msra.mxu0 0.0
    %973 = vmatprep.subr.mxu0 0.0
    %974 = vmatpush1.msra.mxu0 0.0
    %975 = vmatprep.subr.mxu0 0.0
    %976 = vmatpush1.msra.mxu0 0.0
    %977 = vmatprep.subr.mxu0 0.0
    %978 = vmatpush1.msra.mxu0 0.0
    %979 = vmatprep.subr.mxu0 0.0
    %980 = vmatpush1.msra.mxu0 0.0
    %981 = vmatprep.subr.mxu0 0.0
    %982 = vmatpush1.msra.mxu0 0.0
    %983 = vmatprep.subr.mxu0 0.0
    %984 = vmatpush1.msra.mxu0 0.0
    %985 = vmatprep.subr.mxu0 0.0
    %986 = vmatpush1.msra.mxu0 0.0
    %987 = vmatprep.subr.mxu0 0.0
    %988 = vmatpush1.msra.mxu0 0.0
    %989 = vmatprep.subr.mxu0 0.0
    %990 = vmatpush1.msra.mxu0 0.0
    %991 = vmatprep.subr.mxu0 0.0
    %992 = vmatpush1.msra.mxu0 0.0
    %993 = vmatprep.subr.mxu0 0.0
    %994 = vmatpush1.msra.mxu0 %v242
    %995 = vmatprep.subr.mxu0 0.0
    %996 = vmatpush1.msra.mxu0 %v241
    %997 = vmatprep.subr.mxu0 0.0
    %998 = vmatpush1.msra.mxu0 %v240
    %999 = vmatprep.subr.mxu0 0.0
    %1000 = vmatpush1.msra.mxu0 %v239
    %1001 = vmatprep.subr.mxu0 0.0
    %1002 = vmatpush2.msra.mxu0 0.0
    %1003 = vmatprep.subr.mxu0 0.0
    %1004 = vmatpush2.msra.mxu0 0.0
    %1005 = vmatprep.subr.mxu0 0.0
    %1006 = vmatpush2.msra.mxu0 0.0
    %1007 = vmatprep.subr.mxu0 0.0
    %1008 = vmatpush2.msra.mxu0 0.0
    %1009 = vmatprep.subr.mxu0 0.0
    %1010 = vmatpush2.msra.mxu0 0.0
    %1011 = vmatprep.subr.mxu0 0.0
    %1012 = vmatpush2.msra.mxu0 0.0
    %1013 = vmatprep.subr.mxu0 0.0
    %1014 = vmatpush2.msra.mxu0 0.0
    %1015 = vmatprep.subr.mxu0 0.0
    %1016 = vmatpush2.msra.mxu0 0.0
    %1017 = vmatprep.subr.mxu0 0.0
    %1018 = vmatpush2.msra.mxu0 0.0
    %1019 = vmatprep.subr.mxu0 0.0
    %1020 = vmatpush2.msra.mxu0 0.0
    %1021 = vmatprep.subr.mxu0 0.0
    %1022 = vmatpush2.msra.mxu0 0.0
    %1023 = vmatprep.subr.mxu0 0.0
    %1024 = vmatpush2.msra.mxu0 0.0
    %1025 = vmatprep.subr.mxu0 0.0
    %1026 = vmatpush2.msra.mxu0 0.0
    %1027 = vmatprep.subr.mxu0 0.0
    %1028 = vmatpush2.msra.mxu0 0.0
    %1029 = vmatprep.subr.mxu0 0.0
    %1030 = vmatpush2.msra.mxu0 0.0
    %1031 = vmatprep.subr.mxu0 0.0
    %1032 = vmatpush2.msra.mxu0 0.0
    %1033 = vmatprep.mubr.f32.mxu0 0.0
    %1034 = vmatmul.mubr.f32.gmra.mxu0 %v967
    %v1035 = vpop.f32.mrf.mxu0
    %v1036 = vadd.f32 0.0, %v1035
    %v1037 = vpop.f32.mrf.mxu0
    %1038 = vdwg.mxu0
    %v1039 = vadd.f32 %v966, %v1036
    %v1040 = vxor.u32 %v1039, 2147483648
    %v1041 = vmul.f32 %v1040, 1.442695
    %v1042 = vpow.pop %v1041
    %v1043 = vadd.f32 %v1042, 1.0
    %v1044 = vrcp.pop %v1043
    %v1045 = vmul.f32 1.0, %v1044
    %v1046 = vtanh.pop %v1039
    %v1047 = vmul.f32 %v1045, %v954
    %1049 = vrot.lane.b32.xlu0 %v1046, 64
    %v1050 = vpop.permute.xlu0 %1049
    %v1052 = vmul.f32 %v1045, %v1050
    %1054 = vrot.lane.b32.xlu0 %v1052, 32
    %v1055 = vpop.permute.xlu0 %1054
    %v1057 = vadd.f32 %v1047, %v1055
    %v1058 = vtanh.pop %v1057
    %1060 = vrot.lane.b32.xlu0 %v1058, 64
    %v1061 = vpop.permute.xlu0 %1060
    %v1063 = vmul.f32 %v1045, %v1061
    %1065 = vrot.lane.b32.xlu0 %v1063, 32
    %v1066 = vpop.permute.xlu0 %1065
    %1068 = vst.msk [vmem:[#allocation4 + $0xe] sm:$0x3] %vm346, %v1066
    %v1069 = vld [vmem:[#allocation4] sm:$0xff]
    %v1070 = vld [vmem:[#allocation4 + $0x8] sm:$0xff]
    %v1071 = vld [vmem:[%s6] sm:$0xff]
    %v1072 = vld [vmem:[%s6 + $0x8] sm:$0xff]
    %v1073 = vld [vmem:[%s6 + $0x10] sm:$0xff]
    %v1074 = vld [vmem:[%s6 + $0x18] sm:$0xff]
    %v1075 = vld [vmem:[%s8] sm:$0xff]
    %v1076 = vld [vmem:[%s8 + $0x8] sm:$0xff]
    %v1077 = vld [vmem:[%s8 + $0x10] sm:$0xff]
    %v1078 = vld [vmem:[%s8 + $0x18] sm:$0xff]
    %v1079 = vld [vmem:[%s9] sm:$0xff]
    %v1080 = vld [vmem:[%s9 + $0x8] sm:$0xff]
    %v1081 = vld [vmem:[%s9 + $0x10] sm:$0xff]
    %v1082 = vld [vmem:[%s9 + $0x18] sm:$0xff]
    %v1083 = vld [vmem:[%s10] sm:$0xff]
    %v1084 = vld [vmem:[%s10 + $0x8] sm:$0xff]
    %v1085 = vld [vmem:[%s10 + $0x10] sm:$0xff]
    %v1086 = vld [vmem:[%s10 + $0x18] sm:$0xff]
    %v1087 = vld [vmem:[%s11] sm:$0x1]
    %v1088 = vlaneseq
    %v1089 = vand.u32 %v1088, 127
    %v1090 = vlaneseq
    %v1091 = vshrl.u32 %v1090, 7
    %vm1092 = vcmp.lt.s32.totalorder %v1089, 0
    %v1093 = vsub.s32 0, %v1089
    %v1094 = vsel %vm1092, %v1093, %v1089
    %v1095 = vshrl.u32 %v1094, 1
    %v1096 = vand.u32 %v1094, 1
    %v1097 = vsub.s32 0, %v1096
    %v1098 = vsel %vm1092, %v1097, %v1096
    %vm1099 = vcmp.ne.s32.totalorder %v1098, 0
    %vm1100 = vcmp.lt.s32.totalorder %v1098, 0
    %vm1101 = vmand %vm1100, %vm1099
    %v1102 = vadd.s32 %v1098, 2
    %v1103 = vsel %vm1101, %v1102, %v1098
    %vm1104 = vcmp.eq.s32.totalorder %v1103, %v1091
    %v1105 = vld [vmem:[#allocation3] sm:$0x3]
    %v1106 = vsel %vm59, %v1066, 0
    %1108 = vmatprep.subr.mxu0 0.0
    %1109 = vmatpush1.msra.mxu0 0.0
    %1110 = vmatprep.subr.mxu0 0.0
    %1111 = vmatpush1.msra.mxu0 0.0
    %1112 = vmatprep.subr.mxu0 0.0
    %1113 = vmatpush1.msra.mxu0 0.0
    %1114 = vmatprep.subr.mxu0 0.0
    %1115 = vmatpush1.msra.mxu0 0.0
    %1116 = vmatprep.subr.mxu0 0.0
    %1117 = vmatpush1.msra.mxu0 0.0
    %1118 = vmatprep.subr.mxu0 0.0
    %1119 = vmatpush1.msra.mxu0 0.0
    %1120 = vmatprep.subr.mxu0 0.0
    %1121 = vmatpush1.msra.mxu0 0.0
    %1122 = vmatprep.subr.mxu0 0.0
    %1123 = vmatpush1.msra.mxu0 0.0
    %1124 = vmatprep.subr.mxu0 0.0
    %1125 = vmatpush1.msra.mxu0 0.0
    %1126 = vmatprep.subr.mxu0 0.0
    %1127 = vmatpush1.msra.mxu0 0.0
    %1128 = vmatprep.subr.mxu0 0.0
    %1129 = vmatpush1.msra.mxu0 0.0
    %1130 = vmatprep.subr.mxu0 0.0
    %1131 = vmatpush1.msra.mxu0 0.0
    %1132 = vmatprep.subr.mxu0 0.0
    %1133 = vmatpush1.msra.mxu0 %v1074
    %1134 = vmatprep.subr.mxu0 0.0
    %1135 = vmatpush1.msra.mxu0 %v1073
    %1136 = vmatprep.subr.mxu0 0.0
    %1137 = vmatpush1.msra.mxu0 %v1072
    %1138 = vmatprep.subr.mxu0 0.0
    %1139 = vmatpush1.msra.mxu0 %v1071
    %1140 = vmatprep.subr.mxu0 0.0
    %1141 = vmatpush2.msra.mxu0 0.0
    %1142 = vmatprep.subr.mxu0 0.0
    %1143 = vmatpush2.msra.mxu0 0.0
    %1144 = vmatprep.subr.mxu0 0.0
    %1145 = vmatpush2.msra.mxu0 0.0
    %1146 = vmatprep.subr.mxu0 0.0
    %1147 = vmatpush2.msra.mxu0 0.0
    %1148 = vmatprep.subr.mxu0 0.0
    %1149 = vmatpush2.msra.mxu0 0.0
    %1150 = vmatprep.subr.mxu0 0.0
    %1151 = vmatpush2.msra.mxu0 0.0
    %1152 = vmatprep.subr.mxu0 0.0
    %1153 = vmatpush2.msra.mxu0 0.0
    %1154 = vmatprep.subr.mxu0 0.0
    %1155 = vmatpush2.msra.mxu0 0.0
    %1156 = vmatprep.subr.mxu0 0.0
    %1157 = vmatpush2.msra.mxu0 0.0
    %1158 = vmatprep.subr.mxu0 0.0
    %1159 = vmatpush2.msra.mxu0 0.0
    %1160 = vmatprep.subr.mxu0 0.0
    %1161 = vmatpush2.msra.mxu0 0.0
    %1162 = vmatprep.subr.mxu0 0.0
    %1163 = vmatpush2.msra.mxu0 0.0
    %1164 = vmatprep.subr.mxu0 0.0
    %1165 = vmatpush2.msra.mxu0 0.0
    %1166 = vmatprep.subr.mxu0 0.0
    %1167 = vmatpush2.msra.mxu0 0.0
    %1168 = vmatprep.subr.mxu0 0.0
    %1169 = vmatpush2.msra.mxu0 0.0
    %1170 = vmatprep.subr.mxu0 0.0
    %1171 = vmatpush2.msra.mxu0 0.0
    %1172 = vmatprep.mubr.f32.mxu0 0.0
    %1173 = vmatmul.mubr.f32.gmra.mxu0 %v1106
    %v1174 = vpop.f32.mrf.mxu0
    %v1175 = vadd.f32 0.0, %v1174
    %v1176 = vpop.f32.mrf.mxu0
    %1177 = vdwg.mxu0
    %v1178 = vadd.f32 %v1105, %v1175
    %v1179 = vxor.u32 %v1178, 2147483648
    %v1180 = vmul.f32 %v1179, 1.442695
    %v1181 = vpow.pop %v1180
    %v1182 = vadd.f32 %v1181, 1.0
    %v1183 = vrcp.pop %v1182
    %v1184 = vmul.f32 1.0, %v1183
    %v1185 = vtanh.pop %v1178
    %v1186 = vmul.f32 %v1184, %v1057
    %1188 = vrot.lane.b32.xlu0 %v1185, 64
    %v1189 = vpop.permute.xlu0 %1188
    %v1191 = vmul.f32 %v1184, %v1189
    %1193 = vrot.lane.b32.xlu0 %v1191, 32
    %v1194 = vpop.permute.xlu0 %1193
    %v1196 = vadd.f32 %v1186, %v1194
    %v1197 = vtanh.pop %v1196
    %1199 = vrot.lane.b32.xlu0 %v1197, 64
    %v1200 = vpop.permute.xlu0 %1199
    %v1202 = vmul.f32 %v1184, %v1200
    %1204 = vrot.lane.b32.xlu0 %v1202, 32
    %v1205 = vpop.permute.xlu0 %1204
    %v1206 = vsel %vm59, %v1205, 0
    %v1209 = vsel %vm59, %v1069, 0
    %v1212 = vsel %vm59, %v1070, 0
    %1214 = vmatprep.subr.mxu0 0.0
    %1215 = vmatpush1.xpose.msra.mxu0 0.0
    %1216 = vmatprep.subr.mxu0 0.0
    %1217 = vmatpush1.xpose.msra.mxu0 0.0
    %1218 = vmatprep.subr.mxu0 0.0
    %1219 = vmatpush1.xpose.msra.mxu0 0.0
    %1220 = vmatprep.subr.mxu0 0.0
    %1221 = vmatpush1.xpose.msra.mxu0 0.0
    %1222 = vmatprep.subr.mxu0 0.0
    %1223 = vmatpush1.xpose.msra.mxu0 0.0
    %1224 = vmatprep.subr.mxu0 0.0
    %1225 = vmatpush1.xpose.msra.mxu0 0.0
    %1226 = vmatprep.subr.mxu0 0.0
    %1227 = vmatpush1.xpose.msra.mxu0 0.0
    %1228 = vmatprep.subr.mxu0 0.0
    %1229 = vmatpush1.xpose.msra.mxu0 0.0
    %1230 = vmatprep.subr.mxu0 0.0
    %1231 = vmatpush1.xpose.msra.mxu0 0.0
    %1232 = vmatprep.subr.mxu0 0.0
    %1233 = vmatpush1.xpose.msra.mxu0 0.0
    %1234 = vmatprep.subr.mxu0 0.0
    %1235 = vmatpush1.xpose.msra.mxu0 0.0
    %1236 = vmatprep.subr.mxu0 0.0
    %1237 = vmatpush1.xpose.msra.mxu0 0.0
    %1238 = vmatprep.subr.mxu0 0.0
    %1239 = vmatpush1.xpose.msra.mxu0 0.0
    %1240 = vmatprep.subr.mxu0 0.0
    %1241 = vmatpush1.xpose.msra.mxu0 0.0
    %1242 = vmatprep.subr.mxu0 0.0
    %1243 = vmatpush1.xpose.msra.mxu0 %v1212
    %1244 = vmatprep.subr.mxu0 0.0
    %1245 = vmatpush1.xpose.msra.mxu0 %v1209
    %1246 = vmatprep.subr.mxu0 0.0
    %1247 = vmatpush2.xpose.msra.mxu0 0.0
    %1248 = vmatprep.subr.mxu0 0.0
    %1249 = vmatpush2.xpose.msra.mxu0 0.0
    %1250 = vmatprep.subr.mxu0 0.0
    %1251 = vmatpush2.xpose.msra.mxu0 0.0
    %1252 = vmatprep.subr.mxu0 0.0
    %1253 = vmatpush2.xpose.msra.mxu0 0.0
    %1254 = vmatprep.subr.mxu0 0.0
    %1255 = vmatpush2.xpose.msra.mxu0 0.0
    %1256 = vmatprep.subr.mxu0 0.0
    %1257 = vmatpush2.xpose.msra.mxu0 0.0
    %1258 = vmatprep.subr.mxu0 0.0
    %1259 = vmatpush2.xpose.msra.mxu0 0.0
    %1260 = vmatprep.subr.mxu0 0.0
    %1261 = vmatpush2.xpose.msra.mxu0 0.0
    %1262 = vmatprep.subr.mxu0 0.0
    %1263 = vmatpush2.xpose.msra.mxu0 0.0
    %1264 = vmatprep.subr.mxu0 0.0
    %1265 = vmatpush2.xpose.msra.mxu0 0.0
    %1266 = vmatprep.subr.mxu0 0.0
    %1267 = vmatpush2.xpose.msra.mxu0 0.0
    %1268 = vmatprep.subr.mxu0 0.0
    %1269 = vmatpush2.xpose.msra.mxu0 0.0
    %1270 = vmatprep.subr.mxu0 0.0
    %1271 = vmatpush2.xpose.msra.mxu0 0.0
    %1272 = vmatprep.subr.mxu0 0.0
    %1273 = vmatpush2.xpose.msra.mxu0 0.0
    %1274 = vmatprep.subr.mxu0 0.0
    %1275 = vmatpush2.xpose.msra.mxu0 0.0
    %1276 = vmatprep.subr.mxu0 0.0
    %1277 = vmatpush2.xpose.msra.mxu0 0.0
    %1278 = vmatprep.mubr.f32.mxu0 0.0
    %1279 = vmatmul.mubr.f32.gmra.mxu0 %v1206
    %v1280 = vpop.f32.mrf.mxu0
    %v1281 = vadd.f32 0.0, %v1280
    %v1282 = vpop.f32.mrf.mxu0
    %1283 = vdwg.mxu0
    %v1284 = vsel %vm1104, %v1281, -1e+30
    %vm1285 = vcmask 123904
    %v1286 = vsel %vm1285, %v1284, -inf
    %1287 = vmax.xlane.f32.xlu0 %v1286
    %v1288 = vpop.xlane.xlu0 %1287
    %v1289 = vsub.f32 %v1284, %v1288
    %v1290 = vmul.f32 %v1289, 1.442695
    %v1291 = vpow.pop %v1290
    %v1292 = vsel %vm1285, %v1291, 0.0
    %1293 = vadd.xlane.f32.xlu0 %v1292
    %v1294 = vpop.xlane.xlu0 %1293
    %v1295 = vrcp.pop %v1294
    %v1296 = vmul.f32 %v1291, %v1295
    %vm1297 = vcmask 130048
    %v1299 = vsel %vm1297, %v1296, 0
    %1301 = vmatprep.subr.mxu0 0.0
    %1302 = vmatpush1.msra.mxu0 0.0
    %1303 = vmatprep.subr.mxu0 0.0
    %1304 = vmatpush1.msra.mxu0 0.0
    %1305 = vmatprep.subr.mxu0 0.0
    %1306 = vmatpush1.msra.mxu0 0.0
    %1307 = vmatprep.subr.mxu0 0.0
    %1308 = vmatpush1.msra.mxu0 0.0
    %1309 = vmatprep.subr.mxu0 0.0
    %1310 = vmatpush1.msra.mxu0 0.0
    %1311 = vmatprep.subr.mxu0 0.0
    %1312 = vmatpush1.msra.mxu0 0.0
    %1313 = vmatprep.subr.mxu0 0.0
    %1314 = vmatpush1.msra.mxu0 0.0
    %1315 = vmatprep.subr.mxu0 0.0
    %1316 = vmatpush1.msra.mxu0 0.0
    %1317 = vmatprep.subr.mxu0 0.0
    %1318 = vmatpush1.msra.mxu0 0.0
    %1319 = vmatprep.subr.mxu0 0.0
    %1320 = vmatpush1.msra.mxu0 0.0
    %1321 = vmatprep.subr.mxu0 0.0
    %1322 = vmatpush1.msra.mxu0 0.0
    %1323 = vmatprep.subr.mxu0 0.0
    %1324 = vmatpush1.msra.mxu0 0.0
    %1325 = vmatprep.subr.mxu0 0.0
    %1326 = vmatpush1.msra.mxu0 0.0
    %1327 = vmatprep.subr.mxu0 0.0
    %1328 = vmatpush1.msra.mxu0 0.0
    %1329 = vmatprep.subr.mxu0 0.0
    %1330 = vmatpush1.msra.mxu0 %v1070
    %1331 = vmatprep.subr.mxu0 0.0
    %1332 = vmatpush1.msra.mxu0 %v1069
    %1333 = vmatprep.subr.mxu0 0.0
    %1334 = vmatpush2.msra.mxu0 0.0
    %1335 = vmatprep.subr.mxu0 0.0
    %1336 = vmatpush2.msra.mxu0 0.0
    %1337 = vmatprep.subr.mxu0 0.0
    %1338 = vmatpush2.msra.mxu0 0.0
    %1339 = vmatprep.subr.mxu0 0.0
    %1340 = vmatpush2.msra.mxu0 0.0
    %1341 = vmatprep.subr.mxu0 0.0
    %1342 = vmatpush2.msra.mxu0 0.0
    %1343 = vmatprep.subr.mxu0 0.0
    %1344 = vmatpush2.msra.mxu0 0.0
    %1345 = vmatprep.subr.mxu0 0.0
    %1346 = vmatpush2.msra.mxu0 0.0
    %1347 = vmatprep.subr.mxu0 0.0
    %1348 = vmatpush2.msra.mxu0 0.0
    %1349 = vmatprep.subr.mxu0 0.0
    %1350 = vmatpush2.msra.mxu0 0.0
    %1351 = vmatprep.subr.mxu0 0.0
    %1352 = vmatpush2.msra.mxu0 0.0
    %1353 = vmatprep.subr.mxu0 0.0
    %1354 = vmatpush2.msra.mxu0 0.0
    %1355 = vmatprep.subr.mxu0 0.0
    %1356 = vmatpush2.msra.mxu0 0.0
    %1357 = vmatprep.subr.mxu0 0.0
    %1358 = vmatpush2.msra.mxu0 0.0
    %1359 = vmatprep.subr.mxu0 0.0
    %1360 = vmatpush2.msra.mxu0 0.0
    %1361 = vmatprep.subr.mxu0 0.0
    %1362 = vmatpush2.msra.mxu0 0.0
    %1363 = vmatprep.subr.mxu0 0.0
    %1364 = vmatpush2.msra.mxu0 0.0
    %1365 = vmatprep.mubr.f32.mxu0 0.0
    %1366 = vmatmul.mubr.f32.gmra.mxu0 %v1299
    %v1367 = vpop.f32.mrf.mxu0
    %v1368 = vadd.f32 0.0, %v1367
    %v1369 = vpop.f32.mrf.mxu0
    %1370 = vdwg.mxu0
    %v1372 = vsel %vm59, %v1368, 0
    %1374 = vmatprep.subr.mxu0 0.0
    %1375 = vmatpush1.msra.mxu0 0.0
    %1376 = vmatprep.subr.mxu0 0.0
    %1377 = vmatpush1.msra.mxu0 0.0
    %1378 = vmatprep.subr.mxu0 0.0
    %1379 = vmatpush1.msra.mxu0 0.0
    %1380 = vmatprep.subr.mxu0 0.0
    %1381 = vmatpush1.msra.mxu0 0.0
    %1382 = vmatprep.subr.mxu0 0.0
    %1383 = vmatpush1.msra.mxu0 0.0
    %1384 = vmatprep.subr.mxu0 0.0
    %1385 = vmatpush1.msra.mxu0 0.0
    %1386 = vmatprep.subr.mxu0 0.0
    %1387 = vmatpush1.msra.mxu0 0.0
    %1388 = vmatprep.subr.mxu0 0.0
    %1389 = vmatpush1.msra.mxu0 0.0
    %1390 = vmatprep.subr.mxu0 0.0
    %1391 = vmatpush1.msra.mxu0 0.0
    %1392 = vmatprep.subr.mxu0 0.0
    %1393 = vmatpush1.msra.mxu0 0.0
    %1394 = vmatprep.subr.mxu0 0.0
    %1395 = vmatpush1.msra.mxu0 0.0
    %1396 = vmatprep.subr.mxu0 0.0
    %1397 = vmatpush1.msra.mxu0 0.0
    %1398 = vmatprep.subr.mxu0 0.0
    %1399 = vmatpush1.msra.mxu0 %v1082
    %1400 = vmatprep.subr.mxu0 0.0
    %1401 = vmatpush1.msra.mxu0 %v1081
    %1402 = vmatprep.subr.mxu0 0.0
    %1403 = vmatpush1.msra.mxu0 %v1080
    %1404 = vmatprep.subr.mxu0 0.0
    %1405 = vmatpush1.msra.mxu0 %v1079
    %1406 = vmatprep.subr.mxu0 0.0
    %1407 = vmatpush2.msra.mxu0 0.0
    %1408 = vmatprep.subr.mxu0 0.0
    %1409 = vmatpush2.msra.mxu0 0.0
    %1410 = vmatprep.subr.mxu0 0.0
    %1411 = vmatpush2.msra.mxu0 0.0
    %1412 = vmatprep.subr.mxu0 0.0
    %1413 = vmatpush2.msra.mxu0 0.0
    %1414 = vmatprep.subr.mxu0 0.0
    %1415 = vmatpush2.msra.mxu0 0.0
    %1416 = vmatprep.subr.mxu0 0.0
    %1417 = vmatpush2.msra.mxu0 0.0
    %1418 = vmatprep.subr.mxu0 0.0
    %1419 = vmatpush2.msra.mxu0 0.0
    %1420 = vmatprep.subr.mxu0 0.0
    %1421 = vmatpush2.msra.mxu0 0.0
    %1422 = vmatprep.subr.mxu0 0.0
    %1423 = vmatpush2.msra.mxu0 0.0
    %1424 = vmatprep.subr.mxu0 0.0
    %1425 = vmatpush2.msra.mxu0 0.0
    %1426 = vmatprep.subr.mxu0 0.0
    %1427 = vmatpush2.msra.mxu0 0.0
    %1428 = vmatprep.subr.mxu0 0.0
    %1429 = vmatpush2.msra.mxu0 0.0
    %1430 = vmatprep.subr.mxu0 0.0
    %1431 = vmatpush2.msra.mxu0 0.0
    %1432 = vmatprep.subr.mxu0 0.0
    %1433 = vmatpush2.msra.mxu0 0.0
    %1434 = vmatprep.subr.mxu0 0.0
    %1435 = vmatpush2.msra.mxu0 0.0
    %1436 = vmatprep.subr.mxu0 0.0
    %1437 = vmatpush2.msra.mxu0 0.0
    %1438 = vmatprep.mubr.f32.mxu0 0.0
    %1439 = vmatmul.mubr.f32.gmra.mxu0 %v1372
    %v1440 = vpop.f32.mrf.mxu0
    %v1441 = vadd.f32 0.0, %v1440
    %v1442 = vpop.f32.mrf.mxu0
    %1443 = vdwg.mxu0
    %1444 = vmatprep.subr.mxu0 0.0
    %1445 = vmatpush1.msra.mxu0 0.0
    %1446 = vmatprep.subr.mxu0 0.0
    %1447 = vmatpush1.msra.mxu0 0.0
    %1448 = vmatprep.subr.mxu0 0.0
    %1449 = vmatpush1.msra.mxu0 0.0
    %1450 = vmatprep.subr.mxu0 0.0
    %1451 = vmatpush1.msra.mxu0 0.0
    %1452 = vmatprep.subr.mxu0 0.0
    %1453 = vmatpush1.msra.mxu0 0.0
    %1454 = vmatprep.subr.mxu0 0.0
    %1455 = vmatpush1.msra.mxu0 0.0
    %1456 = vmatprep.subr.mxu0 0.0
    %1457 = vmatpush1.msra.mxu0 0.0
    %1458 = vmatprep.subr.mxu0 0.0
    %1459 = vmatpush1.msra.mxu0 0.0
    %1460 = vmatprep.subr.mxu0 0.0
    %1461 = vmatpush1.msra.mxu0 0.0
    %1462 = vmatprep.subr.mxu0 0.0
    %1463 = vmatpush1.msra.mxu0 0.0
    %1464 = vmatprep.subr.mxu0 0.0
    %1465 = vmatpush1.msra.mxu0 0.0
    %1466 = vmatprep.subr.mxu0 0.0
    %1467 = vmatpush1.msra.mxu0 0.0
    %1468 = vmatprep.subr.mxu0 0.0
    %1469 = vmatpush1.msra.mxu0 %v1078
    %1470 = vmatprep.subr.mxu0 0.0
    %1471 = vmatpush1.msra.mxu0 %v1077
    %1472 = vmatprep.subr.mxu0 0.0
    %1473 = vmatpush1.msra.mxu0 %v1076
    %1474 = vmatprep.subr.mxu0 0.0
    %1475 = vmatpush1.msra.mxu0 %v1075
    %1476 = vmatprep.subr.mxu0 0.0
    %1477 = vmatpush2.msra.mxu0 0.0
    %1478 = vmatprep.subr.mxu0 0.0
    %1479 = vmatpush2.msra.mxu0 0.0
    %1480 = vmatprep.subr.mxu0 0.0
    %1481 = vmatpush2.msra.mxu0 0.0
    %1482 = vmatprep.subr.mxu0 0.0
    %1483 = vmatpush2.msra.mxu0 0.0
    %1484 = vmatprep.subr.mxu0 0.0
    %1485 = vmatpush2.msra.mxu0 0.0
    %1486 = vmatprep.subr.mxu0 0.0
    %1487 = vmatpush2.msra.mxu0 0.0
    %1488 = vmatprep.subr.mxu0 0.0
    %1489 = vmatpush2.msra.mxu0 0.0
    %1490 = vmatprep.subr.mxu0 0.0
    %1491 = vmatpush2.msra.mxu0 0.0
    %1492 = vmatprep.subr.mxu0 0.0
    %1493 = vmatpush2.msra.mxu0 0.0
    %1494 = vmatprep.subr.mxu0 0.0
    %1495 = vmatpush2.msra.mxu0 0.0
    %1496 = vmatprep.subr.mxu0 0.0
    %1497 = vmatpush2.msra.mxu0 0.0
    %1498 = vmatprep.subr.mxu0 0.0
    %1499 = vmatpush2.msra.mxu0 0.0
    %1500 = vmatprep.subr.mxu0 0.0
    %1501 = vmatpush2.msra.mxu0 0.0
    %1502 = vmatprep.subr.mxu0 0.0
    %1503 = vmatpush2.msra.mxu0 0.0
    %1504 = vmatprep.subr.mxu0 0.0
    %1505 = vmatpush2.msra.mxu0 0.0
    %1506 = vmatprep.subr.mxu0 0.0
    %1507 = vmatpush2.msra.mxu0 0.0
    %1508 = vmatprep.mubr.f32.mxu0 0.0
    %1509 = vmatmul.mubr.f32.gmra.mxu0 %v1206
    %v1510 = vpop.f32.mrf.mxu0
    %v1511 = vadd.f32 %v1441, %v1510
    %v1512 = vpop.f32.mrf.mxu0
    %1513 = vdwg.mxu0
    %v1514 = vtanh.pop %v1511
    %v1516 = vlaneseq
    %v1517 = vshrl.u32 %v1516, 7
    %v1518 = vsub.s32 0, %v1517
    %v1519 = vrot.slane %v1087, %v1518
    %v1522 = vsel %vm59, %v1514, 0
    %1524 = vmatprep.subr.mxu0 0.0
    %1525 = vmatpush1.msra.mxu0 0.0
    %1526 = vmatprep.subr.mxu0 0.0
    %1527 = vmatpush1.msra.mxu0 0.0
    %1528 = vmatprep.subr.mxu0 0.0
    %1529 = vmatpush1.msra.mxu0 0.0
    %1530 = vmatprep.subr.mxu0 0.0
    %1531 = vmatpush1.msra.mxu0 0.0
    %1532 = vmatprep.subr.mxu0 0.0
    %1533 = vmatpush1.msra.mxu0 0.0
    %1534 = vmatprep.subr.mxu0 0.0
    %1535 = vmatpush1.msra.mxu0 0.0
    %1536 = vmatprep.subr.mxu0 0.0
    %1537 = vmatpush1.msra.mxu0 0.0
    %1538 = vmatprep.subr.mxu0 0.0
    %1539 = vmatpush1.msra.mxu0 0.0
    %1540 = vmatprep.subr.mxu0 0.0
    %1541 = vmatpush1.msra.mxu0 0.0
    %1542 = vmatprep.subr.mxu0 0.0
    %1543 = vmatpush1.msra.mxu0 0.0
    %1544 = vmatprep.subr.mxu0 0.0
    %1545 = vmatpush1.msra.mxu0 0.0
    %1546 = vmatprep.subr.mxu0 0.0
    %1547 = vmatpush1.msra.mxu0 0.0
    %1548 = vmatprep.subr.mxu0 0.0
    %1549 = vmatpush1.msra.mxu0 %v1086
    %1550 = vmatprep.subr.mxu0 0.0
    %1551 = vmatpush1.msra.mxu0 %v1085
    %1552 = vmatprep.subr.mxu0 0.0
    %1553 = vmatpush1.msra.mxu0 %v1084
    %1554 = vmatprep.subr.mxu0 0.0
    %1555 = vmatpush1.msra.mxu0 %v1083
    %1556 = vmatprep.subr.mxu0 0.0
    %1557 = vmatpush2.msra.mxu0 0.0
    %1558 = vmatprep.subr.mxu0 0.0
    %1559 = vmatpush2.msra.mxu0 0.0
    %1560 = vmatprep.subr.mxu0 0.0
    %1561 = vmatpush2.msra.mxu0 0.0
    %1562 = vmatprep.subr.mxu0 0.0
    %1563 = vmatpush2.msra.mxu0 0.0
    %1564 = vmatprep.subr.mxu0 0.0
    %1565 = vmatpush2.msra.mxu0 0.0
    %1566 = vmatprep.subr.mxu0 0.0
    %1567 = vmatpush2.msra.mxu0 0.0
    %1568 = vmatprep.subr.mxu0 0.0
    %1569 = vmatpush2.msra.mxu0 0.0
    %1570 = vmatprep.subr.mxu0 0.0
    %1571 = vmatpush2.msra.mxu0 0.0
    %1572 = vmatprep.subr.mxu0 0.0
    %1573 = vmatpush2.msra.mxu0 0.0
    %1574 = vmatprep.subr.mxu0 0.0
    %1575 = vmatpush2.msra.mxu0 0.0
    %1576 = vmatprep.subr.mxu0 0.0
    %1577 = vmatpush2.msra.mxu0 0.0
    %1578 = vmatprep.subr.mxu0 0.0
    %1579 = vmatpush2.msra.mxu0 0.0
    %1580 = vmatprep.subr.mxu0 0.0
    %1581 = vmatpush2.msra.mxu0 0.0
    %1582 = vmatprep.subr.mxu0 0.0
    %1583 = vmatpush2.msra.mxu0 0.0
    %1584 = vmatprep.subr.mxu0 0.0
    %1585 = vmatpush2.msra.mxu0 0.0
    %1586 = vmatprep.subr.mxu0 0.0
    %1587 = vmatpush2.msra.mxu0 0.0
    %1588 = vmatprep.mubr.f32.mxu0 0.0
    %1589 = vmatmul.mubr.f32.gmra.mxu0 %v1522
    %v1590 = vpop.f32.mrf.mxu0
    %v1591 = vadd.f32 %v1519, %v1590
    %v1592 = vpop.f32.mrf.mxu0
    %1593 = vdwg.mxu0
    %vm1594 = vcmask 1041408
    %v1595 = vsel %vm1594, %v1591, -inf
    %1596 = vmax.xlane.f32.xlu0 %v1595
    %v1597 = vpop.xlane.xlu0 %1596
    %v1598 = vsub.f32 %v1591, %v1597
    %v1599 = vmul.f32 %v1598, 1.442695
    %v1600 = vpow.pop %v1599
    %v1601 = vsel %vm1594, %v1600, 0.0
    %1602 = vadd.xlane.f32.xlu0 %v1601
    %v1603 = vpop.xlane.xlu0 %1602
    %v1604 = vlog2.pop %v1603
    %v1605 = vmul.f32 %v1604, 0.6931472
    %v1606 = vadd.f32 %v1605, %v1597
    %v1607 = vsub.f32 %v1591, %v1606
    %1608 = vst [vmem:[%s12] sm:$0x3] %v1607
    %v1609 = vld [vmem:[#allocation3 + $0x2] sm:$0x3]
    %1610 = vmatprep.subr.mxu0 0.0
    %1611 = vmatpush1.msra.mxu0 0.0
    %1612 = vmatprep.subr.mxu0 0.0
    %1613 = vmatpush1.msra.mxu0 0.0
    %1614 = vmatprep.subr.mxu0 0.0
    %1615 = vmatpush1.msra.mxu0 0.0
    %1616 = vmatprep.subr.mxu0 0.0
    %1617 = vmatpush1.msra.mxu0 0.0
    %1618 = vmatprep.subr.mxu0 0.0
    %1619 = vmatpush1.msra.mxu0 0.0
    %1620 = vmatprep.subr.mxu0 0.0
    %1621 = vmatpush1.msra.mxu0 0.0
    %1622 = vmatprep.subr.mxu0 0.0
    %1623 = vmatpush1.msra.mxu0 0.0
    %1624 = vmatprep.subr.mxu0 0.0
    %1625 = vmatpush1.msra.mxu0 0.0
    %1626 = vmatprep.subr.mxu0 0.0
    %1627 = vmatpush1.msra.mxu0 0.0
    %1628 = vmatprep.subr.mxu0 0.0
    %1629 = vmatpush1.msra.mxu0 0.0
    %1630 = vmatprep.subr.mxu0 0.0
    %1631 = vmatpush1.msra.mxu0 0.0
    %1632 = vmatprep.subr.mxu0 0.0
    %1633 = vmatpush1.msra.mxu0 0.0
    %1634 = vmatprep.subr.mxu0 0.0
    %1635 = vmatpush1.msra.mxu0 %v1074
    %1636 = vmatprep.subr.mxu0 0.0
    %1637 = vmatpush1.msra.mxu0 %v1073
    %1638 = vmatprep.subr.mxu0 0.0
    %1639 = vmatpush1.msra.mxu0 %v1072
    %1640 = vmatprep.subr.mxu0 0.0
    %1641 = vmatpush1.msra.mxu0 %v1071
    %1642 = vmatprep.subr.mxu0 0.0
    %1643 = vmatpush2.msra.mxu0 0.0
    %1644 = vmatprep.subr.mxu0 0.0
    %1645 = vmatpush2.msra.mxu0 0.0
    %1646 = vmatprep.subr.mxu0 0.0
    %1647 = vmatpush2.msra.mxu0 0.0
    %1648 = vmatprep.subr.mxu0 0.0
    %1649 = vmatpush2.msra.mxu0 0.0
    %1650 = vmatprep.subr.mxu0 0.0
    %1651 = vmatpush2.msra.mxu0 0.0
    %1652 = vmatprep.subr.mxu0 0.0
    %1653 = vmatpush2.msra.mxu0 0.0
    %1654 = vmatprep.subr.mxu0 0.0
    %1655 = vmatpush2.msra.mxu0 0.0
    %1656 = vmatprep.subr.mxu0 0.0
    %1657 = vmatpush2.msra.mxu0 0.0
    %1658 = vmatprep.subr.mxu0 0.0
    %1659 = vmatpush2.msra.mxu0 0.0
    %1660 = vmatprep.subr.mxu0 0.0
    %1661 = vmatpush2.msra.mxu0 0.0
    %1662 = vmatprep.subr.mxu0 0.0
    %1663 = vmatpush2.msra.mxu0 0.0
    %1664 = vmatprep.subr.mxu0 0.0
    %1665 = vmatpush2.msra.mxu0 0.0
    %1666 = vmatprep.subr.mxu0 0.0
    %1667 = vmatpush2.msra.mxu0 0.0
    %1668 = vmatprep.subr.mxu0 0.0
    %1669 = vmatpush2.msra.mxu0 0.0
    %1670 = vmatprep.subr.mxu0 0.0
    %1671 = vmatpush2.msra.mxu0 0.0
    %1672 = vmatprep.subr.mxu0 0.0
    %1673 = vmatpush2.msra.mxu0 0.0
    %1674 = vmatprep.mubr.f32.mxu0 0.0
    %1675 = vmatmul.mubr.f32.gmra.mxu0 %v1206
    %v1676 = vpop.f32.mrf.mxu0
    %v1677 = vadd.f32 0.0, %v1676
    %v1678 = vpop.f32.mrf.mxu0
    %1679 = vdwg.mxu0
    %v1680 = vadd.f32 %v1609, %v1677
    %v1681 = vxor.u32 %v1680, 2147483648
    %v1682 = vmul.f32 %v1681, 1.442695
    %v1683 = vpow.pop %v1682
    %v1684 = vadd.f32 %v1683, 1.0
    %v1685 = vrcp.pop %v1684
    %v1686 = vmul.f32 1.0, %v1685
    %v1687 = vtanh.pop %v1680
    %v1688 = vmul.f32 %v1686, %v1196
    %1690 = vrot.lane.b32.xlu0 %v1687, 64
    %v1691 = vpop.permute.xlu0 %1690
    %v1693 = vmul.f32 %v1686, %v1691
    %1695 = vrot.lane.b32.xlu0 %v1693, 32
    %v1696 = vpop.permute.xlu0 %1695
    %v1698 = vadd.f32 %v1688, %v1696
    %v1699 = vtanh.pop %v1698
    %1701 = vrot.lane.b32.xlu0 %v1699, 64
    %v1702 = vpop.permute.xlu0 %1701
    %v1704 = vmul.f32 %v1686, %v1702
    %1706 = vrot.lane.b32.xlu0 %v1704, 32
    %v1707 = vpop.permute.xlu0 %1706
    %v1708 = vsel %vm59, %v1707, 0
    %1710 = vmatprep.subr.mxu0 0.0
    %1711 = vmatpush1.xpose.msra.mxu0 0.0
    %1712 = vmatprep.subr.mxu0 0.0
    %1713 = vmatpush1.xpose.msra.mxu0 0.0
    %1714 = vmatprep.subr.mxu0 0.0
    %1715 = vmatpush1.xpose.msra.mxu0 0.0
    %1716 = vmatprep.subr.mxu0 0.0
    %1717 = vmatpush1.xpose.msra.mxu0 0.0
    %1718 = vmatprep.subr.mxu0 0.0
    %1719 = vmatpush1.xpose.msra.mxu0 0.0
    %1720 = vmatprep.subr.mxu0 0.0
    %1721 = vmatpush1.xpose.msra.mxu0 0.0
    %1722 = vmatprep.subr.mxu0 0.0
    %1723 = vmatpush1.xpose.msra.mxu0 0.0
    %1724 = vmatprep.subr.mxu0 0.0
    %1725 = vmatpush1.xpose.msra.mxu0 0.0
    %1726 = vmatprep.subr.mxu0 0.0
    %1727 = vmatpush1.xpose.msra.mxu0 0.0
    %1728 = vmatprep.subr.mxu0 0.0
    %1729 = vmatpush1.xpose.msra.mxu0 0.0
    %1730 = vmatprep.subr.mxu0 0.0
    %1731 = vmatpush1.xpose.msra.mxu0 0.0
    %1732 = vmatprep.subr.mxu0 0.0
    %1733 = vmatpush1.xpose.msra.mxu0 0.0
    %1734 = vmatprep.subr.mxu0 0.0
    %1735 = vmatpush1.xpose.msra.mxu0 0.0
    %1736 = vmatprep.subr.mxu0 0.0
    %1737 = vmatpush1.xpose.msra.mxu0 0.0
    %1738 = vmatprep.subr.mxu0 0.0
    %1739 = vmatpush1.xpose.msra.mxu0 %v1212
    %1740 = vmatprep.subr.mxu0 0.0
    %1741 = vmatpush1.xpose.msra.mxu0 %v1209
    %1742 = vmatprep.subr.mxu0 0.0
    %1743 = vmatpush2.xpose.msra.mxu0 0.0
    %1744 = vmatprep.subr.mxu0 0.0
    %1745 = vmatpush2.xpose.msra.mxu0 0.0
    %1746 = vmatprep.subr.mxu0 0.0
    %1747 = vmatpush2.xpose.msra.mxu0 0.0
    %1748 = vmatprep.subr.mxu0 0.0
    %1749 = vmatpush2.xpose.msra.mxu0 0.0
    %1750 = vmatprep.subr.mxu0 0.0
    %1751 = vmatpush2.xpose.msra.mxu0 0.0
    %1752 = vmatprep.subr.mxu0 0.0
    %1753 = vmatpush2.xpose.msra.mxu0 0.0
    %1754 = vmatprep.subr.mxu0 0.0
    %1755 = vmatpush2.xpose.msra.mxu0 0.0
    %1756 = vmatprep.subr.mxu0 0.0
    %1757 = vmatpush2.xpose.msra.mxu0 0.0
    %1758 = vmatprep.subr.mxu0 0.0
    %1759 = vmatpush2.xpose.msra.mxu0 0.0
    %1760 = vmatprep.subr.mxu0 0.0
    %1761 = vmatpush2.xpose.msra.mxu0 0.0
    %1762 = vmatprep.subr.mxu0 0.0
    %1763 = vmatpush2.xpose.msra.mxu0 0.0
    %1764 = vmatprep.subr.mxu0 0.0
    %1765 = vmatpush2.xpose.msra.mxu0 0.0
    %1766 = vmatprep.subr.mxu0 0.0
    %1767 = vmatpush2.xpose.msra.mxu0 0.0
    %1768 = vmatprep.subr.mxu0 0.0
    %1769 = vmatpush2.xpose.msra.mxu0 0.0
    %1770 = vmatprep.subr.mxu0 0.0
    %1771 = vmatpush2.xpose.msra.mxu0 0.0
    %1772 = vmatprep.subr.mxu0 0.0
    %1773 = vmatpush2.xpose.msra.mxu0 0.0
    %1774 = vmatprep.mubr.f32.mxu0 0.0
    %1775 = vmatmul.mubr.f32.gmra.mxu0 %v1708
    %v1776 = vpop.f32.mrf.mxu0
    %v1777 = vadd.f32 0.0, %v1776
    %v1778 = vpop.f32.mrf.mxu0
    %1779 = vdwg.mxu0
    %v1780 = vsel %vm1104, %v1777, -1e+30
    %v1781 = vsel %vm1285, %v1780, -inf
    %1782 = vmax.xlane.f32.xlu0 %v1781
    %v1783 = vpop.xlane.xlu0 %1782
    %v1784 = vsub.f32 %v1780, %v1783
    %v1785 = vmul.f32 %v1784, 1.442695
    %v1786 = vpow.pop %v1785
    %v1787 = vsel %vm1285, %v1786, 0.0
    %1788 = vadd.xlane.f32.xlu0 %v1787
    %v1789 = vpop.xlane.xlu0 %1788
    %v1790 = vrcp.pop %v1789
    %v1791 = vmul.f32 %v1786, %v1790
    %v1793 = vsel %vm1297, %v1791, 0
    %1795 = vmatprep.subr.mxu0 0.0
    %1796 = vmatpush1.msra.mxu0 0.0
    %1797 = vmatprep.subr.mxu0 0.0
    %1798 = vmatpush1.msra.mxu0 0.0
    %1799 = vmatprep.subr.mxu0 0.0
    %1800 = vmatpush1.msra.mxu0 0.0
    %1801 = vmatprep.subr.mxu0 0.0
    %1802 = vmatpush1.msra.mxu0 0.0
    %1803 = vmatprep.subr.mxu0 0.0
    %1804 = vmatpush1.msra.mxu0 0.0
    %1805 = vmatprep.subr.mxu0 0.0
    %1806 = vmatpush1.msra.mxu0 0.0
    %1807 = vmatprep.subr.mxu0 0.0
    %1808 = vmatpush1.msra.mxu0 0.0
    %1809 = vmatprep.subr.mxu0 0.0
    %1810 = vmatpush1.msra.mxu0 0.0
    %1811 = vmatprep.subr.mxu0 0.0
    %1812 = vmatpush1.msra.mxu0 0.0
    %1813 = vmatprep.subr.mxu0 0.0
    %1814 = vmatpush1.msra.mxu0 0.0
    %1815 = vmatprep.subr.mxu0 0.0
    %1816 = vmatpush1.msra.mxu0 0.0
    %1817 = vmatprep.subr.mxu0 0.0
    %1818 = vmatpush1.msra.mxu0 0.0
    %1819 = vmatprep.subr.mxu0 0.0
    %1820 = vmatpush1.msra.mxu0 0.0
    %1821 = vmatprep.subr.mxu0 0.0
    %1822 = vmatpush1.msra.mxu0 0.0
    %1823 = vmatprep.subr.mxu0 0.0
    %1824 = vmatpush1.msra.mxu0 %v1070
    %1825 = vmatprep.subr.mxu0 0.0
    %1826 = vmatpush1.msra.mxu0 %v1069
    %1827 = vmatprep.subr.mxu0 0.0
    %1828 = vmatpush2.msra.mxu0 0.0
    %1829 = vmatprep.subr.mxu0 0.0
    %1830 = vmatpush2.msra.mxu0 0.0
    %1831 = vmatprep.subr.mxu0 0.0
    %1832 = vmatpush2.msra.mxu0 0.0
    %1833 = vmatprep.subr.mxu0 0.0
    %1834 = vmatpush2.msra.mxu0 0.0
    %1835 = vmatprep.subr.mxu0 0.0
    %1836 = vmatpush2.msra.mxu0 0.0
    %1837 = vmatprep.subr.mxu0 0.0
    %1838 = vmatpush2.msra.mxu0 0.0
    %1839 = vmatprep.subr.mxu0 0.0
    %1840 = vmatpush2.msra.mxu0 0.0
    %1841 = vmatprep.subr.mxu0 0.0
    %1842 = vmatpush2.msra.mxu0 0.0
    %1843 = vmatprep.subr.mxu0 0.0
    %1844 = vmatpush2.msra.mxu0 0.0
    %1845 = vmatprep.subr.mxu0 0.0
    %1846 = vmatpush2.msra.mxu0 0.0
    %1847 = vmatprep.subr.mxu0 0.0
    %1848 = vmatpush2.msra.mxu0 0.0
    %1849 = vmatprep.subr.mxu0 0.0
    %1850 = vmatpush2.msra.mxu0 0.0
    %1851 = vmatprep.subr.mxu0 0.0
    %1852 = vmatpush2.msra.mxu0 0.0
    %1853 = vmatprep.subr.mxu0 0.0
    %1854 = vmatpush2.msra.mxu0 0.0
    %1855 = vmatprep.subr.mxu0 0.0
    %1856 = vmatpush2.msra.mxu0 0.0
    %1857 = vmatprep.subr.mxu0 0.0
    %1858 = vmatpush2.msra.mxu0 0.0
    %1859 = vmatprep.mubr.f32.mxu0 0.0
    %1860 = vmatmul.mubr.f32.gmra.mxu0 %v1793
    %v1861 = vpop.f32.mrf.mxu0
    %v1862 = vadd.f32 0.0, %v1861
    %v1863 = vpop.f32.mrf.mxu0
    %1864 = vdwg.mxu0
    %v1866 = vsel %vm59, %v1862, 0
    %1868 = vmatprep.subr.mxu0 0.0
    %1869 = vmatpush1.msra.mxu0 0.0
    %1870 = vmatprep.subr.mxu0 0.0
    %1871 = vmatpush1.msra.mxu0 0.0
    %1872 = vmatprep.subr.mxu0 0.0
    %1873 = vmatpush1.msra.mxu0 0.0
    %1874 = vmatprep.subr.mxu0 0.0
    %1875 = vmatpush1.msra.mxu0 0.0
    %1876 = vmatprep.subr.mxu0 0.0
    %1877 = vmatpush1.msra.mxu0 0.0
    %1878 = vmatprep.subr.mxu0 0.0
    %1879 = vmatpush1.msra.mxu0 0.0
    %1880 = vmatprep.subr.mxu0 0.0
    %1881 = vmatpush1.msra.mxu0 0.0
    %1882 = vmatprep.subr.mxu0 0.0
    %1883 = vmatpush1.msra.mxu0 0.0
    %1884 = vmatprep.subr.mxu0 0.0
    %1885 = vmatpush1.msra.mxu0 0.0
    %1886 = vmatprep.subr.mxu0 0.0
    %1887 = vmatpush1.msra.mxu0 0.0
    %1888 = vmatprep.subr.mxu0 0.0
    %1889 = vmatpush1.msra.mxu0 0.0
    %1890 = vmatprep.subr.mxu0 0.0
    %1891 = vmatpush1.msra.mxu0 0.0
    %1892 = vmatprep.subr.mxu0 0.0
    %1893 = vmatpush1.msra.mxu0 %v1082
    %1894 = vmatprep.subr.mxu0 0.0
    %1895 = vmatpush1.msra.mxu0 %v1081
    %1896 = vmatprep.subr.mxu0 0.0
    %1897 = vmatpush1.msra.mxu0 %v1080
    %1898 = vmatprep.subr.mxu0 0.0
    %1899 = vmatpush1.msra.mxu0 %v1079
    %1900 = vmatprep.subr.mxu0 0.0
    %1901 = vmatpush2.msra.mxu0 0.0
    %1902 = vmatprep.subr.mxu0 0.0
    %1903 = vmatpush2.msra.mxu0 0.0
    %1904 = vmatprep.subr.mxu0 0.0
    %1905 = vmatpush2.msra.mxu0 0.0
    %1906 = vmatprep.subr.mxu0 0.0
    %1907 = vmatpush2.msra.mxu0 0.0
    %1908 = vmatprep.subr.mxu0 0.0
    %1909 = vmatpush2.msra.mxu0 0.0
    %1910 = vmatprep.subr.mxu0 0.0
    %1911 = vmatpush2.msra.mxu0 0.0
    %1912 = vmatprep.subr.mxu0 0.0
    %1913 = vmatpush2.msra.mxu0 0.0
    %1914 = vmatprep.subr.mxu0 0.0
    %1915 = vmatpush2.msra.mxu0 0.0
    %1916 = vmatprep.subr.mxu0 0.0
    %1917 = vmatpush2.msra.mxu0 0.0
    %1918 = vmatprep.subr.mxu0 0.0
    %1919 = vmatpush2.msra.mxu0 0.0
    %1920 = vmatprep.subr.mxu0 0.0
    %1921 = vmatpush2.msra.mxu0 0.0
    %1922 = vmatprep.subr.mxu0 0.0
    %1923 = vmatpush2.msra.mxu0 0.0
    %1924 = vmatprep.subr.mxu0 0.0
    %1925 = vmatpush2.msra.mxu0 0.0
    %1926 = vmatprep.subr.mxu0 0.0
    %1927 = vmatpush2.msra.mxu0 0.0
    %1928 = vmatprep.subr.mxu0 0.0
    %1929 = vmatpush2.msra.mxu0 0.0
    %1930 = vmatprep.subr.mxu0 0.0
    %1931 = vmatpush2.msra.mxu0 0.0
    %1932 = vmatprep.mubr.f32.mxu0 0.0
    %1933 = vmatmul.mubr.f32.gmra.mxu0 %v1866
    %v1934 = vpop.f32.mrf.mxu0
    %v1935 = vadd.f32 0.0, %v1934
    %v1936 = vpop.f32.mrf.mxu0
    %1937 = vdwg.mxu0
    %1938 = vmatprep.subr.mxu0 0.0
    %1939 = vmatpush1.msra.mxu0 0.0
    %1940 = vmatprep.subr.mxu0 0.0
    %1941 = vmatpush1.msra.mxu0 0.0
    %1942 = vmatprep.subr.mxu0 0.0
    %1943 = vmatpush1.msra.mxu0 0.0
    %1944 = vmatprep.subr.mxu0 0.0
    %1945 = vmatpush1.msra.mxu0 0.0
    %1946 = vmatprep.subr.mxu0 0.0
    %1947 = vmatpush1.msra.mxu0 0.0
    %1948 = vmatprep.subr.mxu0 0.0
    %1949 = vmatpush1.msra.mxu0 0.0
    %1950 = vmatprep.subr.mxu0 0.0
    %1951 = vmatpush1.msra.mxu0 0.0
    %1952 = vmatprep.subr.mxu0 0.0
    %1953 = vmatpush1.msra.mxu0 0.0
    %1954 = vmatprep.subr.mxu0 0.0
    %1955 = vmatpush1.msra.mxu0 0.0
    %1956 = vmatprep.subr.mxu0 0.0
    %1957 = vmatpush1.msra.mxu0 0.0
    %1958 = vmatprep.subr.mxu0 0.0
    %1959 = vmatpush1.msra.mxu0 0.0
    %1960 = vmatprep.subr.mxu0 0.0
    %1961 = vmatpush1.msra.mxu0 0.0
    %1962 = vmatprep.subr.mxu0 0.0
    %1963 = vmatpush1.msra.mxu0 %v1078
    %1964 = vmatprep.subr.mxu0 0.0
    %1965 = vmatpush1.msra.mxu0 %v1077
    %1966 = vmatprep.subr.mxu0 0.0
    %1967 = vmatpush1.msra.mxu0 %v1076
    %1968 = vmatprep.subr.mxu0 0.0
    %1969 = vmatpush1.msra.mxu0 %v1075
    %1970 = vmatprep.subr.mxu0 0.0
    %1971 = vmatpush2.msra.mxu0 0.0
    %1972 = vmatprep.subr.mxu0 0.0
    %1973 = vmatpush2.msra.mxu0 0.0
    %1974 = vmatprep.subr.mxu0 0.0
    %1975 = vmatpush2.msra.mxu0 0.0
    %1976 = vmatprep.subr.mxu0 0.0
    %1977 = vmatpush2.msra.mxu0 0.0
    %1978 = vmatprep.subr.mxu0 0.0
    %1979 = vmatpush2.msra.mxu0 0.0
    %1980 = vmatprep.subr.mxu0 0.0
    %1981 = vmatpush2.msra.mxu0 0.0
    %1982 = vmatprep.subr.mxu0 0.0
    %1983 = vmatpush2.msra.mxu0 0.0
    %1984 = vmatprep.subr.mxu0 0.0
    %1985 = vmatpush2.msra.mxu0 0.0
    %1986 = vmatprep.subr.mxu0 0.0
    %1987 = vmatpush2.msra.mxu0 0.0
    %1988 = vmatprep.subr.mxu0 0.0
    %1989 = vmatpush2.msra.mxu0 0.0
    %1990 = vmatprep.subr.mxu0 0.0
    %1991 = vmatpush2.msra.mxu0 0.0
    %1992 = vmatprep.subr.mxu0 0.0
    %1993 = vmatpush2.msra.mxu0 0.0
    %1994 = vmatprep.subr.mxu0 0.0
    %1995 = vmatpush2.msra.mxu0 0.0
    %1996 = vmatprep.subr.mxu0 0.0
    %1997 = vmatpush2.msra.mxu0 0.0
    %1998 = vmatprep.subr.mxu0 0.0
    %1999 = vmatpush2.msra.mxu0 0.0
    %2000 = vmatprep.subr.mxu0 0.0
    %2001 = vmatpush2.msra.mxu0 0.0
    %2002 = vmatprep.mubr.f32.mxu0 0.0
    %2003 = vmatmul.mubr.f32.gmra.mxu0 %v1708
    %v2004 = vpop.f32.mrf.mxu0
    %v2005 = vadd.f32 %v1935, %v2004
    %v2006 = vpop.f32.mrf.mxu0
    %2007 = vdwg.mxu0
    %v2008 = vtanh.pop %v2005
    %v2010 = vsel %vm59, %v2008, 0
    %2012 = vmatprep.subr.mxu0 0.0
    %2013 = vmatpush1.msra.mxu0 0.0
    %2014 = vmatprep.subr.mxu0 0.0
    %2015 = vmatpush1.msra.mxu0 0.0
    %2016 = vmatprep.subr.mxu0 0.0
    %2017 = vmatpush1.msra.mxu0 0.0
    %2018 = vmatprep.subr.mxu0 0.0
    %2019 = vmatpush1.msra.mxu0 0.0
    %2020 = vmatprep.subr.mxu0 0.0
    %2021 = vmatpush1.msra.mxu0 0.0
    %2022 = vmatprep.subr.mxu0 0.0
    %2023 = vmatpush1.msra.mxu0 0.0
    %2024 = vmatprep.subr.mxu0 0.0
    %2025 = vmatpush1.msra.mxu0 0.0
    %2026 = vmatprep.subr.mxu0 0.0
    %2027 = vmatpush1.msra.mxu0 0.0
    %2028 = vmatprep.subr.mxu0 0.0
    %2029 = vmatpush1.msra.mxu0 0.0
    %2030 = vmatprep.subr.mxu0 0.0
    %2031 = vmatpush1.msra.mxu0 0.0
    %2032 = vmatprep.subr.mxu0 0.0
    %2033 = vmatpush1.msra.mxu0 0.0
    %2034 = vmatprep.subr.mxu0 0.0
    %2035 = vmatpush1.msra.mxu0 0.0
    %2036 = vmatprep.subr.mxu0 0.0
    %2037 = vmatpush1.msra.mxu0 %v1086
    %2038 = vmatprep.subr.mxu0 0.0
    %2039 = vmatpush1.msra.mxu0 %v1085
    %2040 = vmatprep.subr.mxu0 0.0
    %2041 = vmatpush1.msra.mxu0 %v1084
    %2042 = vmatprep.subr.mxu0 0.0
    %2043 = vmatpush1.msra.mxu0 %v1083
    %2044 = vmatprep.subr.mxu0 0.0
    %2045 = vmatpush2.msra.mxu0 0.0
    %2046 = vmatprep.subr.mxu0 0.0
    %2047 = vmatpush2.msra.mxu0 0.0
    %2048 = vmatprep.subr.mxu0 0.0
    %2049 = vmatpush2.msra.mxu0 0.0
    %2050 = vmatprep.subr.mxu0 0.0
    %2051 = vmatpush2.msra.mxu0 0.0
    %2052 = vmatprep.subr.mxu0 0.0
    %2053 = vmatpush2.msra.mxu0 0.0
    %2054 = vmatprep.subr.mxu0 0.0
    %2055 = vmatpush2.msra.mxu0 0.0
    %2056 = vmatprep.subr.mxu0 0.0
    %2057 = vmatpush2.msra.mxu0 0.0
    %2058 = vmatprep.subr.mxu0 0.0
    %2059 = vmatpush2.msra.mxu0 0.0
    %2060 = vmatprep.subr.mxu0 0.0
    %2061 = vmatpush2.msra.mxu0 0.0
    %2062 = vmatprep.subr.mxu0 0.0
    %2063 = vmatpush2.msra.mxu0 0.0
    %2064 = vmatprep.subr.mxu0 0.0
    %2065 = vmatpush2.msra.mxu0 0.0
    %2066 = vmatprep.subr.mxu0 0.0
    %2067 = vmatpush2.msra.mxu0 0.0
    %2068 = vmatprep.subr.mxu0 0.0
    %2069 = vmatpush2.msra.mxu0 0.0
    %2070 = vmatprep.subr.mxu0 0.0
    %2071 = vmatpush2.msra.mxu0 0.0
    %2072 = vmatprep.subr.mxu0 0.0
    %2073 = vmatpush2.msra.mxu0 0.0
    %2074 = vmatprep.subr.mxu0 0.0
    %2075 = vmatpush2.msra.mxu0 0.0
    %2076 = vmatprep.mubr.f32.mxu0 0.0
    %2077 = vmatmul.mubr.f32.gmra.mxu0 %v2010
    %v2078 = vpop.f32.mrf.mxu0
    %v2079 = vadd.f32 %v1519, %v2078
    %v2080 = vpop.f32.mrf.mxu0
    %2081 = vdwg.mxu0
    %v2082 = vsel %vm1594, %v2079, -inf
    %2083 = vmax.xlane.f32.xlu0 %v2082
    %v2084 = vpop.xlane.xlu0 %2083
    %v2085 = vsub.f32 %v2079, %v2084
    %v2086 = vmul.f32 %v2085, 1.442695
    %v2087 = vpow.pop %v2086
    %v2088 = vsel %vm1594, %v2087, 0.0
    %2089 = vadd.xlane.f32.xlu0 %v2088
    %v2090 = vpop.xlane.xlu0 %2089
    %v2091 = vlog2.pop %v2090
    %v2092 = vmul.f32 %v2091, 0.6931472
    %v2093 = vadd.f32 %v2092, %v2084
    %v2094 = vsub.f32 %v2079, %v2093
    %2095 = vst [vmem:[%s12 + $0x2] sm:$0x3] %v2094
    %v2096 = vld [vmem:[#allocation3 + $0x4] sm:$0x3]
    %2097 = vmatprep.subr.mxu0 0.0
    %2098 = vmatpush1.msra.mxu0 0.0
    %2099 = vmatprep.subr.mxu0 0.0
    %2100 = vmatpush1.msra.mxu0 0.0
    %2101 = vmatprep.subr.mxu0 0.0
    %2102 = vmatpush1.msra.mxu0 0.0
    %2103 = vmatprep.subr.mxu0 0.0
    %2104 = vmatpush1.msra.mxu0 0.0
    %2105 = vmatprep.subr.mxu0 0.0
    %2106 = vmatpush1.msra.mxu0 0.0
    %2107 = vmatprep.subr.mxu0 0.0
    %2108 = vmatpush1.msra.mxu0 0.0
    %2109 = vmatprep.subr.mxu0 0.0
    %2110 = vmatpush1.msra.mxu0 0.0
    %2111 = vmatprep.subr.mxu0 0.0
    %2112 = vmatpush1.msra.mxu0 0.0
    %2113 = vmatprep.subr.mxu0 0.0
    %2114 = vmatpush1.msra.mxu0 0.0
    %2115 = vmatprep.subr.mxu0 0.0
    %2116 = vmatpush1.msra.mxu0 0.0
    %2117 = vmatprep.subr.mxu0 0.0
    %2118 = vmatpush1.msra.mxu0 0.0
    %2119 = vmatprep.subr.mxu0 0.0
    %2120 = vmatpush1.msra.mxu0 0.0
    %2121 = vmatprep.subr.mxu0 0.0
    %2122 = vmatpush1.msra.mxu0 %v1074
    %2123 = vmatprep.subr.mxu0 0.0
    %2124 = vmatpush1.msra.mxu0 %v1073
    %2125 = vmatprep.subr.mxu0 0.0
    %2126 = vmatpush1.msra.mxu0 %v1072
    %2127 = vmatprep.subr.mxu0 0.0
    %2128 = vmatpush1.msra.mxu0 %v1071
    %2129 = vmatprep.subr.mxu0 0.0
    %2130 = vmatpush2.msra.mxu0 0.0
    %2131 = vmatprep.subr.mxu0 0.0
    %2132 = vmatpush2.msra.mxu0 0.0
    %2133 = vmatprep.subr.mxu0 0.0
    %2134 = vmatpush2.msra.mxu0 0.0
    %2135 = vmatprep.subr.mxu0 0.0
    %2136 = vmatpush2.msra.mxu0 0.0
    %2137 = vmatprep.subr.mxu0 0.0
    %2138 = vmatpush2.msra.mxu0 0.0
    %2139 = vmatprep.subr.mxu0 0.0
    %2140 = vmatpush2.msra.mxu0 0.0
    %2141 = vmatprep.subr.mxu0 0.0
    %2142 = vmatpush2.msra.mxu0 0.0
    %2143 = vmatprep.subr.mxu0 0.0
    %2144 = vmatpush2.msra.mxu0 0.0
    %2145 = vmatprep.subr.mxu0 0.0
    %2146 = vmatpush2.msra.mxu0 0.0
    %2147 = vmatprep.subr.mxu0 0.0
    %2148 = vmatpush2.msra.mxu0 0.0
    %2149 = vmatprep.subr.mxu0 0.0
    %2150 = vmatpush2.msra.mxu0 0.0
    %2151 = vmatprep.subr.mxu0 0.0
    %2152 = vmatpush2.msra.mxu0 0.0
    %2153 = vmatprep.subr.mxu0 0.0
    %2154 = vmatpush2.msra.mxu0 0.0
    %2155 = vmatprep.subr.mxu0 0.0
    %2156 = vmatpush2.msra.mxu0 0.0
    %2157 = vmatprep.subr.mxu0 0.0
    %2158 = vmatpush2.msra.mxu0 0.0
    %2159 = vmatprep.subr.mxu0 0.0
    %2160 = vmatpush2.msra.mxu0 0.0
    %2161 = vmatprep.mubr.f32.mxu0 0.0
    %2162 = vmatmul.mubr.f32.gmra.mxu0 %v1708
    %v2163 = vpop.f32.mrf.mxu0
    %v2164 = vadd.f32 0.0, %v2163
    %v2165 = vpop.f32.mrf.mxu0
    %2166 = vdwg.mxu0
    %v2167 = vadd.f32 %v2096, %v2164
    %v2168 = vxor.u32 %v2167, 2147483648
    %v2169 = vmul.f32 %v2168, 1.442695
    %v2170 = vpow.pop %v2169
    %v2171 = vadd.f32 %v2170, 1.0
    %v2172 = vrcp.pop %v2171
    %v2173 = vmul.f32 1.0, %v2172
    %v2174 = vtanh.pop %v2167
    %v2175 = vmul.f32 %v2173, %v1698
    %2177 = vrot.lane.b32.xlu0 %v2174, 64
    %v2178 = vpop.permute.xlu0 %2177
    %v2180 = vmul.f32 %v2173, %v2178
    %2182 = vrot.lane.b32.xlu0 %v2180, 32
    %v2183 = vpop.permute.xlu0 %2182
    %v2185 = vadd.f32 %v2175, %v2183
    %v2186 = vtanh.pop %v2185
    %2188 = vrot.lane.b32.xlu0 %v2186, 64
    %v2189 = vpop.permute.xlu0 %2188
    %v2191 = vmul.f32 %v2173, %v2189
    %2193 = vrot.lane.b32.xlu0 %v2191, 32
    %v2194 = vpop.permute.xlu0 %2193
    %v2195 = vsel %vm59, %v2194, 0
    %2197 = vmatprep.subr.mxu0 0.0
    %2198 = vmatpush1.xpose.msra.mxu0 0.0
    %2199 = vmatprep.subr.mxu0 0.0
    %2200 = vmatpush1.xpose.msra.mxu0 0.0
    %2201 = vmatprep.subr.mxu0 0.0
    %2202 = vmatpush1.xpose.msra.mxu0 0.0
    %2203 = vmatprep.subr.mxu0 0.0
    %2204 = vmatpush1.xpose.msra.mxu0 0.0
    %2205 = vmatprep.subr.mxu0 0.0
    %2206 = vmatpush1.xpose.msra.mxu0 0.0
    %2207 = vmatprep.subr.mxu0 0.0
    %2208 = vmatpush1.xpose.msra.mxu0 0.0
    %2209 = vmatprep.subr.mxu0 0.0
    %2210 = vmatpush1.xpose.msra.mxu0 0.0
    %2211 = vmatprep.subr.mxu0 0.0
    %2212 = vmatpush1.xpose.msra.mxu0 0.0
    %2213 = vmatprep.subr.mxu0 0.0
    %2214 = vmatpush1.xpose.msra.mxu0 0.0
    %2215 = vmatprep.subr.mxu0 0.0
    %2216 = vmatpush1.xpose.msra.mxu0 0.0
    %2217 = vmatprep.subr.mxu0 0.0
    %2218 = vmatpush1.xpose.msra.mxu0 0.0
    %2219 = vmatprep.subr.mxu0 0.0
    %2220 = vmatpush1.xpose.msra.mxu0 0.0
    %2221 = vmatprep.subr.mxu0 0.0
    %2222 = vmatpush1.xpose.msra.mxu0 0.0
    %2223 = vmatprep.subr.mxu0 0.0
    %2224 = vmatpush1.xpose.msra.mxu0 0.0
    %2225 = vmatprep.subr.mxu0 0.0
    %2226 = vmatpush1.xpose.msra.mxu0 %v1212
    %2227 = vmatprep.subr.mxu0 0.0
    %2228 = vmatpush1.xpose.msra.mxu0 %v1209
    %2229 = vmatprep.subr.mxu0 0.0
    %2230 = vmatpush2.xpose.msra.mxu0 0.0
    %2231 = vmatprep.subr.mxu0 0.0
    %2232 = vmatpush2.xpose.msra.mxu0 0.0
    %2233 = vmatprep.subr.mxu0 0.0
    %2234 = vmatpush2.xpose.msra.mxu0 0.0
    %2235 = vmatprep.subr.mxu0 0.0
    %2236 = vmatpush2.xpose.msra.mxu0 0.0
    %2237 = vmatprep.subr.mxu0 0.0
    %2238 = vmatpush2.xpose.msra.mxu0 0.0
    %2239 = vmatprep.subr.mxu0 0.0
    %2240 = vmatpush2.xpose.msra.mxu0 0.0
    %2241 = vmatprep.subr.mxu0 0.0
    %2242 = vmatpush2.xpose.msra.mxu0 0.0
    %2243 = vmatprep.subr.mxu0 0.0
    %2244 = vmatpush2.xpose.msra.mxu0 0.0
    %2245 = vmatprep.subr.mxu0 0.0
    %2246 = vmatpush2.xpose.msra.mxu0 0.0
    %2247 = vmatprep.subr.mxu0 0.0
    %2248 = vmatpush2.xpose.msra.mxu0 0.0
    %2249 = vmatprep.subr.mxu0 0.0
    %2250 = vmatpush2.xpose.msra.mxu0 0.0
    %2251 = vmatprep.subr.mxu0 0.0
    %2252 = vmatpush2.xpose.msra.mxu0 0.0
    %2253 = vmatprep.subr.mxu0 0.0
    %2254 = vmatpush2.xpose.msra.mxu0 0.0
    %2255 = vmatprep.subr.mxu0 0.0
    %2256 = vmatpush2.xpose.msra.mxu0 0.0
    %2257 = vmatprep.subr.mxu0 0.0
    %2258 = vmatpush2.xpose.msra.mxu0 0.0
    %2259 = vmatprep.subr.mxu0 0.0
    %2260 = vmatpush2.xpose.msra.mxu0 0.0
    %2261 = vmatprep.mubr.f32.mxu0 0.0
    %2262 = vmatmul.mubr.f32.gmra.mxu0 %v2195
    %v2263 = vpop.f32.mrf.mxu0
    %v2264 = vadd.f32 0.0, %v2263
    %v2265 = vpop.f32.mrf.mxu0
    %2266 = vdwg.mxu0
    %v2267 = vsel %vm1104, %v2264, -1e+30
    %v2268 = vsel %vm1285, %v2267, -inf
    %2269 = vmax.xlane.f32.xlu0 %v2268
    %v2270 = vpop.xlane.xlu0 %2269
    %v2271 = vsub.f32 %v2267, %v2270
    %v2272 = vmul.f32 %v2271, 1.442695
    %v2273 = vpow.pop %v2272
    %v2274 = vsel %vm1285, %v2273, 0.0
    %2275 = vadd.xlane.f32.xlu0 %v2274
    %v2276 = vpop.xlane.xlu0 %2275
    %v2277 = vrcp.pop %v2276
    %v2278 = vmul.f32 %v2273, %v2277
    %v2280 = vsel %vm1297, %v2278, 0
    %2282 = vmatprep.subr.mxu0 0.0
    %2283 = vmatpush1.msra.mxu0 0.0
    %2284 = vmatprep.subr.mxu0 0.0
    %2285 = vmatpush1.msra.mxu0 0.0
    %2286 = vmatprep.subr.mxu0 0.0
    %2287 = vmatpush1.msra.mxu0 0.0
    %2288 = vmatprep.subr.mxu0 0.0
    %2289 = vmatpush1.msra.mxu0 0.0
    %2290 = vmatprep.subr.mxu0 0.0
    %2291 = vmatpush1.msra.mxu0 0.0
    %2292 = vmatprep.subr.mxu0 0.0
    %2293 = vmatpush1.msra.mxu0 0.0
    %2294 = vmatprep.subr.mxu0 0.0
    %2295 = vmatpush1.msra.mxu0 0.0
    %2296 = vmatprep.subr.mxu0 0.0
    %2297 = vmatpush1.msra.mxu0 0.0
    %2298 = vmatprep.subr.mxu0 0.0
    %2299 = vmatpush1.msra.mxu0 0.0
    %2300 = vmatprep.subr.mxu0 0.0
    %2301 = vmatpush1.msra.mxu0 0.0
    %2302 = vmatprep.subr.mxu0 0.0
    %2303 = vmatpush1.msra.mxu0 0.0
    %2304 = vmatprep.subr.mxu0 0.0
    %2305 = vmatpush1.msra.mxu0 0.0
    %2306 = vmatprep.subr.mxu0 0.0
    %2307 = vmatpush1.msra.mxu0 0.0
    %2308 = vmatprep.subr.mxu0 0.0
    %2309 = vmatpush1.msra.mxu0 0.0
    %2310 = vmatprep.subr.mxu0 0.0
    %2311 = vmatpush1.msra.mxu0 %v1070
    %2312 = vmatprep.subr.mxu0 0.0
    %2313 = vmatpush1.msra.mxu0 %v1069
    %2314 = vmatprep.subr.mxu0 0.0
    %2315 = vmatpush2.msra.mxu0 0.0
    %2316 = vmatprep.subr.mxu0 0.0
    %2317 = vmatpush2.msra.mxu0 0.0
    %2318 = vmatprep.subr.mxu0 0.0
    %2319 = vmatpush2.msra.mxu0 0.0
    %2320 = vmatprep.subr.mxu0 0.0
    %2321 = vmatpush2.msra.mxu0 0.0
    %2322 = vmatprep.subr.mxu0 0.0
    %2323 = vmatpush2.msra.mxu0 0.0
    %2324 = vmatprep.subr.mxu0 0.0
    %2325 = vmatpush2.msra.mxu0 0.0
    %2326 = vmatprep.subr.mxu0 0.0
    %2327 = vmatpush2.msra.mxu0 0.0
    %2328 = vmatprep.subr.mxu0 0.0
    %2329 = vmatpush2.msra.mxu0 0.0
    %2330 = vmatprep.subr.mxu0 0.0
    %2331 = vmatpush2.msra.mxu0 0.0
    %2332 = vmatprep.subr.mxu0 0.0
    %2333 = vmatpush2.msra.mxu0 0.0
    %2334 = vmatprep.subr.mxu0 0.0
    %2335 = vmatpush2.msra.mxu0 0.0
    %2336 = vmatprep.subr.mxu0 0.0
    %2337 = vmatpush2.msra.mxu0 0.0
    %2338 = vmatprep.subr.mxu0 0.0
    %2339 = vmatpush2.msra.mxu0 0.0
    %2340 = vmatprep.subr.mxu0 0.0
    %2341 = vmatpush2.msra.mxu0 0.0
    %2342 = vmatprep.subr.mxu0 0.0
    %2343 = vmatpush2.msra.mxu0 0.0
    %2344 = vmatprep.subr.mxu0 0.0
    %2345 = vmatpush2.msra.mxu0 0.0
    %2346 = vmatprep.mubr.f32.mxu0 0.0
    %2347 = vmatmul.mubr.f32.gmra.mxu0 %v2280
    %v2348 = vpop.f32.mrf.mxu0
    %v2349 = vadd.f32 0.0, %v2348
    %v2350 = vpop.f32.mrf.mxu0
    %2351 = vdwg.mxu0
    %v2353 = vsel %vm59, %v2349, 0
    %2355 = vmatprep.subr.mxu0 0.0
    %2356 = vmatpush1.msra.mxu0 0.0
    %2357 = vmatprep.subr.mxu0 0.0
    %2358 = vmatpush1.msra.mxu0 0.0
    %2359 = vmatprep.subr.mxu0 0.0
    %2360 = vmatpush1.msra.mxu0 0.0
    %2361 = vmatprep.subr.mxu0 0.0
    %2362 = vmatpush1.msra.mxu0 0.0
    %2363 = vmatprep.subr.mxu0 0.0
    %2364 = vmatpush1.msra.mxu0 0.0
    %2365 = vmatprep.subr.mxu0 0.0
    %2366 = vmatpush1.msra.mxu0 0.0
    %2367 = vmatprep.subr.mxu0 0.0
    %2368 = vmatpush1.msra.mxu0 0.0
    %2369 = vmatprep.subr.mxu0 0.0
    %2370 = vmatpush1.msra.mxu0 0.0
    %2371 = vmatprep.subr.mxu0 0.0
    %2372 = vmatpush1.msra.mxu0 0.0
    %2373 = vmatprep.subr.mxu0 0.0
    %2374 = vmatpush1.msra.mxu0 0.0
    %2375 = vmatprep.subr.mxu0 0.0
    %2376 = vmatpush1.msra.mxu0 0.0
    %2377 = vmatprep.subr.mxu0 0.0
    %2378 = vmatpush1.msra.mxu0 0.0
    %2379 = vmatprep.subr.mxu0 0.0
    %2380 = vmatpush1.msra.mxu0 %v1082
    %2381 = vmatprep.subr.mxu0 0.0
    %2382 = vmatpush1.msra.mxu0 %v1081
    %2383 = vmatprep.subr.mxu0 0.0
    %2384 = vmatpush1.msra.mxu0 %v1080
    %2385 = vmatprep.subr.mxu0 0.0
    %2386 = vmatpush1.msra.mxu0 %v1079
    %2387 = vmatprep.subr.mxu0 0.0
    %2388 = vmatpush2.msra.mxu0 0.0
    %2389 = vmatprep.subr.mxu0 0.0
    %2390 = vmatpush2.msra.mxu0 0.0
    %2391 = vmatprep.subr.mxu0 0.0
    %2392 = vmatpush2.msra.mxu0 0.0
    %2393 = vmatprep.subr.mxu0 0.0
    %2394 = vmatpush2.msra.mxu0 0.0
    %2395 = vmatprep.subr.mxu0 0.0
    %2396 = vmatpush2.msra.mxu0 0.0
    %2397 = vmatprep.subr.mxu0 0.0
    %2398 = vmatpush2.msra.mxu0 0.0
    %2399 = vmatprep.subr.mxu0 0.0
    %2400 = vmatpush2.msra.mxu0 0.0
    %2401 = vmatprep.subr.mxu0 0.0
    %2402 = vmatpush2.msra.mxu0 0.0
    %2403 = vmatprep.subr.mxu0 0.0
    %2404 = vmatpush2.msra.mxu0 0.0
    %2405 = vmatprep.subr.mxu0 0.0
    %2406 = vmatpush2.msra.mxu0 0.0
    %2407 = vmatprep.subr.mxu0 0.0
    %2408 = vmatpush2.msra.mxu0 0.0
    %2409 = vmatprep.subr.mxu0 0.0
    %2410 = vmatpush2.msra.mxu0 0.0
    %2411 = vmatprep.subr.mxu0 0.0
    %2412 = vmatpush2.msra.mxu0 0.0
    %2413 = vmatprep.subr.mxu0 0.0
    %2414 = vmatpush2.msra.mxu0 0.0
    %2415 = vmatprep.subr.mxu0 0.0
    %2416 = vmatpush2.msra.mxu0 0.0
    %2417 = vmatprep.subr.mxu0 0.0
    %2418 = vmatpush2.msra.mxu0 0.0
    %2419 = vmatprep.mubr.f32.mxu0 0.0
    %2420 = vmatmul.mubr.f32.gmra.mxu0 %v2353
    %v2421 = vpop.f32.mrf.mxu0
    %v2422 = vadd.f32 0.0, %v2421
    %v2423 = vpop.f32.mrf.mxu0
    %2424 = vdwg.mxu0
    %2425 = vmatprep.subr.mxu0 0.0
    %2426 = vmatpush1.msra.mxu0 0.0
    %2427 = vmatprep.subr.mxu0 0.0
    %2428 = vmatpush1.msra.mxu0 0.0
    %2429 = vmatprep.subr.mxu0 0.0
    %2430 = vmatpush1.msra.mxu0 0.0
    %2431 = vmatprep.subr.mxu0 0.0
    %2432 = vmatpush1.msra.mxu0 0.0
    %2433 = vmatprep.subr.mxu0 0.0
    %2434 = vmatpush1.msra.mxu0 0.0
    %2435 = vmatprep.subr.mxu0 0.0
    %2436 = vmatpush1.msra.mxu0 0.0
    %2437 = vmatprep.subr.mxu0 0.0
    %2438 = vmatpush1.msra.mxu0 0.0
    %2439 = vmatprep.subr.mxu0 0.0
    %2440 = vmatpush1.msra.mxu0 0.0
    %2441 = vmatprep.subr.mxu0 0.0
    %2442 = vmatpush1.msra.mxu0 0.0
    %2443 = vmatprep.subr.mxu0 0.0
    %2444 = vmatpush1.msra.mxu0 0.0
    %2445 = vmatprep.subr.mxu0 0.0
    %2446 = vmatpush1.msra.mxu0 0.0
    %2447 = vmatprep.subr.mxu0 0.0
    %2448 = vmatpush1.msra.mxu0 0.0
    %2449 = vmatprep.subr.mxu0 0.0
    %2450 = vmatpush1.msra.mxu0 %v1078
    %2451 = vmatprep.subr.mxu0 0.0
    %2452 = vmatpush1.msra.mxu0 %v1077
    %2453 = vmatprep.subr.mxu0 0.0
    %2454 = vmatpush1.msra.mxu0 %v1076
    %2455 = vmatprep.subr.mxu0 0.0
    %2456 = vmatpush1.msra.mxu0 %v1075
    %2457 = vmatprep.subr.mxu0 0.0
    %2458 = vmatpush2.msra.mxu0 0.0
    %2459 = vmatprep.subr.mxu0 0.0
    %2460 = vmatpush2.msra.mxu0 0.0
    %2461 = vmatprep.subr.mxu0 0.0
    %2462 = vmatpush2.msra.mxu0 0.0
    %2463 = vmatprep.subr.mxu0 0.0
    %2464 = vmatpush2.msra.mxu0 0.0
    %2465 = vmatprep.subr.mxu0 0.0
    %2466 = vmatpush2.msra.mxu0 0.0
    %2467 = vmatprep.subr.mxu0 0.0
    %2468 = vmatpush2.msra.mxu0 0.0
    %2469 = vmatprep.subr.mxu0 0.0
    %2470 = vmatpush2.msra.mxu0 0.0
    %2471 = vmatprep.subr.mxu0 0.0
    %2472 = vmatpush2.msra.mxu0 0.0
    %2473 = vmatprep.subr.mxu0 0.0
    %2474 = vmatpush2.msra.mxu0 0.0
    %2475 = vmatprep.subr.mxu0 0.0
    %2476 = vmatpush2.msra.mxu0 0.0
    %2477 = vmatprep.subr.mxu0 0.0
    %2478 = vmatpush2.msra.mxu0 0.0
    %2479 = vmatprep.subr.mxu0 0.0
    %2480 = vmatpush2.msra.mxu0 0.0
    %2481 = vmatprep.subr.mxu0 0.0
    %2482 = vmatpush2.msra.mxu0 0.0
    %2483 = vmatprep.subr.mxu0 0.0
    %2484 = vmatpush2.msra.mxu0 0.0
    %2485 = vmatprep.subr.mxu0 0.0
    %2486 = vmatpush2.msra.mxu0 0.0
    %2487 = vmatprep.subr.mxu0 0.0
    %2488 = vmatpush2.msra.mxu0 0.0
    %2489 = vmatprep.mubr.f32.mxu0 0.0
    %2490 = vmatmul.mubr.f32.gmra.mxu0 %v2195
    %v2491 = vpop.f32.mrf.mxu0
    %v2492 = vadd.f32 %v2422, %v2491
    %v2493 = vpop.f32.mrf.mxu0
    %2494 = vdwg.mxu0
    %v2495 = vtanh.pop %v2492
    %v2497 = vsel %vm59, %v2495, 0
    %2499 = vmatprep.subr.mxu0 0.0
    %2500 = vmatpush1.msra.mxu0 0.0
    %2501 = vmatprep.subr.mxu0 0.0
    %2502 = vmatpush1.msra.mxu0 0.0
    %2503 = vmatprep.subr.mxu0 0.0
    %2504 = vmatpush1.msra.mxu0 0.0
    %2505 = vmatprep.subr.mxu0 0.0
    %2506 = vmatpush1.msra.mxu0 0.0
    %2507 = vmatprep.subr.mxu0 0.0
    %2508 = vmatpush1.msra.mxu0 0.0
    %2509 = vmatprep.subr.mxu0 0.0
    %2510 = vmatpush1.msra.mxu0 0.0
    %2511 = vmatprep.subr.mxu0 0.0
    %2512 = vmatpush1.msra.mxu0 0.0
    %2513 = vmatprep.subr.mxu0 0.0
    %2514 = vmatpush1.msra.mxu0 0.0
    %2515 = vmatprep.subr.mxu0 0.0
    %2516 = vmatpush1.msra.mxu0 0.0
    %2517 = vmatprep.subr.mxu0 0.0
    %2518 = vmatpush1.msra.mxu0 0.0
    %2519 = vmatprep.subr.mxu0 0.0
    %2520 = vmatpush1.msra.mxu0 0.0
    %2521 = vmatprep.subr.mxu0 0.0
    %2522 = vmatpush1.msra.mxu0 0.0
    %2523 = vmatprep.subr.mxu0 0.0
    %2524 = vmatpush1.msra.mxu0 %v1086
    %2525 = vmatprep.subr.mxu0 0.0
    %2526 = vmatpush1.msra.mxu0 %v1085
    %2527 = vmatprep.subr.mxu0 0.0
    %2528 = vmatpush1.msra.mxu0 %v1084
    %2529 = vmatprep.subr.mxu0 0.0
    %2530 = vmatpush1.msra.mxu0 %v1083
    %2531 = vmatprep.subr.mxu0 0.0
    %2532 = vmatpush2.msra.mxu0 0.0
    %2533 = vmatprep.subr.mxu0 0.0
    %2534 = vmatpush2.msra.mxu0 0.0
    %2535 = vmatprep.subr.mxu0 0.0
    %2536 = vmatpush2.msra.mxu0 0.0
    %2537 = vmatprep.subr.mxu0 0.0
    %2538 = vmatpush2.msra.mxu0 0.0
    %2539 = vmatprep.subr.mxu0 0.0
    %2540 = vmatpush2.msra.mxu0 0.0
    %2541 = vmatprep.subr.mxu0 0.0
    %2542 = vmatpush2.msra.mxu0 0.0
    %2543 = vmatprep.subr.mxu0 0.0
    %2544 = vmatpush2.msra.mxu0 0.0
    %2545 = vmatprep.subr.mxu0 0.0
    %2546 = vmatpush2.msra.mxu0 0.0
    %2547 = vmatprep.subr.mxu0 0.0
    %2548 = vmatpush2.msra.mxu0 0.0
    %2549 = vmatprep.subr.mxu0 0.0
    %2550 = vmatpush2.msra.mxu0 0.0
    %2551 = vmatprep.subr.mxu0 0.0
    %2552 = vmatpush2.msra.mxu0 0.0
    %2553 = vmatprep.subr.mxu0 0.0
    %2554 = vmatpush2.msra.mxu0 0.0
    %2555 = vmatprep.subr.mxu0 0.0
    %2556 = vmatpush2.msra.mxu0 0.0
    %2557 = vmatprep.subr.mxu0 0.0
    %2558 = vmatpush2.msra.mxu0 0.0
    %2559 = vmatprep.subr.mxu0 0.0
    %2560 = vmatpush2.msra.mxu0 0.0
    %2561 = vmatprep.subr.mxu0 0.0
    %2562 = vmatpush2.msra.mxu0 0.0
    %2563 = vmatprep.mubr.f32.mxu0 0.0
    %2564 = vmatmul.mubr.f32.gmra.mxu0 %v2497
    %v2565 = vpop.f32.mrf.mxu0
    %v2566 = vadd.f32 %v1519, %v2565
    %v2567 = vpop.f32.mrf.mxu0
    %2568 = vdwg.mxu0
    %v2569 = vsel %vm1594, %v2566, -inf
    %2570 = vmax.xlane.f32.xlu0 %v2569
    %v2571 = vpop.xlane.xlu0 %2570
    %v2572 = vsub.f32 %v2566, %v2571
    %v2573 = vmul.f32 %v2572, 1.442695
    %v2574 = vpow.pop %v2573
    %v2575 = vsel %vm1594, %v2574, 0.0
    %2576 = vadd.xlane.f32.xlu0 %v2575
    %v2577 = vpop.xlane.xlu0 %2576
    %v2578 = vlog2.pop %v2577
    %v2579 = vmul.f32 %v2578, 0.6931472
    %v2580 = vadd.f32 %v2579, %v2571
    %v2581 = vsub.f32 %v2566, %v2580
    %2582 = vst [vmem:[%s12 + $0x4] sm:$0x3] %v2581
    %v2583 = vld [vmem:[#allocation3 + $0x6] sm:$0x3]
    %2584 = vmatprep.subr.mxu0 0.0
    %2585 = vmatpush1.msra.mxu0 0.0
    %2586 = vmatprep.subr.mxu0 0.0
    %2587 = vmatpush1.msra.mxu0 0.0
    %2588 = vmatprep.subr.mxu0 0.0
    %2589 = vmatpush1.msra.mxu0 0.0
    %2590 = vmatprep.subr.mxu0 0.0
    %2591 = vmatpush1.msra.mxu0 0.0
    %2592 = vmatprep.subr.mxu0 0.0
    %2593 = vmatpush1.msra.mxu0 0.0
    %2594 = vmatprep.subr.mxu0 0.0
    %2595 = vmatpush1.msra.mxu0 0.0
    %2596 = vmatprep.subr.mxu0 0.0
    %2597 = vmatpush1.msra.mxu0 0.0
    %2598 = vmatprep.subr.mxu0 0.0
    %2599 = vmatpush1.msra.mxu0 0.0
    %2600 = vmatprep.subr.mxu0 0.0
    %2601 = vmatpush1.msra.mxu0 0.0
    %2602 = vmatprep.subr.mxu0 0.0
    %2603 = vmatpush1.msra.mxu0 0.0
    %2604 = vmatprep.subr.mxu0 0.0
    %2605 = vmatpush1.msra.mxu0 0.0
    %2606 = vmatprep.subr.mxu0 0.0
    %2607 = vmatpush1.msra.mxu0 0.0
    %2608 = vmatprep.subr.mxu0 0.0
    %2609 = vmatpush1.msra.mxu0 %v1074
    %2610 = vmatprep.subr.mxu0 0.0
    %2611 = vmatpush1.msra.mxu0 %v1073
    %2612 = vmatprep.subr.mxu0 0.0
    %2613 = vmatpush1.msra.mxu0 %v1072
    %2614 = vmatprep.subr.mxu0 0.0
    %2615 = vmatpush1.msra.mxu0 %v1071
    %2616 = vmatprep.subr.mxu0 0.0
    %2617 = vmatpush2.msra.mxu0 0.0
    %2618 = vmatprep.subr.mxu0 0.0
    %2619 = vmatpush2.msra.mxu0 0.0
    %2620 = vmatprep.subr.mxu0 0.0
    %2621 = vmatpush2.msra.mxu0 0.0
    %2622 = vmatprep.subr.mxu0 0.0
    %2623 = vmatpush2.msra.mxu0 0.0
    %2624 = vmatprep.subr.mxu0 0.0
    %2625 = vmatpush2.msra.mxu0 0.0
    %2626 = vmatprep.subr.mxu0 0.0
    %2627 = vmatpush2.msra.mxu0 0.0
    %2628 = vmatprep.subr.mxu0 0.0
    %2629 = vmatpush2.msra.mxu0 0.0
    %2630 = vmatprep.subr.mxu0 0.0
    %2631 = vmatpush2.msra.mxu0 0.0
    %2632 = vmatprep.subr.mxu0 0.0
    %2633 = vmatpush2.msra.mxu0 0.0
    %2634 = vmatprep.subr.mxu0 0.0
    %2635 = vmatpush2.msra.mxu0 0.0
    %2636 = vmatprep.subr.mxu0 0.0
    %2637 = vmatpush2.msra.mxu0 0.0
    %2638 = vmatprep.subr.mxu0 0.0
    %2639 = vmatpush2.msra.mxu0 0.0
    %2640 = vmatprep.subr.mxu0 0.0
    %2641 = vmatpush2.msra.mxu0 0.0
    %2642 = vmatprep.subr.mxu0 0.0
    %2643 = vmatpush2.msra.mxu0 0.0
    %2644 = vmatprep.subr.mxu0 0.0
    %2645 = vmatpush2.msra.mxu0 0.0
    %2646 = vmatprep.subr.mxu0 0.0
    %2647 = vmatpush2.msra.mxu0 0.0
    %2648 = vmatprep.mubr.f32.mxu0 0.0
    %2649 = vmatmul.mubr.f32.gmra.mxu0 %v2195
    %v2650 = vpop.f32.mrf.mxu0
    %v2651 = vadd.f32 0.0, %v2650
    %v2652 = vpop.f32.mrf.mxu0
    %2653 = vdwg.mxu0
    %v2654 = vadd.f32 %v2583, %v2651
    %v2655 = vxor.u32 %v2654, 2147483648
    %v2656 = vmul.f32 %v2655, 1.442695
    %v2657 = vpow.pop %v2656
    %v2658 = vadd.f32 %v2657, 1.0
    %v2659 = vrcp.pop %v2658
    %v2660 = vmul.f32 1.0, %v2659
    %v2661 = vtanh.pop %v2654
    %v2662 = vmul.f32 %v2660, %v2185
    %2664 = vrot.lane.b32.xlu0 %v2661, 64
    %v2665 = vpop.permute.xlu0 %2664
    %v2667 = vmul.f32 %v2660, %v2665
    %2669 = vrot.lane.b32.xlu0 %v2667, 32
    %v2670 = vpop.permute.xlu0 %2669
    %v2672 = vadd.f32 %v2662, %v2670
    %v2673 = vtanh.pop %v2672
    %2675 = vrot.lane.b32.xlu0 %v2673, 64
    %v2676 = vpop.permute.xlu0 %2675
    %v2678 = vmul.f32 %v2660, %v2676
    %2680 = vrot.lane.b32.xlu0 %v2678, 32
    %v2681 = vpop.permute.xlu0 %2680
    %v2682 = vsel %vm59, %v2681, 0
    %2684 = vmatprep.subr.mxu0 0.0
    %2685 = vmatpush1.xpose.msra.mxu0 0.0
    %2686 = vmatprep.subr.mxu0 0.0
    %2687 = vmatpush1.xpose.msra.mxu0 0.0
    %2688 = vmatprep.subr.mxu0 0.0
    %2689 = vmatpush1.xpose.msra.mxu0 0.0
    %2690 = vmatprep.subr.mxu0 0.0
    %2691 = vmatpush1.xpose.msra.mxu0 0.0
    %2692 = vmatprep.subr.mxu0 0.0
    %2693 = vmatpush1.xpose.msra.mxu0 0.0
    %2694 = vmatprep.subr.mxu0 0.0
    %2695 = vmatpush1.xpose.msra.mxu0 0.0
    %2696 = vmatprep.subr.mxu0 0.0
    %2697 = vmatpush1.xpose.msra.mxu0 0.0
    %2698 = vmatprep.subr.mxu0 0.0
    %2699 = vmatpush1.xpose.msra.mxu0 0.0
    %2700 = vmatprep.subr.mxu0 0.0
    %2701 = vmatpush1.xpose.msra.mxu0 0.0
    %2702 = vmatprep.subr.mxu0 0.0
    %2703 = vmatpush1.xpose.msra.mxu0 0.0
    %2704 = vmatprep.subr.mxu0 0.0
    %2705 = vmatpush1.xpose.msra.mxu0 0.0
    %2706 = vmatprep.subr.mxu0 0.0
    %2707 = vmatpush1.xpose.msra.mxu0 0.0
    %2708 = vmatprep.subr.mxu0 0.0
    %2709 = vmatpush1.xpose.msra.mxu0 0.0
    %2710 = vmatprep.subr.mxu0 0.0
    %2711 = vmatpush1.xpose.msra.mxu0 0.0
    %2712 = vmatprep.subr.mxu0 0.0
    %2713 = vmatpush1.xpose.msra.mxu0 %v1212
    %2714 = vmatprep.subr.mxu0 0.0
    %2715 = vmatpush1.xpose.msra.mxu0 %v1209
    %2716 = vmatprep.subr.mxu0 0.0
    %2717 = vmatpush2.xpose.msra.mxu0 0.0
    %2718 = vmatprep.subr.mxu0 0.0
    %2719 = vmatpush2.xpose.msra.mxu0 0.0
    %2720 = vmatprep.subr.mxu0 0.0
    %2721 = vmatpush2.xpose.msra.mxu0 0.0
    %2722 = vmatprep.subr.mxu0 0.0
    %2723 = vmatpush2.xpose.msra.mxu0 0.0
    %2724 = vmatprep.subr.mxu0 0.0
    %2725 = vmatpush2.xpose.msra.mxu0 0.0
    %2726 = vmatprep.subr.mxu0 0.0
    %2727 = vmatpush2.xpose.msra.mxu0 0.0
    %2728 = vmatprep.subr.mxu0 0.0
    %2729 = vmatpush2.xpose.msra.mxu0 0.0
    %2730 = vmatprep.subr.mxu0 0.0
    %2731 = vmatpush2.xpose.msra.mxu0 0.0
    %2732 = vmatprep.subr.mxu0 0.0
    %2733 = vmatpush2.xpose.msra.mxu0 0.0
    %2734 = vmatprep.subr.mxu0 0.0
    %2735 = vmatpush2.xpose.msra.mxu0 0.0
    %2736 = vmatprep.subr.mxu0 0.0
    %2737 = vmatpush2.xpose.msra.mxu0 0.0
    %2738 = vmatprep.subr.mxu0 0.0
    %2739 = vmatpush2.xpose.msra.mxu0 0.0
    %2740 = vmatprep.subr.mxu0 0.0
    %2741 = vmatpush2.xpose.msra.mxu0 0.0
    %2742 = vmatprep.subr.mxu0 0.0
    %2743 = vmatpush2.xpose.msra.mxu0 0.0
    %2744 = vmatprep.subr.mxu0 0.0
    %2745 = vmatpush2.xpose.msra.mxu0 0.0
    %2746 = vmatprep.subr.mxu0 0.0
    %2747 = vmatpush2.xpose.msra.mxu0 0.0
    %2748 = vmatprep.mubr.f32.mxu0 0.0
    %2749 = vmatmul.mubr.f32.gmra.mxu0 %v2682
    %v2750 = vpop.f32.mrf.mxu0
    %v2751 = vadd.f32 0.0, %v2750
    %v2752 = vpop.f32.mrf.mxu0
    %2753 = vdwg.mxu0
    %v2754 = vsel %vm1104, %v2751, -1e+30
    %v2755 = vsel %vm1285, %v2754, -inf
    %2756 = vmax.xlane.f32.xlu0 %v2755
    %v2757 = vpop.xlane.xlu0 %2756
    %v2758 = vsub.f32 %v2754, %v2757
    %v2759 = vmul.f32 %v2758, 1.442695
    %v2760 = vpow.pop %v2759
    %v2761 = vsel %vm1285, %v2760, 0.0
    %2762 = vadd.xlane.f32.xlu0 %v2761
    %v2763 = vpop.xlane.xlu0 %2762
    %v2764 = vrcp.pop %v2763
    %v2765 = vmul.f32 %v2760, %v2764
    %v2767 = vsel %vm1297, %v2765, 0
    %2769 = vmatprep.subr.mxu0 0.0
    %2770 = vmatpush1.msra.mxu0 0.0
    %2771 = vmatprep.subr.mxu0 0.0
    %2772 = vmatpush1.msra.mxu0 0.0
    %2773 = vmatprep.subr.mxu0 0.0
    %2774 = vmatpush1.msra.mxu0 0.0
    %2775 = vmatprep.subr.mxu0 0.0
    %2776 = vmatpush1.msra.mxu0 0.0
    %2777 = vmatprep.subr.mxu0 0.0
    %2778 = vmatpush1.msra.mxu0 0.0
    %2779 = vmatprep.subr.mxu0 0.0
    %2780 = vmatpush1.msra.mxu0 0.0
    %2781 = vmatprep.subr.mxu0 0.0
    %2782 = vmatpush1.msra.mxu0 0.0
    %2783 = vmatprep.subr.mxu0 0.0
    %2784 = vmatpush1.msra.mxu0 0.0
    %2785 = vmatprep.subr.mxu0 0.0
    %2786 = vmatpush1.msra.mxu0 0.0
    %2787 = vmatprep.subr.mxu0 0.0
    %2788 = vmatpush1.msra.mxu0 0.0
    %2789 = vmatprep.subr.mxu0 0.0
    %2790 = vmatpush1.msra.mxu0 0.0
    %2791 = vmatprep.subr.mxu0 0.0
    %2792 = vmatpush1.msra.mxu0 0.0
    %2793 = vmatprep.subr.mxu0 0.0
    %2794 = vmatpush1.msra.mxu0 0.0
    %2795 = vmatprep.subr.mxu0 0.0
    %2796 = vmatpush1.msra.mxu0 0.0
    %2797 = vmatprep.subr.mxu0 0.0
    %2798 = vmatpush1.msra.mxu0 %v1070
    %2799 = vmatprep.subr.mxu0 0.0
    %2800 = vmatpush1.msra.mxu0 %v1069
    %2801 = vmatprep.subr.mxu0 0.0
    %2802 = vmatpush2.msra.mxu0 0.0
    %2803 = vmatprep.subr.mxu0 0.0
    %2804 = vmatpush2.msra.mxu0 0.0
    %2805 = vmatprep.subr.mxu0 0.0
    %2806 = vmatpush2.msra.mxu0 0.0
    %2807 = vmatprep.subr.mxu0 0.0
    %2808 = vmatpush2.msra.mxu0 0.0
    %2809 = vmatprep.subr.mxu0 0.0
    %2810 = vmatpush2.msra.mxu0 0.0
    %2811 = vmatprep.subr.mxu0 0.0
    %2812 = vmatpush2.msra.mxu0 0.0
    %2813 = vmatprep.subr.mxu0 0.0
    %2814 = vmatpush2.msra.mxu0 0.0
    %2815 = vmatprep.subr.mxu0 0.0
    %2816 = vmatpush2.msra.mxu0 0.0
    %2817 = vmatprep.subr.mxu0 0.0
    %2818 = vmatpush2.msra.mxu0 0.0
    %2819 = vmatprep.subr.mxu0 0.0
    %2820 = vmatpush2.msra.mxu0 0.0
    %2821 = vmatprep.subr.mxu0 0.0
    %2822 = vmatpush2.msra.mxu0 0.0
    %2823 = vmatprep.subr.mxu0 0.0
    %2824 = vmatpush2.msra.mxu0 0.0
    %2825 = vmatprep.subr.mxu0 0.0
    %2826 = vmatpush2.msra.mxu0 0.0
    %2827 = vmatprep.subr.mxu0 0.0
    %2828 = vmatpush2.msra.mxu0 0.0
    %2829 = vmatprep.subr.mxu0 0.0
    %2830 = vmatpush2.msra.mxu0 0.0
    %2831 = vmatprep.subr.mxu0 0.0
    %2832 = vmatpush2.msra.mxu0 0.0
    %2833 = vmatprep.mubr.f32.mxu0 0.0
    %2834 = vmatmul.mubr.f32.gmra.mxu0 %v2767
    %v2835 = vpop.f32.mrf.mxu0
    %v2836 = vadd.f32 0.0, %v2835
    %v2837 = vpop.f32.mrf.mxu0
    %2838 = vdwg.mxu0
    %v2840 = vsel %vm59, %v2836, 0
    %2842 = vmatprep.subr.mxu0 0.0
    %2843 = vmatpush1.msra.mxu0 0.0
    %2844 = vmatprep.subr.mxu0 0.0
    %2845 = vmatpush1.msra.mxu0 0.0
    %2846 = vmatprep.subr.mxu0 0.0
    %2847 = vmatpush1.msra.mxu0 0.0
    %2848 = vmatprep.subr.mxu0 0.0
    %2849 = vmatpush1.msra.mxu0 0.0
    %2850 = vmatprep.subr.mxu0 0.0
    %2851 = vmatpush1.msra.mxu0 0.0
    %2852 = vmatprep.subr.mxu0 0.0
    %2853 = vmatpush1.msra.mxu0 0.0
    %2854 = vmatprep.subr.mxu0 0.0
    %2855 = vmatpush1.msra.mxu0 0.0
    %2856 = vmatprep.subr.mxu0 0.0
    %2857 = vmatpush1.msra.mxu0 0.0
    %2858 = vmatprep.subr.mxu0 0.0
    %2859 = vmatpush1.msra.mxu0 0.0
    %2860 = vmatprep.subr.mxu0 0.0
    %2861 = vmatpush1.msra.mxu0 0.0
    %2862 = vmatprep.subr.mxu0 0.0
    %2863 = vmatpush1.msra.mxu0 0.0
    %2864 = vmatprep.subr.mxu0 0.0
    %2865 = vmatpush1.msra.mxu0 0.0
    %2866 = vmatprep.subr.mxu0 0.0
    %2867 = vmatpush1.msra.mxu0 %v1082
    %2868 = vmatprep.subr.mxu0 0.0
    %2869 = vmatpush1.msra.mxu0 %v1081
    %2870 = vmatprep.subr.mxu0 0.0
    %2871 = vmatpush1.msra.mxu0 %v1080
    %2872 = vmatprep.subr.mxu0 0.0
    %2873 = vmatpush1.msra.mxu0 %v1079
    %2874 = vmatprep.subr.mxu0 0.0
    %2875 = vmatpush2.msra.mxu0 0.0
    %2876 = vmatprep.subr.mxu0 0.0
    %2877 = vmatpush2.msra.mxu0 0.0
    %2878 = vmatprep.subr.mxu0 0.0
    %2879 = vmatpush2.msra.mxu0 0.0
    %2880 = vmatprep.subr.mxu0 0.0
    %2881 = vmatpush2.msra.mxu0 0.0
    %2882 = vmatprep.subr.mxu0 0.0
    %2883 = vmatpush2.msra.mxu0 0.0
    %2884 = vmatprep.subr.mxu0 0.0
    %2885 = vmatpush2.msra.mxu0 0.0
    %2886 = vmatprep.subr.mxu0 0.0
    %2887 = vmatpush2.msra.mxu0 0.0
    %2888 = vmatprep.subr.mxu0 0.0
    %2889 = vmatpush2.msra.mxu0 0.0
    %2890 = vmatprep.subr.mxu0 0.0
    %2891 = vmatpush2.msra.mxu0 0.0
    %2892 = vmatprep.subr.mxu0 0.0
    %2893 = vmatpush2.msra.mxu0 0.0
    %2894 = vmatprep.subr.mxu0 0.0
    %2895 = vmatpush2.msra.mxu0 0.0
    %2896 = vmatprep.subr.mxu0 0.0
    %2897 = vmatpush2.msra.mxu0 0.0
    %2898 = vmatprep.subr.mxu0 0.0
    %2899 = vmatpush2.msra.mxu0 0.0
    %2900 = vmatprep.subr.mxu0 0.0
    %2901 = vmatpush2.msra.mxu0 0.0
    %2902 = vmatprep.subr.mxu0 0.0
    %2903 = vmatpush2.msra.mxu0 0.0
    %2904 = vmatprep.subr.mxu0 0.0
    %2905 = vmatpush2.msra.mxu0 0.0
    %2906 = vmatprep.mubr.f32.mxu0 0.0
    %2907 = vmatmul.mubr.f32.gmra.mxu0 %v2840
    %v2908 = vpop.f32.mrf.mxu0
    %v2909 = vadd.f32 0.0, %v2908
    %v2910 = vpop.f32.mrf.mxu0
    %2911 = vdwg.mxu0
    %2912 = vmatprep.subr.mxu0 0.0
    %2913 = vmatpush1.msra.mxu0 0.0
    %2914 = vmatprep.subr.mxu0 0.0
    %2915 = vmatpush1.msra.mxu0 0.0
    %2916 = vmatprep.subr.mxu0 0.0
    %2917 = vmatpush1.msra.mxu0 0.0
    %2918 = vmatprep.subr.mxu0 0.0
    %2919 = vmatpush1.msra.mxu0 0.0
    %2920 = vmatprep.subr.mxu0 0.0
    %2921 = vmatpush1.msra.mxu0 0.0
    %2922 = vmatprep.subr.mxu0 0.0
    %2923 = vmatpush1.msra.mxu0 0.0
    %2924 = vmatprep.subr.mxu0 0.0
    %2925 = vmatpush1.msra.mxu0 0.0
    %2926 = vmatprep.subr.mxu0 0.0
    %2927 = vmatpush1.msra.mxu0 0.0
    %2928 = vmatprep.subr.mxu0 0.0
    %2929 = vmatpush1.msra.mxu0 0.0
    %2930 = vmatprep.subr.mxu0 0.0
    %2931 = vmatpush1.msra.mxu0 0.0
    %2932 = vmatprep.subr.mxu0 0.0
    %2933 = vmatpush1.msra.mxu0 0.0
    %2934 = vmatprep.subr.mxu0 0.0
    %2935 = vmatpush1.msra.mxu0 0.0
    %2936 = vmatprep.subr.mxu0 0.0
    %2937 = vmatpush1.msra.mxu0 %v1078
    %2938 = vmatprep.subr.mxu0 0.0
    %2939 = vmatpush1.msra.mxu0 %v1077
    %2940 = vmatprep.subr.mxu0 0.0
    %2941 = vmatpush1.msra.mxu0 %v1076
    %2942 = vmatprep.subr.mxu0 0.0
    %2943 = vmatpush1.msra.mxu0 %v1075
    %2944 = vmatprep.subr.mxu0 0.0
    %2945 = vmatpush2.msra.mxu0 0.0
    %2946 = vmatprep.subr.mxu0 0.0
    %2947 = vmatpush2.msra.mxu0 0.0
    %2948 = vmatprep.subr.mxu0 0.0
    %2949 = vmatpush2.msra.mxu0 0.0
    %2950 = vmatprep.subr.mxu0 0.0
    %2951 = vmatpush2.msra.mxu0 0.0
    %2952 = vmatprep.subr.mxu0 0.0
    %2953 = vmatpush2.msra.mxu0 0.0
    %2954 = vmatprep.subr.mxu0 0.0
    %2955 = vmatpush2.msra.mxu0 0.0
    %2956 = vmatprep.subr.mxu0 0.0
    %2957 = vmatpush2.msra.mxu0 0.0
    %2958 = vmatprep.subr.mxu0 0.0
    %2959 = vmatpush2.msra.mxu0 0.0
    %2960 = vmatprep.subr.mxu0 0.0
    %2961 = vmatpush2.msra.mxu0 0.0
    %2962 = vmatprep.subr.mxu0 0.0
    %2963 = vmatpush2.msra.mxu0 0.0
    %2964 = vmatprep.subr.mxu0 0.0
    %2965 = vmatpush2.msra.mxu0 0.0
    %2966 = vmatprep.subr.mxu0 0.0
    %2967 = vmatpush2.msra.mxu0 0.0
    %2968 = vmatprep.subr.mxu0 0.0
    %2969 = vmatpush2.msra.mxu0 0.0
    %2970 = vmatprep.subr.mxu0 0.0
    %2971 = vmatpush2.msra.mxu0 0.0
    %2972 = vmatprep.subr.mxu0 0.0
    %2973 = vmatpush2.msra.mxu0 0.0
    %2974 = vmatprep.subr.mxu0 0.0
    %2975 = vmatpush2.msra.mxu0 0.0
    %2976 = vmatprep.mubr.f32.mxu0 0.0
    %2977 = vmatmul.mubr.f32.gmra.mxu0 %v2682
    %v2978 = vpop.f32.mrf.mxu0
    %v2979 = vadd.f32 %v2909, %v2978
    %v2980 = vpop.f32.mrf.mxu0
    %2981 = vdwg.mxu0
    %v2982 = vtanh.pop %v2979
    %v2984 = vsel %vm59, %v2982, 0
    %2986 = vmatprep.subr.mxu0 0.0
    %2987 = vmatpush1.msra.mxu0 0.0
    %2988 = vmatprep.subr.mxu0 0.0
    %2989 = vmatpush1.msra.mxu0 0.0
    %2990 = vmatprep.subr.mxu0 0.0
    %2991 = vmatpush1.msra.mxu0 0.0
    %2992 = vmatprep.subr.mxu0 0.0
    %2993 = vmatpush1.msra.mxu0 0.0
    %2994 = vmatprep.subr.mxu0 0.0
    %2995 = vmatpush1.msra.mxu0 0.0
    %2996 = vmatprep.subr.mxu0 0.0
    %2997 = vmatpush1.msra.mxu0 0.0
    %2998 = vmatprep.subr.mxu0 0.0
    %2999 = vmatpush1.msra.mxu0 0.0
    %3000 = vmatprep.subr.mxu0 0.0
    %3001 = vmatpush1.msra.mxu0 0.0
    %3002 = vmatprep.subr.mxu0 0.0
    %3003 = vmatpush1.msra.mxu0 0.0
    %3004 = vmatprep.subr.mxu0 0.0
    %3005 = vmatpush1.msra.mxu0 0.0
    %3006 = vmatprep.subr.mxu0 0.0
    %3007 = vmatpush1.msra.mxu0 0.0
    %3008 = vmatprep.subr.mxu0 0.0
    %3009 = vmatpush1.msra.mxu0 0.0
    %3010 = vmatprep.subr.mxu0 0.0
    %3011 = vmatpush1.msra.mxu0 %v1086
    %3012 = vmatprep.subr.mxu0 0.0
    %3013 = vmatpush1.msra.mxu0 %v1085
    %3014 = vmatprep.subr.mxu0 0.0
    %3015 = vmatpush1.msra.mxu0 %v1084
    %3016 = vmatprep.subr.mxu0 0.0
    %3017 = vmatpush1.msra.mxu0 %v1083
    %3018 = vmatprep.subr.mxu0 0.0
    %3019 = vmatpush2.msra.mxu0 0.0
    %3020 = vmatprep.subr.mxu0 0.0
    %3021 = vmatpush2.msra.mxu0 0.0
    %3022 = vmatprep.subr.mxu0 0.0
    %3023 = vmatpush2.msra.mxu0 0.0
    %3024 = vmatprep.subr.mxu0 0.0
    %3025 = vmatpush2.msra.mxu0 0.0
    %3026 = vmatprep.subr.mxu0 0.0
    %3027 = vmatpush2.msra.mxu0 0.0
    %3028 = vmatprep.subr.mxu0 0.0
    %3029 = vmatpush2.msra.mxu0 0.0
    %3030 = vmatprep.subr.mxu0 0.0
    %3031 = vmatpush2.msra.mxu0 0.0
    %3032 = vmatprep.subr.mxu0 0.0
    %3033 = vmatpush2.msra.mxu0 0.0
    %3034 = vmatprep.subr.mxu0 0.0
    %3035 = vmatpush2.msra.mxu0 0.0
    %3036 = vmatprep.subr.mxu0 0.0
    %3037 = vmatpush2.msra.mxu0 0.0
    %3038 = vmatprep.subr.mxu0 0.0
    %3039 = vmatpush2.msra.mxu0 0.0
    %3040 = vmatprep.subr.mxu0 0.0
    %3041 = vmatpush2.msra.mxu0 0.0
    %3042 = vmatprep.subr.mxu0 0.0
    %3043 = vmatpush2.msra.mxu0 0.0
    %3044 = vmatprep.subr.mxu0 0.0
    %3045 = vmatpush2.msra.mxu0 0.0
    %3046 = vmatprep.subr.mxu0 0.0
    %3047 = vmatpush2.msra.mxu0 0.0
    %3048 = vmatprep.subr.mxu0 0.0
    %3049 = vmatpush2.msra.mxu0 0.0
    %3050 = vmatprep.mubr.f32.mxu0 0.0
    %3051 = vmatmul.mubr.f32.gmra.mxu0 %v2984
    %v3052 = vpop.f32.mrf.mxu0
    %v3053 = vadd.f32 %v1519, %v3052
    %v3054 = vpop.f32.mrf.mxu0
    %3055 = vdwg.mxu0
    %v3056 = vsel %vm1594, %v3053, -inf
    %3057 = vmax.xlane.f32.xlu0 %v3056
    %v3058 = vpop.xlane.xlu0 %3057
    %v3059 = vsub.f32 %v3053, %v3058
    %v3060 = vmul.f32 %v3059, 1.442695
    %v3061 = vpow.pop %v3060
    %v3062 = vsel %vm1594, %v3061, 0.0
    %3063 = vadd.xlane.f32.xlu0 %v3062
    %v3064 = vpop.xlane.xlu0 %3063
    %v3065 = vlog2.pop %v3064
    %v3066 = vmul.f32 %v3065, 0.6931472
    %v3067 = vadd.f32 %v3066, %v3058
    %v3068 = vsub.f32 %v3053, %v3067
    %3069 = vst [vmem:[%s12 + $0x6] sm:$0x3] %v3068
    %v3070 = vld [vmem:[#allocation3 + $0x8] sm:$0x3]
    %3071 = vmatprep.subr.mxu0 0.0
    %3072 = vmatpush1.msra.mxu0 0.0
    %3073 = vmatprep.subr.mxu0 0.0
    %3074 = vmatpush1.msra.mxu0 0.0
    %3075 = vmatprep.subr.mxu0 0.0
    %3076 = vmatpush1.msra.mxu0 0.0
    %3077 = vmatprep.subr.mxu0 0.0
    %3078 = vmatpush1.msra.mxu0 0.0
    %3079 = vmatprep.subr.mxu0 0.0
    %3080 = vmatpush1.msra.mxu0 0.0
    %3081 = vmatprep.subr.mxu0 0.0
    %3082 = vmatpush1.msra.mxu0 0.0
    %3083 = vmatprep.subr.mxu0 0.0
    %3084 = vmatpush1.msra.mxu0 0.0
    %3085 = vmatprep.subr.mxu0 0.0
    %3086 = vmatpush1.msra.mxu0 0.0
    %3087 = vmatprep.subr.mxu0 0.0
    %3088 = vmatpush1.msra.mxu0 0.0
    %3089 = vmatprep.subr.mxu0 0.0
    %3090 = vmatpush1.msra.mxu0 0.0
    %3091 = vmatprep.subr.mxu0 0.0
    %3092 = vmatpush1.msra.mxu0 0.0
    %3093 = vmatprep.subr.mxu0 0.0
    %3094 = vmatpush1.msra.mxu0 0.0
    %3095 = vmatprep.subr.mxu0 0.0
    %3096 = vmatpush1.msra.mxu0 %v1074
    %3097 = vmatprep.subr.mxu0 0.0
    %3098 = vmatpush1.msra.mxu0 %v1073
    %3099 = vmatprep.subr.mxu0 0.0
    %3100 = vmatpush1.msra.mxu0 %v1072
    %3101 = vmatprep.subr.mxu0 0.0
    %3102 = vmatpush1.msra.mxu0 %v1071
    %3103 = vmatprep.subr.mxu0 0.0
    %3104 = vmatpush2.msra.mxu0 0.0
    %3105 = vmatprep.subr.mxu0 0.0
    %3106 = vmatpush2.msra.mxu0 0.0
    %3107 = vmatprep.subr.mxu0 0.0
    %3108 = vmatpush2.msra.mxu0 0.0
    %3109 = vmatprep.subr.mxu0 0.0
    %3110 = vmatpush2.msra.mxu0 0.0
    %3111 = vmatprep.subr.mxu0 0.0
    %3112 = vmatpush2.msra.mxu0 0.0
    %3113 = vmatprep.subr.mxu0 0.0
    %3114 = vmatpush2.msra.mxu0 0.0
    %3115 = vmatprep.subr.mxu0 0.0
    %3116 = vmatpush2.msra.mxu0 0.0
    %3117 = vmatprep.subr.mxu0 0.0
    %3118 = vmatpush2.msra.mxu0 0.0
    %3119 = vmatprep.subr.mxu0 0.0
    %3120 = vmatpush2.msra.mxu0 0.0
    %3121 = vmatprep.subr.mxu0 0.0
    %3122 = vmatpush2.msra.mxu0 0.0
    %3123 = vmatprep.subr.mxu0 0.0
    %3124 = vmatpush2.msra.mxu0 0.0
    %3125 = vmatprep.subr.mxu0 0.0
    %3126 = vmatpush2.msra.mxu0 0.0
    %3127 = vmatprep.subr.mxu0 0.0
    %3128 = vmatpush2.msra.mxu0 0.0
    %3129 = vmatprep.subr.mxu0 0.0
    %3130 = vmatpush2.msra.mxu0 0.0
    %3131 = vmatprep.subr.mxu0 0.0
    %3132 = vmatpush2.msra.mxu0 0.0
    %3133 = vmatprep.subr.mxu0 0.0
    %3134 = vmatpush2.msra.mxu0 0.0
    %3135 = vmatprep.mubr.f32.mxu0 0.0
    %3136 = vmatmul.mubr.f32.gmra.mxu0 %v2682
    %v3137 = vpop.f32.mrf.mxu0
    %v3138 = vadd.f32 0.0, %v3137
    %v3139 = vpop.f32.mrf.mxu0
    %3140 = vdwg.mxu0
    %v3141 = vadd.f32 %v3070, %v3138
    %v3142 = vxor.u32 %v3141, 2147483648
    %v3143 = vmul.f32 %v3142, 1.442695
    %v3144 = vpow.pop %v3143
    %v3145 = vadd.f32 %v3144, 1.0
    %v3146 = vrcp.pop %v3145
    %v3147 = vmul.f32 1.0, %v3146
    %v3148 = vtanh.pop %v3141
    %v3149 = vmul.f32 %v3147, %v2672
    %3151 = vrot.lane.b32.xlu0 %v3148, 64
    %v3152 = vpop.permute.xlu0 %3151
    %v3154 = vmul.f32 %v3147, %v3152
    %3156 = vrot.lane.b32.xlu0 %v3154, 32
    %v3157 = vpop.permute.xlu0 %3156
    %v3159 = vadd.f32 %v3149, %v3157
    %v3160 = vtanh.pop %v3159
    %3162 = vrot.lane.b32.xlu0 %v3160, 64
    %v3163 = vpop.permute.xlu0 %3162
    %v3165 = vmul.f32 %v3147, %v3163
    %3167 = vrot.lane.b32.xlu0 %v3165, 32
    %v3168 = vpop.permute.xlu0 %3167
    %v3169 = vsel %vm59, %v3168, 0
    %3171 = vmatprep.subr.mxu0 0.0
    %3172 = vmatpush1.xpose.msra.mxu0 0.0
    %3173 = vmatprep.subr.mxu0 0.0
    %3174 = vmatpush1.xpose.msra.mxu0 0.0
    %3175 = vmatprep.subr.mxu0 0.0
    %3176 = vmatpush1.xpose.msra.mxu0 0.0
    %3177 = vmatprep.subr.mxu0 0.0
    %3178 = vmatpush1.xpose.msra.mxu0 0.0
    %3179 = vmatprep.subr.mxu0 0.0
    %3180 = vmatpush1.xpose.msra.mxu0 0.0
    %3181 = vmatprep.subr.mxu0 0.0
    %3182 = vmatpush1.xpose.msra.mxu0 0.0
    %3183 = vmatprep.subr.mxu0 0.0
    %3184 = vmatpush1.xpose.msra.mxu0 0.0
    %3185 = vmatprep.subr.mxu0 0.0
    %3186 = vmatpush1.xpose.msra.mxu0 0.0
    %3187 = vmatprep.subr.mxu0 0.0
    %3188 = vmatpush1.xpose.msra.mxu0 0.0
    %3189 = vmatprep.subr.mxu0 0.0
    %3190 = vmatpush1.xpose.msra.mxu0 0.0
    %3191 = vmatprep.subr.mxu0 0.0
    %3192 = vmatpush1.xpose.msra.mxu0 0.0
    %3193 = vmatprep.subr.mxu0 0.0
    %3194 = vmatpush1.xpose.msra.mxu0 0.0
    %3195 = vmatprep.subr.mxu0 0.0
    %3196 = vmatpush1.xpose.msra.mxu0 0.0
    %3197 = vmatprep.subr.mxu0 0.0
    %3198 = vmatpush1.xpose.msra.mxu0 0.0
    %3199 = vmatprep.subr.mxu0 0.0
    %3200 = vmatpush1.xpose.msra.mxu0 %v1212
    %3201 = vmatprep.subr.mxu0 0.0
    %3202 = vmatpush1.xpose.msra.mxu0 %v1209
    %3203 = vmatprep.subr.mxu0 0.0
    %3204 = vmatpush2.xpose.msra.mxu0 0.0
    %3205 = vmatprep.subr.mxu0 0.0
    %3206 = vmatpush2.xpose.msra.mxu0 0.0
    %3207 = vmatprep.subr.mxu0 0.0
    %3208 = vmatpush2.xpose.msra.mxu0 0.0
    %3209 = vmatprep.subr.mxu0 0.0
    %3210 = vmatpush2.xpose.msra.mxu0 0.0
    %3211 = vmatprep.subr.mxu0 0.0
    %3212 = vmatpush2.xpose.msra.mxu0 0.0
    %3213 = vmatprep.subr.mxu0 0.0
    %3214 = vmatpush2.xpose.msra.mxu0 0.0
    %3215 = vmatprep.subr.mxu0 0.0
    %3216 = vmatpush2.xpose.msra.mxu0 0.0
    %3217 = vmatprep.subr.mxu0 0.0
    %3218 = vmatpush2.xpose.msra.mxu0 0.0
    %3219 = vmatprep.subr.mxu0 0.0
    %3220 = vmatpush2.xpose.msra.mxu0 0.0
    %3221 = vmatprep.subr.mxu0 0.0
    %3222 = vmatpush2.xpose.msra.mxu0 0.0
    %3223 = vmatprep.subr.mxu0 0.0
    %3224 = vmatpush2.xpose.msra.mxu0 0.0
    %3225 = vmatprep.subr.mxu0 0.0
    %3226 = vmatpush2.xpose.msra.mxu0 0.0
    %3227 = vmatprep.subr.mxu0 0.0
    %3228 = vmatpush2.xpose.msra.mxu0 0.0
    %3229 = vmatprep.subr.mxu0 0.0
    %3230 = vmatpush2.xpose.msra.mxu0 0.0
    %3231 = vmatprep.subr.mxu0 0.0
    %3232 = vmatpush2.xpose.msra.mxu0 0.0
    %3233 = vmatprep.subr.mxu0 0.0
    %3234 = vmatpush2.xpose.msra.mxu0 0.0
    %3235 = vmatprep.mubr.f32.mxu0 0.0
    %3236 = vmatmul.mubr.f32.gmra.mxu0 %v3169
    %v3237 = vpop.f32.mrf.mxu0
    %v3238 = vadd.f32 0.0, %v3237
    %v3239 = vpop.f32.mrf.mxu0
    %3240 = vdwg.mxu0
    %v3241 = vsel %vm1104, %v3238, -1e+30
    %v3242 = vsel %vm1285, %v3241, -inf
    %3243 = vmax.xlane.f32.xlu0 %v3242
    %v3244 = vpop.xlane.xlu0 %3243
    %v3245 = vsub.f32 %v3241, %v3244
    %v3246 = vmul.f32 %v3245, 1.442695
    %v3247 = vpow.pop %v3246
    %v3248 = vsel %vm1285, %v3247, 0.0
    %3249 = vadd.xlane.f32.xlu0 %v3248
    %v3250 = vpop.xlane.xlu0 %3249
    %v3251 = vrcp.pop %v3250
    %v3252 = vmul.f32 %v3247, %v3251
    %v3254 = vsel %vm1297, %v3252, 0
    %3256 = vmatprep.subr.mxu0 0.0
    %3257 = vmatpush1.msra.mxu0 0.0
    %3258 = vmatprep.subr.mxu0 0.0
    %3259 = vmatpush1.msra.mxu0 0.0
    %3260 = vmatprep.subr.mxu0 0.0
    %3261 = vmatpush1.msra.mxu0 0.0
    %3262 = vmatprep.subr.mxu0 0.0
    %3263 = vmatpush1.msra.mxu0 0.0
    %3264 = vmatprep.subr.mxu0 0.0
    %3265 = vmatpush1.msra.mxu0 0.0
    %3266 = vmatprep.subr.mxu0 0.0
    %3267 = vmatpush1.msra.mxu0 0.0
    %3268 = vmatprep.subr.mxu0 0.0
    %3269 = vmatpush1.msra.mxu0 0.0
    %3270 = vmatprep.subr.mxu0 0.0
    %3271 = vmatpush1.msra.mxu0 0.0
    %3272 = vmatprep.subr.mxu0 0.0
    %3273 = vmatpush1.msra.mxu0 0.0
    %3274 = vmatprep.subr.mxu0 0.0
    %3275 = vmatpush1.msra.mxu0 0.0
    %3276 = vmatprep.subr.mxu0 0.0
    %3277 = vmatpush1.msra.mxu0 0.0
    %3278 = vmatprep.subr.mxu0 0.0
    %3279 = vmatpush1.msra.mxu0 0.0
    %3280 = vmatprep.subr.mxu0 0.0
    %3281 = vmatpush1.msra.mxu0 0.0
    %3282 = vmatprep.subr.mxu0 0.0
    %3283 = vmatpush1.msra.mxu0 0.0
    %3284 = vmatprep.subr.mxu0 0.0
    %3285 = vmatpush1.msra.mxu0 %v1070
    %3286 = vmatprep.subr.mxu0 0.0
    %3287 = vmatpush1.msra.mxu0 %v1069
    %3288 = vmatprep.subr.mxu0 0.0
    %3289 = vmatpush2.msra.mxu0 0.0
    %3290 = vmatprep.subr.mxu0 0.0
    %3291 = vmatpush2.msra.mxu0 0.0
    %3292 = vmatprep.subr.mxu0 0.0
    %3293 = vmatpush2.msra.mxu0 0.0
    %3294 = vmatprep.subr.mxu0 0.0
    %3295 = vmatpush2.msra.mxu0 0.0
    %3296 = vmatprep.subr.mxu0 0.0
    %3297 = vmatpush2.msra.mxu0 0.0
    %3298 = vmatprep.subr.mxu0 0.0
    %3299 = vmatpush2.msra.mxu0 0.0
    %3300 = vmatprep.subr.mxu0 0.0
    %3301 = vmatpush2.msra.mxu0 0.0
    %3302 = vmatprep.subr.mxu0 0.0
    %3303 = vmatpush2.msra.mxu0 0.0
    %3304 = vmatprep.subr.mxu0 0.0
    %3305 = vmatpush2.msra.mxu0 0.0
    %3306 = vmatprep.subr.mxu0 0.0
    %3307 = vmatpush2.msra.mxu0 0.0
    %3308 = vmatprep.subr.mxu0 0.0
    %3309 = vmatpush2.msra.mxu0 0.0
    %3310 = vmatprep.subr.mxu0 0.0
    %3311 = vmatpush2.msra.mxu0 0.0
    %3312 = vmatprep.subr.mxu0 0.0
    %3313 = vmatpush2.msra.mxu0 0.0
    %3314 = vmatprep.subr.mxu0 0.0
    %3315 = vmatpush2.msra.mxu0 0.0
    %3316 = vmatprep.subr.mxu0 0.0
    %3317 = vmatpush2.msra.mxu0 0.0
    %3318 = vmatprep.subr.mxu0 0.0
    %3319 = vmatpush2.msra.mxu0 0.0
    %3320 = vmatprep.mubr.f32.mxu0 0.0
    %3321 = vmatmul.mubr.f32.gmra.mxu0 %v3254
    %v3322 = vpop.f32.mrf.mxu0
    %v3323 = vadd.f32 0.0, %v3322
    %v3324 = vpop.f32.mrf.mxu0
    %3325 = vdwg.mxu0
    %v3327 = vsel %vm59, %v3323, 0
    %3329 = vmatprep.subr.mxu0 0.0
    %3330 = vmatpush1.msra.mxu0 0.0
    %3331 = vmatprep.subr.mxu0 0.0
    %3332 = vmatpush1.msra.mxu0 0.0
    %3333 = vmatprep.subr.mxu0 0.0
    %3334 = vmatpush1.msra.mxu0 0.0
    %3335 = vmatprep.subr.mxu0 0.0
    %3336 = vmatpush1.msra.mxu0 0.0
    %3337 = vmatprep.subr.mxu0 0.0
    %3338 = vmatpush1.msra.mxu0 0.0
    %3339 = vmatprep.subr.mxu0 0.0
    %3340 = vmatpush1.msra.mxu0 0.0
    %3341 = vmatprep.subr.mxu0 0.0
    %3342 = vmatpush1.msra.mxu0 0.0
    %3343 = vmatprep.subr.mxu0 0.0
    %3344 = vmatpush1.msra.mxu0 0.0
    %3345 = vmatprep.subr.mxu0 0.0
    %3346 = vmatpush1.msra.mxu0 0.0
    %3347 = vmatprep.subr.mxu0 0.0
    %3348 = vmatpush1.msra.mxu0 0.0
    %3349 = vmatprep.subr.mxu0 0.0
    %3350 = vmatpush1.msra.mxu0 0.0
    %3351 = vmatprep.subr.mxu0 0.0
    %3352 = vmatpush1.msra.mxu0 0.0
    %3353 = vmatprep.subr.mxu0 0.0
    %3354 = vmatpush1.msra.mxu0 %v1082
    %3355 = vmatprep.subr.mxu0 0.0
    %3356 = vmatpush1.msra.mxu0 %v1081
    %3357 = vmatprep.subr.mxu0 0.0
    %3358 = vmatpush1.msra.mxu0 %v1080
    %3359 = vmatprep.subr.mxu0 0.0
    %3360 = vmatpush1.msra.mxu0 %v1079
    %3361 = vmatprep.subr.mxu0 0.0
    %3362 = vmatpush2.msra.mxu0 0.0
    %3363 = vmatprep.subr.mxu0 0.0
    %3364 = vmatpush2.msra.mxu0 0.0
    %3365 = vmatprep.subr.mxu0 0.0
    %3366 = vmatpush2.msra.mxu0 0.0
    %3367 = vmatprep.subr.mxu0 0.0
    %3368 = vmatpush2.msra.mxu0 0.0
    %3369 = vmatprep.subr.mxu0 0.0
    %3370 = vmatpush2.msra.mxu0 0.0
    %3371 = vmatprep.subr.mxu0 0.0
    %3372 = vmatpush2.msra.mxu0 0.0
    %3373 = vmatprep.subr.mxu0 0.0
    %3374 = vmatpush2.msra.mxu0 0.0
    %3375 = vmatprep.subr.mxu0 0.0
    %3376 = vmatpush2.msra.mxu0 0.0
    %3377 = vmatprep.subr.mxu0 0.0
    %3378 = vmatpush2.msra.mxu0 0.0
    %3379 = vmatprep.subr.mxu0 0.0
    %3380 = vmatpush2.msra.mxu0 0.0
    %3381 = vmatprep.subr.mxu0 0.0
    %3382 = vmatpush2.msra.mxu0 0.0
    %3383 = vmatprep.subr.mxu0 0.0
    %3384 = vmatpush2.msra.mxu0 0.0
    %3385 = vmatprep.subr.mxu0 0.0
    %3386 = vmatpush2.msra.mxu0 0.0
    %3387 = vmatprep.subr.mxu0 0.0
    %3388 = vmatpush2.msra.mxu0 0.0
    %3389 = vmatprep.subr.mxu0 0.0
    %3390 = vmatpush2.msra.mxu0 0.0
    %3391 = vmatprep.subr.mxu0 0.0
    %3392 = vmatpush2.msra.mxu0 0.0
    %3393 = vmatprep.mubr.f32.mxu0 0.0
    %3394 = vmatmul.mubr.f32.gmra.mxu0 %v3327
    %v3395 = vpop.f32.mrf.mxu0
    %v3396 = vadd.f32 0.0, %v3395
    %v3397 = vpop.f32.mrf.mxu0
    %3398 = vdwg.mxu0
    %3399 = vmatprep.subr.mxu0 0.0
    %3400 = vmatpush1.msra.mxu0 0.0
    %3401 = vmatprep.subr.mxu0 0.0
    %3402 = vmatpush1.msra.mxu0 0.0
    %3403 = vmatprep.subr.mxu0 0.0
    %3404 = vmatpush1.msra.mxu0 0.0
    %3405 = vmatprep.subr.mxu0 0.0
    %3406 = vmatpush1.msra.mxu0 0.0
    %3407 = vmatprep.subr.mxu0 0.0
    %3408 = vmatpush1.msra.mxu0 0.0
    %3409 = vmatprep.subr.mxu0 0.0
    %3410 = vmatpush1.msra.mxu0 0.0
    %3411 = vmatprep.subr.mxu0 0.0
    %3412 = vmatpush1.msra.mxu0 0.0
    %3413 = vmatprep.subr.mxu0 0.0
    %3414 = vmatpush1.msra.mxu0 0.0
    %3415 = vmatprep.subr.mxu0 0.0
    %3416 = vmatpush1.msra.mxu0 0.0
    %3417 = vmatprep.subr.mxu0 0.0
    %3418 = vmatpush1.msra.mxu0 0.0
    %3419 = vmatprep.subr.mxu0 0.0
    %3420 = vmatpush1.msra.mxu0 0.0
    %3421 = vmatprep.subr.mxu0 0.0
    %3422 = vmatpush1.msra.mxu0 0.0
    %3423 = vmatprep.subr.mxu0 0.0
    %3424 = vmatpush1.msra.mxu0 %v1078
    %3425 = vmatprep.subr.mxu0 0.0
    %3426 = vmatpush1.msra.mxu0 %v1077
    %3427 = vmatprep.subr.mxu0 0.0
    %3428 = vmatpush1.msra.mxu0 %v1076
    %3429 = vmatprep.subr.mxu0 0.0
    %3430 = vmatpush1.msra.mxu0 %v1075
    %3431 = vmatprep.subr.mxu0 0.0
    %3432 = vmatpush2.msra.mxu0 0.0
    %3433 = vmatprep.subr.mxu0 0.0
    %3434 = vmatpush2.msra.mxu0 0.0
    %3435 = vmatprep.subr.mxu0 0.0
    %3436 = vmatpush2.msra.mxu0 0.0
    %3437 = vmatprep.subr.mxu0 0.0
    %3438 = vmatpush2.msra.mxu0 0.0
    %3439 = vmatprep.subr.mxu0 0.0
    %3440 = vmatpush2.msra.mxu0 0.0
    %3441 = vmatprep.subr.mxu0 0.0
    %3442 = vmatpush2.msra.mxu0 0.0
    %3443 = vmatprep.subr.mxu0 0.0
    %3444 = vmatpush2.msra.mxu0 0.0
    %3445 = vmatprep.subr.mxu0 0.0
    %3446 = vmatpush2.msra.mxu0 0.0
    %3447 = vmatprep.subr.mxu0 0.0
    %3448 = vmatpush2.msra.mxu0 0.0
    %3449 = vmatprep.subr.mxu0 0.0
    %3450 = vmatpush2.msra.mxu0 0.0
    %3451 = vmatprep.subr.mxu0 0.0
    %3452 = vmatpush2.msra.mxu0 0.0
    %3453 = vmatprep.subr.mxu0 0.0
    %3454 = vmatpush2.msra.mxu0 0.0
    %3455 = vmatprep.subr.mxu0 0.0
    %3456 = vmatpush2.msra.mxu0 0.0
    %3457 = vmatprep.subr.mxu0 0.0
    %3458 = vmatpush2.msra.mxu0 0.0
    %3459 = vmatprep.subr.mxu0 0.0
    %3460 = vmatpush2.msra.mxu0 0.0
    %3461 = vmatprep.subr.mxu0 0.0
    %3462 = vmatpush2.msra.mxu0 0.0
    %3463 = vmatprep.mubr.f32.mxu0 0.0
    %3464 = vmatmul.mubr.f32.gmra.mxu0 %v3169
    %v3465 = vpop.f32.mrf.mxu0
    %v3466 = vadd.f32 %v3396, %v3465
    %v3467 = vpop.f32.mrf.mxu0
    %3468 = vdwg.mxu0
    %v3469 = vtanh.pop %v3466
    %v3471 = vsel %vm59, %v3469, 0
    %3473 = vmatprep.subr.mxu0 0.0
    %3474 = vmatpush1.msra.mxu0 0.0
    %3475 = vmatprep.subr.mxu0 0.0
    %3476 = vmatpush1.msra.mxu0 0.0
    %3477 = vmatprep.subr.mxu0 0.0
    %3478 = vmatpush1.msra.mxu0 0.0
    %3479 = vmatprep.subr.mxu0 0.0
    %3480 = vmatpush1.msra.mxu0 0.0
    %3481 = vmatprep.subr.mxu0 0.0
    %3482 = vmatpush1.msra.mxu0 0.0
    %3483 = vmatprep.subr.mxu0 0.0
    %3484 = vmatpush1.msra.mxu0 0.0
    %3485 = vmatprep.subr.mxu0 0.0
    %3486 = vmatpush1.msra.mxu0 0.0
    %3487 = vmatprep.subr.mxu0 0.0
    %3488 = vmatpush1.msra.mxu0 0.0
    %3489 = vmatprep.subr.mxu0 0.0
    %3490 = vmatpush1.msra.mxu0 0.0
    %3491 = vmatprep.subr.mxu0 0.0
    %3492 = vmatpush1.msra.mxu0 0.0
    %3493 = vmatprep.subr.mxu0 0.0
    %3494 = vmatpush1.msra.mxu0 0.0
    %3495 = vmatprep.subr.mxu0 0.0
    %3496 = vmatpush1.msra.mxu0 0.0
    %3497 = vmatprep.subr.mxu0 0.0
    %3498 = vmatpush1.msra.mxu0 %v1086
    %3499 = vmatprep.subr.mxu0 0.0
    %3500 = vmatpush1.msra.mxu0 %v1085
    %3501 = vmatprep.subr.mxu0 0.0
    %3502 = vmatpush1.msra.mxu0 %v1084
    %3503 = vmatprep.subr.mxu0 0.0
    %3504 = vmatpush1.msra.mxu0 %v1083
    %3505 = vmatprep.subr.mxu0 0.0
    %3506 = vmatpush2.msra.mxu0 0.0
    %3507 = vmatprep.subr.mxu0 0.0
    %3508 = vmatpush2.msra.mxu0 0.0
    %3509 = vmatprep.subr.mxu0 0.0
    %3510 = vmatpush2.msra.mxu0 0.0
    %3511 = vmatprep.subr.mxu0 0.0
    %3512 = vmatpush2.msra.mxu0 0.0
    %3513 = vmatprep.subr.mxu0 0.0
    %3514 = vmatpush2.msra.mxu0 0.0
    %3515 = vmatprep.subr.mxu0 0.0
    %3516 = vmatpush2.msra.mxu0 0.0
    %3517 = vmatprep.subr.mxu0 0.0
    %3518 = vmatpush2.msra.mxu0 0.0
    %3519 = vmatprep.subr.mxu0 0.0
    %3520 = vmatpush2.msra.mxu0 0.0
    %3521 = vmatprep.subr.mxu0 0.0
    %3522 = vmatpush2.msra.mxu0 0.0
    %3523 = vmatprep.subr.mxu0 0.0
    %3524 = vmatpush2.msra.mxu0 0.0
    %3525 = vmatprep.subr.mxu0 0.0
    %3526 = vmatpush2.msra.mxu0 0.0
    %3527 = vmatprep.subr.mxu0 0.0
    %3528 = vmatpush2.msra.mxu0 0.0
    %3529 = vmatprep.subr.mxu0 0.0
    %3530 = vmatpush2.msra.mxu0 0.0
    %3531 = vmatprep.subr.mxu0 0.0
    %3532 = vmatpush2.msra.mxu0 0.0
    %3533 = vmatprep.subr.mxu0 0.0
    %3534 = vmatpush2.msra.mxu0 0.0
    %3535 = vmatprep.subr.mxu0 0.0
    %3536 = vmatpush2.msra.mxu0 0.0
    %3537 = vmatprep.mubr.f32.mxu0 0.0
    %3538 = vmatmul.mubr.f32.gmra.mxu0 %v3471
    %v3539 = vpop.f32.mrf.mxu0
    %v3540 = vadd.f32 %v1519, %v3539
    %v3541 = vpop.f32.mrf.mxu0
    %3542 = vdwg.mxu0
    %v3543 = vsel %vm1594, %v3540, -inf
    %3544 = vmax.xlane.f32.xlu0 %v3543
    %v3545 = vpop.xlane.xlu0 %3544
    %v3546 = vsub.f32 %v3540, %v3545
    %v3547 = vmul.f32 %v3546, 1.442695
    %v3548 = vpow.pop %v3547
    %v3549 = vsel %vm1594, %v3548, 0.0
    %3550 = vadd.xlane.f32.xlu0 %v3549
    %v3551 = vpop.xlane.xlu0 %3550
    %v3552 = vlog2.pop %v3551
    %v3553 = vmul.f32 %v3552, 0.6931472
    %v3554 = vadd.f32 %v3553, %v3545
    %v3555 = vsub.f32 %v3540, %v3554
    %3556 = vst [vmem:[%s12 + $0x8] sm:$0x3] %v3555
    %v3557 = vld [vmem:[#allocation3 + $0xa] sm:$0x3]
    %3558 = vmatprep.subr.mxu0 0.0
    %3559 = vmatpush1.msra.mxu0 0.0
    %3560 = vmatprep.subr.mxu0 0.0
    %3561 = vmatpush1.msra.mxu0 0.0
    %3562 = vmatprep.subr.mxu0 0.0
    %3563 = vmatpush1.msra.mxu0 0.0
    %3564 = vmatprep.subr.mxu0 0.0
    %3565 = vmatpush1.msra.mxu0 0.0
    %3566 = vmatprep.subr.mxu0 0.0
    %3567 = vmatpush1.msra.mxu0 0.0
    %3568 = vmatprep.subr.mxu0 0.0
    %3569 = vmatpush1.msra.mxu0 0.0
    %3570 = vmatprep.subr.mxu0 0.0
    %3571 = vmatpush1.msra.mxu0 0.0
    %3572 = vmatprep.subr.mxu0 0.0
    %3573 = vmatpush1.msra.mxu0 0.0
    %3574 = vmatprep.subr.mxu0 0.0
    %3575 = vmatpush1.msra.mxu0 0.0
    %3576 = vmatprep.subr.mxu0 0.0
    %3577 = vmatpush1.msra.mxu0 0.0
    %3578 = vmatprep.subr.mxu0 0.0
    %3579 = vmatpush1.msra.mxu0 0.0
    %3580 = vmatprep.subr.mxu0 0.0
    %3581 = vmatpush1.msra.mxu0 0.0
    %3582 = vmatprep.subr.mxu0 0.0
    %3583 = vmatpush1.msra.mxu0 %v1074
    %3584 = vmatprep.subr.mxu0 0.0
    %3585 = vmatpush1.msra.mxu0 %v1073
    %3586 = vmatprep.subr.mxu0 0.0
    %3587 = vmatpush1.msra.mxu0 %v1072
    %3588 = vmatprep.subr.mxu0 0.0
    %3589 = vmatpush1.msra.mxu0 %v1071
    %3590 = vmatprep.subr.mxu0 0.0
    %3591 = vmatpush2.msra.mxu0 0.0
    %3592 = vmatprep.subr.mxu0 0.0
    %3593 = vmatpush2.msra.mxu0 0.0
    %3594 = vmatprep.subr.mxu0 0.0
    %3595 = vmatpush2.msra.mxu0 0.0
    %3596 = vmatprep.subr.mxu0 0.0
    %3597 = vmatpush2.msra.mxu0 0.0
    %3598 = vmatprep.subr.mxu0 0.0
    %3599 = vmatpush2.msra.mxu0 0.0
    %3600 = vmatprep.subr.mxu0 0.0
    %3601 = vmatpush2.msra.mxu0 0.0
    %3602 = vmatprep.subr.mxu0 0.0
    %3603 = vmatpush2.msra.mxu0 0.0
    %3604 = vmatprep.subr.mxu0 0.0
    %3605 = vmatpush2.msra.mxu0 0.0
    %3606 = vmatprep.subr.mxu0 0.0
    %3607 = vmatpush2.msra.mxu0 0.0
    %3608 = vmatprep.subr.mxu0 0.0
    %3609 = vmatpush2.msra.mxu0 0.0
    %3610 = vmatprep.subr.mxu0 0.0
    %3611 = vmatpush2.msra.mxu0 0.0
    %3612 = vmatprep.subr.mxu0 0.0
    %3613 = vmatpush2.msra.mxu0 0.0
    %3614 = vmatprep.subr.mxu0 0.0
    %3615 = vmatpush2.msra.mxu0 0.0
    %3616 = vmatprep.subr.mxu0 0.0
    %3617 = vmatpush2.msra.mxu0 0.0
    %3618 = vmatprep.subr.mxu0 0.0
    %3619 = vmatpush2.msra.mxu0 0.0
    %3620 = vmatprep.subr.mxu0 0.0
    %3621 = vmatpush2.msra.mxu0 0.0
    %3622 = vmatprep.mubr.f32.mxu0 0.0
    %3623 = vmatmul.mubr.f32.gmra.mxu0 %v3169
    %v3624 = vpop.f32.mrf.mxu0
    %v3625 = vadd.f32 0.0, %v3624
    %v3626 = vpop.f32.mrf.mxu0
    %3627 = vdwg.mxu0
    %v3628 = vadd.f32 %v3557, %v3625
    %v3629 = vxor.u32 %v3628, 2147483648
    %v3630 = vmul.f32 %v3629, 1.442695
    %v3631 = vpow.pop %v3630
    %v3632 = vadd.f32 %v3631, 1.0
    %v3633 = vrcp.pop %v3632
    %v3634 = vmul.f32 1.0, %v3633
    %v3635 = vtanh.pop %v3628
    %v3636 = vmul.f32 %v3634, %v3159
    %3638 = vrot.lane.b32.xlu0 %v3635, 64
    %v3639 = vpop.permute.xlu0 %3638
    %v3641 = vmul.f32 %v3634, %v3639
    %3643 = vrot.lane.b32.xlu0 %v3641, 32
    %v3644 = vpop.permute.xlu0 %3643
    %v3646 = vadd.f32 %v3636, %v3644
    %v3647 = vtanh.pop %v3646
    %3649 = vrot.lane.b32.xlu0 %v3647, 64
    %v3650 = vpop.permute.xlu0 %3649
    %v3652 = vmul.f32 %v3634, %v3650
    %3654 = vrot.lane.b32.xlu0 %v3652, 32
    %v3655 = vpop.permute.xlu0 %3654
    %v3656 = vsel %vm59, %v3655, 0
    %3658 = vmatprep.subr.mxu0 0.0
    %3659 = vmatpush1.xpose.msra.mxu0 0.0
    %3660 = vmatprep.subr.mxu0 0.0
    %3661 = vmatpush1.xpose.msra.mxu0 0.0
    %3662 = vmatprep.subr.mxu0 0.0
    %3663 = vmatpush1.xpose.msra.mxu0 0.0
    %3664 = vmatprep.subr.mxu0 0.0
    %3665 = vmatpush1.xpose.msra.mxu0 0.0
    %3666 = vmatprep.subr.mxu0 0.0
    %3667 = vmatpush1.xpose.msra.mxu0 0.0
    %3668 = vmatprep.subr.mxu0 0.0
    %3669 = vmatpush1.xpose.msra.mxu0 0.0
    %3670 = vmatprep.subr.mxu0 0.0
    %3671 = vmatpush1.xpose.msra.mxu0 0.0
    %3672 = vmatprep.subr.mxu0 0.0
    %3673 = vmatpush1.xpose.msra.mxu0 0.0
    %3674 = vmatprep.subr.mxu0 0.0
    %3675 = vmatpush1.xpose.msra.mxu0 0.0
    %3676 = vmatprep.subr.mxu0 0.0
    %3677 = vmatpush1.xpose.msra.mxu0 0.0
    %3678 = vmatprep.subr.mxu0 0.0
    %3679 = vmatpush1.xpose.msra.mxu0 0.0
    %3680 = vmatprep.subr.mxu0 0.0
    %3681 = vmatpush1.xpose.msra.mxu0 0.0
    %3682 = vmatprep.subr.mxu0 0.0
    %3683 = vmatpush1.xpose.msra.mxu0 0.0
    %3684 = vmatprep.subr.mxu0 0.0
    %3685 = vmatpush1.xpose.msra.mxu0 0.0
    %3686 = vmatprep.subr.mxu0 0.0
    %3687 = vmatpush1.xpose.msra.mxu0 %v1212
    %3688 = vmatprep.subr.mxu0 0.0
    %3689 = vmatpush1.xpose.msra.mxu0 %v1209
    %3690 = vmatprep.subr.mxu0 0.0
    %3691 = vmatpush2.xpose.msra.mxu0 0.0
    %3692 = vmatprep.subr.mxu0 0.0
    %3693 = vmatpush2.xpose.msra.mxu0 0.0
    %3694 = vmatprep.subr.mxu0 0.0
    %3695 = vmatpush2.xpose.msra.mxu0 0.0
    %3696 = vmatprep.subr.mxu0 0.0
    %3697 = vmatpush2.xpose.msra.mxu0 0.0
    %3698 = vmatprep.subr.mxu0 0.0
    %3699 = vmatpush2.xpose.msra.mxu0 0.0
    %3700 = vmatprep.subr.mxu0 0.0
    %3701 = vmatpush2.xpose.msra.mxu0 0.0
    %3702 = vmatprep.subr.mxu0 0.0
    %3703 = vmatpush2.xpose.msra.mxu0 0.0
    %3704 = vmatprep.subr.mxu0 0.0
    %3705 = vmatpush2.xpose.msra.mxu0 0.0
    %3706 = vmatprep.subr.mxu0 0.0
    %3707 = vmatpush2.xpose.msra.mxu0 0.0
    %3708 = vmatprep.subr.mxu0 0.0
    %3709 = vmatpush2.xpose.msra.mxu0 0.0
    %3710 = vmatprep.subr.mxu0 0.0
    %3711 = vmatpush2.xpose.msra.mxu0 0.0
    %3712 = vmatprep.subr.mxu0 0.0
    %3713 = vmatpush2.xpose.msra.mxu0 0.0
    %3714 = vmatprep.subr.mxu0 0.0
    %3715 = vmatpush2.xpose.msra.mxu0 0.0
    %3716 = vmatprep.subr.mxu0 0.0
    %3717 = vmatpush2.xpose.msra.mxu0 0.0
    %3718 = vmatprep.subr.mxu0 0.0
    %3719 = vmatpush2.xpose.msra.mxu0 0.0
    %3720 = vmatprep.subr.mxu0 0.0
    %3721 = vmatpush2.xpose.msra.mxu0 0.0
    %3722 = vmatprep.mubr.f32.mxu0 0.0
    %3723 = vmatmul.mubr.f32.gmra.mxu0 %v3656
    %v3724 = vpop.f32.mrf.mxu0
    %v3725 = vadd.f32 0.0, %v3724
    %v3726 = vpop.f32.mrf.mxu0
    %3727 = vdwg.mxu0
    %v3728 = vsel %vm1104, %v3725, -1e+30
    %v3729 = vsel %vm1285, %v3728, -inf
    %3730 = vmax.xlane.f32.xlu0 %v3729
    %v3731 = vpop.xlane.xlu0 %3730
    %v3732 = vsub.f32 %v3728, %v3731
    %v3733 = vmul.f32 %v3732, 1.442695
    %v3734 = vpow.pop %v3733
    %v3735 = vsel %vm1285, %v3734, 0.0
    %3736 = vadd.xlane.f32.xlu0 %v3735
    %v3737 = vpop.xlane.xlu0 %3736
    %v3738 = vrcp.pop %v3737
    %v3739 = vmul.f32 %v3734, %v3738
    %v3741 = vsel %vm1297, %v3739, 0
    %3743 = vmatprep.subr.mxu0 0.0
    %3744 = vmatpush1.msra.mxu0 0.0
    %3745 = vmatprep.subr.mxu0 0.0
    %3746 = vmatpush1.msra.mxu0 0.0
    %3747 = vmatprep.subr.mxu0 0.0
    %3748 = vmatpush1.msra.mxu0 0.0
    %3749 = vmatprep.subr.mxu0 0.0
    %3750 = vmatpush1.msra.mxu0 0.0
    %3751 = vmatprep.subr.mxu0 0.0
    %3752 = vmatpush1.msra.mxu0 0.0
    %3753 = vmatprep.subr.mxu0 0.0
    %3754 = vmatpush1.msra.mxu0 0.0
    %3755 = vmatprep.subr.mxu0 0.0
    %3756 = vmatpush1.msra.mxu0 0.0
    %3757 = vmatprep.subr.mxu0 0.0
    %3758 = vmatpush1.msra.mxu0 0.0
    %3759 = vmatprep.subr.mxu0 0.0
    %3760 = vmatpush1.msra.mxu0 0.0
    %3761 = vmatprep.subr.mxu0 0.0
    %3762 = vmatpush1.msra.mxu0 0.0
    %3763 = vmatprep.subr.mxu0 0.0
    %3764 = vmatpush1.msra.mxu0 0.0
    %3765 = vmatprep.subr.mxu0 0.0
    %3766 = vmatpush1.msra.mxu0 0.0
    %3767 = vmatprep.subr.mxu0 0.0
    %3768 = vmatpush1.msra.mxu0 0.0
    %3769 = vmatprep.subr.mxu0 0.0
    %3770 = vmatpush1.msra.mxu0 0.0
    %3771 = vmatprep.subr.mxu0 0.0
    %3772 = vmatpush1.msra.mxu0 %v1070
    %3773 = vmatprep.subr.mxu0 0.0
    %3774 = vmatpush1.msra.mxu0 %v1069
    %3775 = vmatprep.subr.mxu0 0.0
    %3776 = vmatpush2.msra.mxu0 0.0
    %3777 = vmatprep.subr.mxu0 0.0
    %3778 = vmatpush2.msra.mxu0 0.0
    %3779 = vmatprep.subr.mxu0 0.0
    %3780 = vmatpush2.msra.mxu0 0.0
    %3781 = vmatprep.subr.mxu0 0.0
    %3782 = vmatpush2.msra.mxu0 0.0
    %3783 = vmatprep.subr.mxu0 0.0
    %3784 = vmatpush2.msra.mxu0 0.0
    %3785 = vmatprep.subr.mxu0 0.0
    %3786 = vmatpush2.msra.mxu0 0.0
    %3787 = vmatprep.subr.mxu0 0.0
    %3788 = vmatpush2.msra.mxu0 0.0
    %3789 = vmatprep.subr.mxu0 0.0
    %3790 = vmatpush2.msra.mxu0 0.0
    %3791 = vmatprep.subr.mxu0 0.0
    %3792 = vmatpush2.msra.mxu0 0.0
    %3793 = vmatprep.subr.mxu0 0.0
    %3794 = vmatpush2.msra.mxu0 0.0
    %3795 = vmatprep.subr.mxu0 0.0
    %3796 = vmatpush2.msra.mxu0 0.0
    %3797 = vmatprep.subr.mxu0 0.0
    %3798 = vmatpush2.msra.mxu0 0.0
    %3799 = vmatprep.subr.mxu0 0.0
    %3800 = vmatpush2.msra.mxu0 0.0
    %3801 = vmatprep.subr.mxu0 0.0
    %3802 = vmatpush2.msra.mxu0 0.0
    %3803 = vmatprep.subr.mxu0 0.0
    %3804 = vmatpush2.msra.mxu0 0.0
    %3805 = vmatprep.subr.mxu0 0.0
    %3806 = vmatpush2.msra.mxu0 0.0
    %3807 = vmatprep.mubr.f32.mxu0 0.0
    %3808 = vmatmul.mubr.f32.gmra.mxu0 %v3741
    %v3809 = vpop.f32.mrf.mxu0
    %v3810 = vadd.f32 0.0, %v3809
    %v3811 = vpop.f32.mrf.mxu0
    %3812 = vdwg.mxu0
    %v3814 = vsel %vm59, %v3810, 0
    %3816 = vmatprep.subr.mxu0 0.0
    %3817 = vmatpush1.msra.mxu0 0.0
    %3818 = vmatprep.subr.mxu0 0.0
    %3819 = vmatpush1.msra.mxu0 0.0
    %3820 = vmatprep.subr.mxu0 0.0
    %3821 = vmatpush1.msra.mxu0 0.0
    %3822 = vmatprep.subr.mxu0 0.0
    %3823 = vmatpush1.msra.mxu0 0.0
    %3824 = vmatprep.subr.mxu0 0.0
    %3825 = vmatpush1.msra.mxu0 0.0
    %3826 = vmatprep.subr.mxu0 0.0
    %3827 = vmatpush1.msra.mxu0 0.0
    %3828 = vmatprep.subr.mxu0 0.0
    %3829 = vmatpush1.msra.mxu0 0.0
    %3830 = vmatprep.subr.mxu0 0.0
    %3831 = vmatpush1.msra.mxu0 0.0
    %3832 = vmatprep.subr.mxu0 0.0
    %3833 = vmatpush1.msra.mxu0 0.0
    %3834 = vmatprep.subr.mxu0 0.0
    %3835 = vmatpush1.msra.mxu0 0.0
    %3836 = vmatprep.subr.mxu0 0.0
    %3837 = vmatpush1.msra.mxu0 0.0
    %3838 = vmatprep.subr.mxu0 0.0
    %3839 = vmatpush1.msra.mxu0 0.0
    %3840 = vmatprep.subr.mxu0 0.0
    %3841 = vmatpush1.msra.mxu0 %v1082
    %3842 = vmatprep.subr.mxu0 0.0
    %3843 = vmatpush1.msra.mxu0 %v1081
    %3844 = vmatprep.subr.mxu0 0.0
    %3845 = vmatpush1.msra.mxu0 %v1080
    %3846 = vmatprep.subr.mxu0 0.0
    %3847 = vmatpush1.msra.mxu0 %v1079
    %3848 = vmatprep.subr.mxu0 0.0
    %3849 = vmatpush2.msra.mxu0 0.0
    %3850 = vmatprep.subr.mxu0 0.0
    %3851 = vmatpush2.msra.mxu0 0.0
    %3852 = vmatprep.subr.mxu0 0.0
    %3853 = vmatpush2.msra.mxu0 0.0
    %3854 = vmatprep.subr.mxu0 0.0
    %3855 = vmatpush2.msra.mxu0 0.0
    %3856 = vmatprep.subr.mxu0 0.0
    %3857 = vmatpush2.msra.mxu0 0.0
    %3858 = vmatprep.subr.mxu0 0.0
    %3859 = vmatpush2.msra.mxu0 0.0
    %3860 = vmatprep.subr.mxu0 0.0
    %3861 = vmatpush2.msra.mxu0 0.0
    %3862 = vmatprep.subr.mxu0 0.0
    %3863 = vmatpush2.msra.mxu0 0.0
    %3864 = vmatprep.subr.mxu0 0.0
    %3865 = vmatpush2.msra.mxu0 0.0
    %3866 = vmatprep.subr.mxu0 0.0
    %3867 = vmatpush2.msra.mxu0 0.0
    %3868 = vmatprep.subr.mxu0 0.0
    %3869 = vmatpush2.msra.mxu0 0.0
    %3870 = vmatprep.subr.mxu0 0.0
    %3871 = vmatpush2.msra.mxu0 0.0
    %3872 = vmatprep.subr.mxu0 0.0
    %3873 = vmatpush2.msra.mxu0 0.0
    %3874 = vmatprep.subr.mxu0 0.0
    %3875 = vmatpush2.msra.mxu0 0.0
    %3876 = vmatprep.subr.mxu0 0.0
    %3877 = vmatpush2.msra.mxu0 0.0
    %3878 = vmatprep.subr.mxu0 0.0
    %3879 = vmatpush2.msra.mxu0 0.0
    %3880 = vmatprep.mubr.f32.mxu0 0.0
    %3881 = vmatmul.mubr.f32.gmra.mxu0 %v3814
    %v3882 = vpop.f32.mrf.mxu0
    %v3883 = vadd.f32 0.0, %v3882
    %v3884 = vpop.f32.mrf.mxu0
    %3885 = vdwg.mxu0
    %3886 = vmatprep.subr.mxu0 0.0
    %3887 = vmatpush1.msra.mxu0 0.0
    %3888 = vmatprep.subr.mxu0 0.0
    %3889 = vmatpush1.msra.mxu0 0.0
    %3890 = vmatprep.subr.mxu0 0.0
    %3891 = vmatpush1.msra.mxu0 0.0
    %3892 = vmatprep.subr.mxu0 0.0
    %3893 = vmatpush1.msra.mxu0 0.0
    %3894 = vmatprep.subr.mxu0 0.0
    %3895 = vmatpush1.msra.mxu0 0.0
    %3896 = vmatprep.subr.mxu0 0.0
    %3897 = vmatpush1.msra.mxu0 0.0
    %3898 = vmatprep.subr.mxu0 0.0
    %3899 = vmatpush1.msra.mxu0 0.0
    %3900 = vmatprep.subr.mxu0 0.0
    %3901 = vmatpush1.msra.mxu0 0.0
    %3902 = vmatprep.subr.mxu0 0.0
    %3903 = vmatpush1.msra.mxu0 0.0
    %3904 = vmatprep.subr.mxu0 0.0
    %3905 = vmatpush1.msra.mxu0 0.0
    %3906 = vmatprep.subr.mxu0 0.0
    %3907 = vmatpush1.msra.mxu0 0.0
    %3908 = vmatprep.subr.mxu0 0.0
    %3909 = vmatpush1.msra.mxu0 0.0
    %3910 = vmatprep.subr.mxu0 0.0
    %3911 = vmatpush1.msra.mxu0 %v1078
    %3912 = vmatprep.subr.mxu0 0.0
    %3913 = vmatpush1.msra.mxu0 %v1077
    %3914 = vmatprep.subr.mxu0 0.0
    %3915 = vmatpush1.msra.mxu0 %v1076
    %3916 = vmatprep.subr.mxu0 0.0
    %3917 = vmatpush1.msra.mxu0 %v1075
    %3918 = vmatprep.subr.mxu0 0.0
    %3919 = vmatpush2.msra.mxu0 0.0
    %3920 = vmatprep.subr.mxu0 0.0
    %3921 = vmatpush2.msra.mxu0 0.0
    %3922 = vmatprep.subr.mxu0 0.0
    %3923 = vmatpush2.msra.mxu0 0.0
    %3924 = vmatprep.subr.mxu0 0.0
    %3925 = vmatpush2.msra.mxu0 0.0
    %3926 = vmatprep.subr.mxu0 0.0
    %3927 = vmatpush2.msra.mxu0 0.0
    %3928 = vmatprep.subr.mxu0 0.0
    %3929 = vmatpush2.msra.mxu0 0.0
    %3930 = vmatprep.subr.mxu0 0.0
    %3931 = vmatpush2.msra.mxu0 0.0
    %3932 = vmatprep.subr.mxu0 0.0
    %3933 = vmatpush2.msra.mxu0 0.0
    %3934 = vmatprep.subr.mxu0 0.0
    %3935 = vmatpush2.msra.mxu0 0.0
    %3936 = vmatprep.subr.mxu0 0.0
    %3937 = vmatpush2.msra.mxu0 0.0
    %3938 = vmatprep.subr.mxu0 0.0
    %3939 = vmatpush2.msra.mxu0 0.0
    %3940 = vmatprep.subr.mxu0 0.0
    %3941 = vmatpush2.msra.mxu0 0.0
    %3942 = vmatprep.subr.mxu0 0.0
    %3943 = vmatpush2.msra.mxu0 0.0
    %3944 = vmatprep.subr.mxu0 0.0
    %3945 = vmatpush2.msra.mxu0 0.0
    %3946 = vmatprep.subr.mxu0 0.0
    %3947 = vmatpush2.msra.mxu0 0.0
    %3948 = vmatprep.subr.mxu0 0.0
    %3949 = vmatpush2.msra.mxu0 0.0
    %3950 = vmatprep.mubr.f32.mxu0 0.0
    %3951 = vmatmul.mubr.f32.gmra.mxu0 %v3656
    %v3952 = vpop.f32.mrf.mxu0
    %v3953 = vadd.f32 %v3883, %v3952
    %v3954 = vpop.f32.mrf.mxu0
    %3955 = vdwg.mxu0
    %v3956 = vtanh.pop %v3953
    %v3958 = vsel %vm59, %v3956, 0
    %3960 = vmatprep.subr.mxu0 0.0
    %3961 = vmatpush1.msra.mxu0 0.0
    %3962 = vmatprep.subr.mxu0 0.0
    %3963 = vmatpush1.msra.mxu0 0.0
    %3964 = vmatprep.subr.mxu0 0.0
    %3965 = vmatpush1.msra.mxu0 0.0
    %3966 = vmatprep.subr.mxu0 0.0
    %3967 = vmatpush1.msra.mxu0 0.0
    %3968 = vmatprep.subr.mxu0 0.0
    %3969 = vmatpush1.msra.mxu0 0.0
    %3970 = vmatprep.subr.mxu0 0.0
    %3971 = vmatpush1.msra.mxu0 0.0
    %3972 = vmatprep.subr.mxu0 0.0
    %3973 = vmatpush1.msra.mxu0 0.0
    %3974 = vmatprep.subr.mxu0 0.0
    %3975 = vmatpush1.msra.mxu0 0.0
    %3976 = vmatprep.subr.mxu0 0.0
    %3977 = vmatpush1.msra.mxu0 0.0
    %3978 = vmatprep.subr.mxu0 0.0
    %3979 = vmatpush1.msra.mxu0 0.0
    %3980 = vmatprep.subr.mxu0 0.0
    %3981 = vmatpush1.msra.mxu0 0.0
    %3982 = vmatprep.subr.mxu0 0.0
    %3983 = vmatpush1.msra.mxu0 0.0
    %3984 = vmatprep.subr.mxu0 0.0
    %3985 = vmatpush1.msra.mxu0 %v1086
    %3986 = vmatprep.subr.mxu0 0.0
    %3987 = vmatpush1.msra.mxu0 %v1085
    %3988 = vmatprep.subr.mxu0 0.0
    %3989 = vmatpush1.msra.mxu0 %v1084
    %3990 = vmatprep.subr.mxu0 0.0
    %3991 = vmatpush1.msra.mxu0 %v1083
    %3992 = vmatprep.subr.mxu0 0.0
    %3993 = vmatpush2.msra.mxu0 0.0
    %3994 = vmatprep.subr.mxu0 0.0
    %3995 = vmatpush2.msra.mxu0 0.0
    %3996 = vmatprep.subr.mxu0 0.0
    %3997 = vmatpush2.msra.mxu0 0.0
    %3998 = vmatprep.subr.mxu0 0.0
    %3999 = vmatpush2.msra.mxu0 0.0
    %4000 = vmatprep.subr.mxu0 0.0
    %4001 = vmatpush2.msra.mxu0 0.0
    %4002 = vmatprep.subr.mxu0 0.0
    %4003 = vmatpush2.msra.mxu0 0.0
    %4004 = vmatprep.subr.mxu0 0.0
    %4005 = vmatpush2.msra.mxu0 0.0
    %4006 = vmatprep.subr.mxu0 0.0
    %4007 = vmatpush2.msra.mxu0 0.0
    %4008 = vmatprep.subr.mxu0 0.0
    %4009 = vmatpush2.msra.mxu0 0.0
    %4010 = vmatprep.subr.mxu0 0.0
    %4011 = vmatpush2.msra.mxu0 0.0
    %4012 = vmatprep.subr.mxu0 0.0
    %4013 = vmatpush2.msra.mxu0 0.0
    %4014 = vmatprep.subr.mxu0 0.0
    %4015 = vmatpush2.msra.mxu0 0.0
    %4016 = vmatprep.subr.mxu0 0.0
    %4017 = vmatpush2.msra.mxu0 0.0
    %4018 = vmatprep.subr.mxu0 0.0
    %4019 = vmatpush2.msra.mxu0 0.0
    %4020 = vmatprep.subr.mxu0 0.0
    %4021 = vmatpush2.msra.mxu0 0.0
    %4022 = vmatprep.subr.mxu0 0.0
    %4023 = vmatpush2.msra.mxu0 0.0
    %4024 = vmatprep.mubr.f32.mxu0 0.0
    %4025 = vmatmul.mubr.f32.gmra.mxu0 %v3958
    %v4026 = vpop.f32.mrf.mxu0
    %v4027 = vadd.f32 %v1519, %v4026
    %v4028 = vpop.f32.mrf.mxu0
    %4029 = vdwg.mxu0
    %v4030 = vsel %vm1594, %v4027, -inf
    %4031 = vmax.xlane.f32.xlu0 %v4030
    %v4032 = vpop.xlane.xlu0 %4031
    %v4033 = vsub.f32 %v4027, %v4032
    %v4034 = vmul.f32 %v4033, 1.442695
    %v4035 = vpow.pop %v4034
    %v4036 = vsel %vm1594, %v4035, 0.0
    %4037 = vadd.xlane.f32.xlu0 %v4036
    %v4038 = vpop.xlane.xlu0 %4037
    %v4039 = vlog2.pop %v4038
    %v4040 = vmul.f32 %v4039, 0.6931472
    %v4041 = vadd.f32 %v4040, %v4032
    %v4042 = vsub.f32 %v4027, %v4041
    %4043 = vst [vmem:[%s12 + $0xa] sm:$0x3] %v4042
    %4045 = vst.msk [vmem:[#allocation5] sm:$0x3] %vm346, %v3655
    %4047 = vrot.lane.b32.xlu0 %v3646, 96
    %v4048 = vpop.permute.xlu0 %4047
    %4050 = vst.msk [vmem:[#allocation7] sm:$0x3] %vm346, %v4048
    // Predicated region
    $region50: #{g2p_forward.1} parent=1 // pred_check
      _
    $region51: #{g2p_forward.1} parent=1 // pred_check_branch
      %4052 = sbr.rel (0) target = $region53
    $region52: #{g2p_forward.1} parent=1 // pred_region
      _
    $region53: #{g2p_forward.1} parent=1 // pred_fallthru
      _
    // Predicated region
    $region54: #{g2p_forward.1} parent=1 // pred_check
      _
    $region55: #{g2p_forward.1} parent=1 // pred_check_branch
      %4054 = sbr.rel (0) target = $region57
    $region56: #{g2p_forward.1} parent=1 // pred_region
      %s4056 = ssub.s32 32, 32
      %4057 = vsyncadd [#allocation6], %s4056
      %s4059 = sshll.u32 [#allocation5], 4
      %s4060 = int_to_ptr.vmem [resolvable:$true] %s4059
      %4062 = dma.vmem_to_hbm [thread:$0]  %s4060, 32, %s13, [#allocation6]
    $region57: #{g2p_forward.1} parent=1 // pred_fallthru
      _
    // Predicated region
    $region58: #{g2p_forward.1} parent=1 // pred_check
      _
    $region59: #{g2p_forward.1} parent=1 // pred_check_branch
      %4064 = sbr.rel (0) target = $region61
    $region60: #{g2p_forward.1} parent=1 // pred_region
      %s4066 = ssub.s32 32, 32
      %4067 = vsyncadd [#allocation8], %s4066
      %s4069 = sshll.u32 [#allocation7], 4
      %s4070 = int_to_ptr.vmem [resolvable:$true] %s4069
      %4072 = dma.vmem_to_hbm [thread:$0]  %s4070, 32, %s14, [#allocation8]
    $region61: #{g2p_forward.1} parent=1 // pred_fallthru
      _
    // Predicated region
    $region62: #{g2p_forward.1} parent=1 // pred_check
      _
    $region63: #{g2p_forward.1} parent=1 // pred_check_branch
      %4074 = sbr.rel (0) target = $region65
    $region64: #{g2p_forward.1} parent=1 // pred_region
      _
    $region65: #{g2p_forward.1} parent=1 // pred_fallthru
      _
    // Predicated region
    $region66: #{g2p_forward.1} parent=1 // pred_check
      _
    $region67: #{g2p_forward.1} parent=1 // pred_check_branch
      %4076 = sbr.rel (0) target = $region69
    $region68: #{g2p_forward.1} parent=1 // pred_region
      %4077 = dma.done [#allocation6], 32
    $region69: #{g2p_forward.1} parent=1 // pred_fallthru
      _
    // Predicated region
    $region70: #{g2p_forward.1} parent=1 // pred_check
      _
    $region71: #{g2p_forward.1} parent=1 // pred_check_branch
      %4079 = sbr.rel (0) target = $region73
    $region72: #{g2p_forward.1} parent=1 // pred_region
      %4080 = dma.done [#allocation8], 32
    $region73: #{g2p_forward.1} parent=1 // pred_fallthru
      _
    %4081 = vsyncpa [#allocation6], 1
    %4082 = vsyncpa [#allocation8], 1

</llo_original>
